<compile_context>
chip_gen: v7x
topology: tpu7x:2x2x1
jax: 0.10.0
libtpu: 0.0.40
codegen_flags: <defaults>
</compile_context>

<pallas_src>
import functools
import math

import jax
import jax.numpy as jnp
from jax.experimental import pallas as pl
from jax.experimental.pallas import tpu as pltpu


# ----------------------------- packed-operand row indices -----------------------------

# rows of the stacked (6, E, E) projection-weight array
_SA_WV, _SA_WO, _CA_WQ, _CA_WK, _CA_WV, _CA_WO = range(6)

# rows of the packed (16, E) bias / LayerNorm-parameter array
(_V_SA_BQ, _V_SA_BK, _V_SA_BV, _V_SA_BO,
 _V_CA_BQ, _V_CA_BK, _V_CA_BV, _V_CA_BO,
 _V_G1, _V_BE1, _V_G2, _V_BE2, _V_G3, _V_BE3, _V_FF_B2) = range(15)
_N_VEC_ROWS = 16  # one zero row of padding for sublane alignment


# ------------------------------------ fused kernel ------------------------------------

def _decoder_layer_kernel(tgt_ref, mem_ref, qpos_ref, pos_ref,
                          sa_wqk_ref, wstack_ref, w1_ref, w2_ref, b1_ref, vecs_ref,
                          out_ref, *, nhead, compute_dtype):
    f32 = jnp.float32
    cd = compute_dtype
    E = tgt_ref.shape[-1]
    Dh = E // nhead

    tgt = tgt_ref[0].astype(f32)      # (L, E)
    mem = mem_ref[0].astype(f32)      # (S, E)
    qpos = qpos_ref[0].astype(f32)    # (L, E)
    pos = pos_ref[0].astype(f32)      # (S, E)
    vecs = vecs_ref[...].astype(f32)  # (16, E)

    def vrow(i):                       # (1, E) slice of the packed bias/LN array
        return vecs[i:i + 1, :]

    def proj(x, w):                    # x: (R, K) f32, w: (K, M) in compute_dtype
        return jnp.dot(x.astype(cd), w, preferred_element_type=f32)

    def attn_core(q, k, v):
        """q: (Lq, E) (scale already folded in), k/v: (Lk, E). Returns (Lq, E)."""
        Lq = q.shape[0]
        Lk = k.shape[0]
        # One relayout per tensor to head-major (H, R, Dh), then heads-batched dots.
        qh = jnp.transpose(q.reshape(Lq, nhead, Dh), (1, 0, 2)).astype(cd)
        kh = jnp.transpose(k.reshape(Lk, nhead, Dh), (1, 0, 2)).astype(cd)
        vh = jnp.transpose(v.reshape(Lk, nhead, Dh), (1, 0, 2)).astype(cd)
        s = jax.lax.dot_general(qh, kh, (((2,), (2,)), ((0,), (0,))),
                                preferred_element_type=f32)          # (H, Lq, Lk)
        s = s - jnp.max(s, axis=-1, keepdims=True)
        p = jnp.exp(s)
        p = p * pl.reciprocal(jnp.sum(p, axis=-1, keepdims=True), approx=True)
        o = jax.lax.dot_general(p.astype(cd), vh, (((2,), (1,)), ((0,), (0,))),
                                preferred_element_type=f32)          # (H, Lq, Dh)
        return jnp.transpose(o, (1, 0, 2)).reshape(Lq, E)

    def add_ln(x, r, gi, bi):          # LayerNorm(x + r), eps = 1e-5
        y = x + r
        mu = jnp.mean(y, axis=-1, keepdims=True)
        d = y - mu
        var = jnp.mean(d * d, axis=-1, keepdims=True)
        return d * jax.lax.rsqrt(var + 1e-5) * vrow(gi) + vrow(bi)

    # ---- self-attention (fused Q|K projection) + add & norm1 ----
    qk_in = tgt + qpos
    qk = proj(qk_in, sa_wqk_ref[...])                       # (L, 2E)
    q = qk[:, :E] + vrow(_V_SA_BQ)
    k = qk[:, E:] + vrow(_V_SA_BK)
    v = proj(tgt, wstack_ref[_SA_WV]) + vrow(_V_SA_BV)
    sa = proj(attn_core(q, k, v), wstack_ref[_SA_WO]) + vrow(_V_SA_BO)
    x = add_ln(tgt, sa, _V_G1, _V_BE1)

    # ---- cross-attention + add & norm2 ----
    q = proj(x + qpos, wstack_ref[_CA_WQ]) + vrow(_V_CA_BQ)
    k = proj(mem + pos, wstack_ref[_CA_WK]) + vrow(_V_CA_BK)
    v = proj(mem, wstack_ref[_CA_WV]) + vrow(_V_CA_BV)
    ca = proj(attn_core(q, k, v), wstack_ref[_CA_WO]) + vrow(_V_CA_BO)
    x = add_ln(x, ca, _V_G2, _V_BE2)

    # ---- FFN (relu) + add & norm3 ----
    h = jnp.maximum(proj(x, w1_ref[...]) + b1_ref[...].astype(f32), 0.0)
    ff = proj(h, w2_ref[...]) + vrow(_V_FF_B2)
    x = add_ln(x, ff, _V_G3, _V_BE3)

    out_ref[0] = x.astype(out_ref.dtype)


# -------------------------------------- wrapper ---------------------------------------

def transformer_decoder_layer(prep, tgt, memory, pos=None, query_pos=None, *,
                              nhead, compute_dtype=jnp.float32):
    """forward_post: self-attn -> add&norm -> cross-attn -> add&norm -> FFN -> add&norm."""
    L, N, E = tgt.shape
    S = memory.shape[0]
    if pos is None:
        pos = jnp.zeros_like(memory)
    if query_pos is None:
        query_pos = jnp.zeros_like(tgt)

    # Batch-major layout: one contiguous (L,E)/(S,E) slab per grid step.
    tgt_b = jnp.transpose(tgt, (1, 0, 2))         # (N, L, E)
    mem_b = jnp.transpose(memory, (1, 0, 2))      # (N, S, E)
    qpos_b = jnp.transpose(query_pos, (1, 0, 2))  # (N, L, E)
    pos_b = jnp.transpose(pos, (1, 0, 2))         # (N, S, E)

    def act_spec(seq_len):
        return pl.BlockSpec((1, seq_len, E), lambda n: (n, 0, 0))

    def full_spec(shape):
        nd = len(shape)
        return pl.BlockSpec(shape, lambda n: (0,) * nd)   # resident across the grid

    out = pl.pallas_call(
        functools.partial(_decoder_layer_kernel, nhead=nhead, compute_dtype=compute_dtype),
        grid=(N,),
        in_specs=[act_spec(L), act_spec(S), act_spec(L), act_spec(S),
                  full_spec(prep["sa_wqk"].shape), full_spec(prep["wstack"].shape),
                  full_spec(prep["w1"].shape), full_spec(prep["w2"].shape),
                  full_spec(prep["b1"].shape), full_spec(prep["vecs"].shape)],
        out_specs=pl.BlockSpec((1, L, E), lambda n: (n, 0, 0)),
        out_shape=jax.ShapeDtypeStruct((N, L, E), tgt.dtype),
        compiler_params=pltpu.CompilerParams(dimension_semantics=("parallel",)),
    )(tgt_b, mem_b, qpos_b, pos_b,
      prep["sa_wqk"], prep["wstack"], prep["w1"], prep["w2"], prep["b1"], prep["vecs"])

    return jnp.transpose(out, (1, 0, 2))          # back to (L, N, E)


# -------------------------- params (PyTorch layout) + preparation ----------------------

def init_params(key, d_model, nhead, dim_feedforward, dtype=jnp.float32):
    """Parameters in PyTorch conventions (Linear weights are (out_features, in_features))."""
    ks = jax.random.split(key, 8)

    def nrm(k, shape, scale=0.02):
        return (scale * jax.random.normal(k, shape)).astype(dtype)

    def mha(k1, k2):
        return {
            "in_proj_w": nrm(k1, (3 * d_model, d_model)),
            "in_proj_b": jnp.zeros((3 * d_model,), dtype),
            "out_w": nrm(k2, (d_model, d_model)),
            "out_b": jnp.zeros((d_model,), dtype),
        }

    return {
        "self_attn": mha(ks[0], ks[1]),
        "cross_attn": mha(ks[2], ks[3]),
        "linear1_w": nrm(ks[4], (dim_feedforward, d_model)),
        "linear1_b": jnp.zeros((dim_feedforward,), dtype),
        "linear2_w": nrm(ks[5], (d_model, dim_feedforward)),
        "linear2_b": jnp.zeros((d_model,), dtype),
        "norm1_g": jnp.ones((d_model,), dtype), "norm1_b": jnp.zeros((d_model,), dtype),
        "norm2_g": jnp.ones((d_model,), dtype), "norm2_b": jnp.zeros((d_model,), dtype),
        "norm3_g": jnp.ones((d_model,), dtype), "norm3_b": jnp.zeros((d_model,), dtype),
    }


def prepare_params(params, d_model, nhead, compute_dtype=jnp.float32):
    """One-time weight prep (outside jit): transpose to (K,N), fuse Q|K for self-attn, fold
    the 1/sqrt(head_dim) scale into the Q projection, stack (E,E) weights into one (6,E,E)
    array and all E-sized biases / LN params into one (16,E) array. Weights are stored in
    `compute_dtype` (bf16 for the v6e/v7x MXU path); biases/LN params stay f32."""
    E = d_model
    scale = 1.0 / math.sqrt(E // nhead)
    cd = compute_dtype

    def split(p):
        w, b = p["in_proj_w"], p["in_proj_b"]
        return w[:E].T, w[E:2 * E].T, w[2 * E:].T, b[:E], b[E:2 * E], b[2 * E:]

    sa, ca = params["self_attn"], params["cross_attn"]
    sa_wq, sa_wk, sa_wv, sa_bq, sa_bk, sa_bv = split(sa)
    ca_wq, ca_wk, ca_wv, ca_bq, ca_bk, ca_bv = split(ca)

    sa_wqk = jnp.concatenate([sa_wq * scale, sa_wk], axis=1).astype(cd)       # (E, 2E)
    wstack = jnp.stack([sa_wv, sa["out_w"].T,
                        ca_wq * scale, ca_wk, ca_wv, ca["out_w"].T]).astype(cd)  # (6, E, E)

    w1 = params["linear1_w"].T.astype(cd)                                     # (E, F)
    w2 = params["linear2_w"].T.astype(cd)                                     # (F, E)
    F_ = w1.shape[1]
    b1 = params["linear1_b"].reshape(1, F_).astype(jnp.float32)               # (1, F)

    vec_rows = [sa_bq * scale, sa_bk, sa_bv, sa["out_b"],
                ca_bq * scale, ca_bk, ca_bv, ca["out_b"],
                params["norm1_g"], params["norm1_b"],
                params["norm2_g"], params["norm2_b"],
                params["norm3_g"], params["norm3_b"],
                params["linear2_b"], jnp.zeros((E,), jnp.float32)]
    vecs = jnp.stack(vec_rows).astype(jnp.float32)                            # (16, E)
    assert vecs.shape[0] == _N_VEC_ROWS

    return {"sa_wqk": sa_wqk, "wstack": wstack, "w1": w1, "w2": w2, "b1": b1, "vecs": vecs}


# --------------------------------- pure-JAX reference ----------------------------------

def ref_decoder_layer(params, tgt, memory, pos, query_pos, *, nhead):
    """Reference computed straight from the PyTorch-layout parameters."""
    def mha(q_in, k_in, v_in, p):
        Lq, N_, E = q_in.shape
        Lk = k_in.shape[0]
        Dh = E // nhead
        w, b = p["in_proj_w"], p["in_proj_b"]
        q = q_in @ w[:E].T + b[:E]
        k = k_in @ w[E:2 * E].T + b[E:2 * E]
        v = v_in @ w[2 * E:].T + b[2 * E:]
        q = q.reshape(Lq, N_, nhead, Dh).transpose(1, 2, 0, 3) / math.sqrt(Dh)
        k = k.reshape(Lk, N_, nhead, Dh).transpose(1, 2, 0, 3)
        v = v.reshape(Lk, N_, nhead, Dh).transpose(1, 2, 0, 3)
        a = jax.nn.softmax(jnp.einsum("nhqd,nhkd->nhqk", q, k), axis=-1)
        o = jnp.einsum("nhqk,nhkd->nhqd", a, v).transpose(2, 0, 1, 3).reshape(Lq, N_, E)
        return o @ p["out_w"].T + p["out_b"]

    def ln(x, g, b_):
        mu = x.mean(-1, keepdims=True)
        var = ((x - mu) ** 2).mean(-1, keepdims=True)
        return (x - mu) * jax.lax.rsqrt(var + 1e-5) * g + b_

    qk = tgt + query_pos
    x = ln(tgt + mha(qk, qk, tgt, params["self_attn"]),
           params["norm1_g"], params["norm1_b"])
    x = ln(x + mha(x + query_pos, memory + pos, memory, params["cross_attn"]),
           params["norm2_g"], params["norm2_b"])
    h = jax.nn.relu(x @ params["linear1_w"].T + params["linear1_b"])
    x = ln(x + (h @ params["linear2_w"].T + params["linear2_b"]),
           params["norm3_g"], params["norm3_b"])
    return x


# ------------------------------------------ main ---------------------------------------

if __name__ == "__main__":
    d_model, nhead, dim_feedforward = 32, 4, 64
    L, S, N = 8, 12, 2  # tgt seq len, memory seq len, batch

    key = jax.random.PRNGKey(0)
    k_tgt, k_mem, k_pos, k_qpos, k_par = jax.random.split(key, 5)

    tgt = jax.random.normal(k_tgt, (L, N, d_model), jnp.float32)
    memory = jax.random.normal(k_mem, (S, N, d_model), jnp.float32)
    pos = jax.random.normal(k_pos, (S, N, d_model), jnp.float32)
    query_pos = jax.random.normal(k_qpos, (L, N, d_model), jnp.float32)

    params = init_params(k_par, d_model, nhead, dim_feedforward)
    ref = ref_decoder_layer(params, tgt, memory, pos, query_pos, nhead=nhead)

    # --- f32 MXU operands: exact-parity path ---
    prep32 = prepare_params(params, d_model, nhead, compute_dtype=jnp.float32)
    fwd32 = jax.jit(functools.partial(transformer_decoder_layer, nhead=nhead,
                                      compute_dtype=jnp.float32))
    out32 = jax.block_until_ready(fwd32(prep32, tgt, memory, pos, query_pos))
    assert out32.shape == (L, N, d_model)
    assert jnp.isfinite(out32).all()
    err32 = float(jnp.max(jnp.abs(out32 - ref)))
    assert err32 < 5e-2, f"f32 path max abs err {err32}"

    # --- bf16 MXU operands (v6e/v7x throughput path), f32 accumulation / softmax / LN ---
    prep16 = prepare_params(params, d_model, nhead, compute_dtype=jnp.bfloat16)
    fwd16 = jax.jit(functools.partial(transformer_decoder_layer, nhead=nhead,
                                      compute_dtype=jnp.bfloat16))
    out16 = jax.block_until_ready(fwd16(prep16, tgt, memory, pos, query_pos))
    assert jnp.isfinite(out16).all()
    err16 = float(jnp.max(jnp.abs(out16 - ref)))
    assert err16 < 2e-1, f"bf16 path max abs err {err16}"

    print("KERNEL_OK")
</pallas_src>

<mosaic_0001>
module attributes {stable_mosaic.version = 11 : i64} {
  func.func @_decoder_layer_kernel(%arg0: i32, %arg1: memref<1x8x32xf32, #tpu.memory_space<vmem>>, %arg2: memref<1x12x32xf32, #tpu.memory_space<vmem>>, %arg3: memref<1x8x32xf32, #tpu.memory_space<vmem>>, %arg4: memref<1x12x32xf32, #tpu.memory_space<vmem>>, %arg5: memref<32x64xf32, #tpu.memory_space<vmem>>, %arg6: memref<6x32x32xf32, #tpu.memory_space<vmem>>, %arg7: memref<32x64xf32, #tpu.memory_space<vmem>>, %arg8: memref<64x32xf32, #tpu.memory_space<vmem>>, %arg9: memref<1x64xf32, #tpu.memory_space<vmem>>, %arg10: memref<16x32xf32, #tpu.memory_space<vmem>>, %arg11: memref<1x8x32xf32, #tpu.memory_space<vmem>>) attributes {dimension_semantics = [#tpu.dimension_semantics<parallel>], iteration_bounds = array<i64: 2>, scalar_prefetch = 0 : i64, scratch_operands = 0 : i64, tpu.core_type = #tpu.core_type<tc>, window_params = [{transform_indices = @transform_0, window_bounds = array<i64: 1, 8, 32>}, {transform_indices = @transform_1, window_bounds = array<i64: 1, 12, 32>}, {transform_indices = @transform_2, window_bounds = array<i64: 1, 8, 32>}, {transform_indices = @transform_3, window_bounds = array<i64: 1, 12, 32>}, {pipeline_mode = #tpu.pipeline_mode<synchronous>, transform_indices = @transform_4, window_bounds = array<i64: 32, 64>}, {pipeline_mode = #tpu.pipeline_mode<synchronous>, transform_indices = @transform_5, window_bounds = array<i64: 6, 32, 32>}, {pipeline_mode = #tpu.pipeline_mode<synchronous>, transform_indices = @transform_6, window_bounds = array<i64: 32, 64>}, {pipeline_mode = #tpu.pipeline_mode<synchronous>, transform_indices = @transform_7, window_bounds = array<i64: 64, 32>}, {pipeline_mode = #tpu.pipeline_mode<synchronous>, transform_indices = @transform_8, window_bounds = array<i64: 1, 64>}, {pipeline_mode = #tpu.pipeline_mode<synchronous>, transform_indices = @transform_9, window_bounds = array<i64: 16, 32>}, {transform_indices = @transform_10, window_bounds = array<i64: 1, 8, 32>}]} {
    %c0 = arith.constant 0 : index
    %c0_0 = arith.constant 0 : index
    %c0_1 = arith.constant 0 : index
    %0 = vector.load %arg1[%c0, %c0_0, %c0_1] : memref<1x8x32xf32, #tpu.memory_space<vmem>>, vector<1x8x32xf32>
    %1 = vector.shape_cast %0 : vector<1x8x32xf32> to vector<8x32xf32>
    %c0_2 = arith.constant 0 : index
    %c0_3 = arith.constant 0 : index
    %c0_4 = arith.constant 0 : index
    %2 = vector.load %arg2[%c0_2, %c0_3, %c0_4] : memref<1x12x32xf32, #tpu.memory_space<vmem>>, vector<1x12x32xf32>
    %3 = vector.shape_cast %2 : vector<1x12x32xf32> to vector<12x32xf32>
    %c0_5 = arith.constant 0 : index
    %c0_6 = arith.constant 0 : index
    %c0_7 = arith.constant 0 : index
    %4 = vector.load %arg3[%c0_5, %c0_6, %c0_7] : memref<1x8x32xf32, #tpu.memory_space<vmem>>, vector<1x8x32xf32>
    %5 = vector.shape_cast %4 : vector<1x8x32xf32> to vector<8x32xf32>
    %c0_8 = arith.constant 0 : index
    %c0_9 = arith.constant 0 : index
    %c0_10 = arith.constant 0 : index
    %6 = vector.load %arg4[%c0_8, %c0_9, %c0_10] : memref<1x12x32xf32, #tpu.memory_space<vmem>>, vector<1x12x32xf32>
    %7 = vector.shape_cast %6 : vector<1x12x32xf32> to vector<12x32xf32>
    %c0_11 = arith.constant 0 : index
    %c0_12 = arith.constant 0 : index
    %8 = vector.load %arg10[%c0_11, %c0_12] : memref<16x32xf32, #tpu.memory_space<vmem>>, vector<16x32xf32>
    %9 = arith.addf %1, %5 : vector<8x32xf32>
    %c0_13 = arith.constant 0 : index
    %c0_14 = arith.constant 0 : index
    %10 = vector.load %arg5[%c0_13, %c0_14] : memref<32x64xf32, #tpu.memory_space<vmem>>, vector<32x64xf32>
    %cst = arith.constant dense<0.000000e+00> : vector<8x64xf32>
    %11 = tpu.matmul %9, %10, %cst {dimension_numbers = #tpu.dot_dimension_numbers<[1], [0], [0], [1], [0, 0, 1, 1], [], []>} : vector<8x32xf32>, vector<32x64xf32>, vector<8x64xf32> -> vector<8x64xf32>
    %12 = vector.extract_strided_slice %11 {offsets = [0, 0], sizes = [8, 32], strides = [1, 1]} : vector<8x64xf32> to vector<8x32xf32>
    %13 = vector.extract_strided_slice %8 {offsets = [0, 0], sizes = [1, 32], strides = [1, 1]} : vector<16x32xf32> to vector<1x32xf32>
    %14 = vector.broadcast %13 : vector<1x32xf32> to vector<8x32xf32>
    %15 = arith.addf %12, %14 : vector<8x32xf32>
    %16 = vector.extract_strided_slice %11 {offsets = [0, 32], sizes = [8, 32], strides = [1, 1]} : vector<8x64xf32> to vector<8x32xf32>
    %17 = vector.extract_strided_slice %8 {offsets = [1, 0], sizes = [1, 32], strides = [1, 1]} : vector<16x32xf32> to vector<1x32xf32>
    %18 = vector.broadcast %17 : vector<1x32xf32> to vector<8x32xf32>
    %19 = arith.addf %16, %18 : vector<8x32xf32>
    %c0_15 = arith.constant 0 : index
    %c0_16 = arith.constant 0 : index
    %c0_17 = arith.constant 0 : index
    %20 = vector.load %arg6[%c0_15, %c0_16, %c0_17] : memref<6x32x32xf32, #tpu.memory_space<vmem>>, vector<1x32x32xf32>
    %21 = vector.shape_cast %20 : vector<1x32x32xf32> to vector<32x32xf32>
    %cst_18 = arith.constant dense<0.000000e+00> : vector<8x32xf32>
    %22 = tpu.matmul %1, %21, %cst_18 {dimension_numbers = #tpu.dot_dimension_numbers<[1], [0], [0], [1], [0, 0, 1, 1], [], []>} : vector<8x32xf32>, vector<32x32xf32>, vector<8x32xf32> -> vector<8x32xf32>
    %23 = vector.extract_strided_slice %8 {offsets = [2, 0], sizes = [1, 32], strides = [1, 1]} : vector<16x32xf32> to vector<1x32xf32>
    %24 = vector.broadcast %23 : vector<1x32xf32> to vector<8x32xf32>
    %25 = arith.addf %22, %24 : vector<8x32xf32>
    %26 = vector.shape_cast %15 : vector<8x32xf32> to vector<8x4x8xf32>
    %27 = tpu.transpose %26, [1, 0, 2] : vector<8x4x8xf32> -> vector<4x8x8xf32>
    %28 = vector.shape_cast %19 : vector<8x32xf32> to vector<8x4x8xf32>
    %29 = tpu.transpose %28, [1, 0, 2] : vector<8x4x8xf32> -> vector<4x8x8xf32>
    %30 = vector.shape_cast %25 : vector<8x32xf32> to vector<8x4x8xf32>
    %31 = tpu.transpose %30, [1, 0, 2] : vector<8x4x8xf32> -> vector<4x8x8xf32>
    %cst_19 = arith.constant dense<0.000000e+00> : vector<4x8x8xf32>
    %32 = tpu.matmul %27, %29, %cst_19 {dimension_numbers = #tpu.dot_dimension_numbers<[2], [2], [1], [1], [0, 0, 0, 1, 1, 1], [0], [0]>} : vector<4x8x8xf32>, vector<4x8x8xf32>, vector<4x8x8xf32> -> vector<4x8x8xf32>
    %cst_20 = arith.constant dense<0xFF800000> : vector<4x8xf32>
    %33 = vector.multi_reduction <maximumf>, %32, %cst_20 [2] : vector<4x8x8xf32> to vector<4x8xf32>
    %34 = vector.shape_cast %33 : vector<4x8xf32> to vector<4x8x1xf32>
    %35 = vector.broadcast %34 : vector<4x8x1xf32> to vector<4x8x8xf32>
    %36 = arith.subf %32, %35 : vector<4x8x8xf32>
    %37 = math.exp %36 : vector<4x8x8xf32>
    %cst_21 = arith.constant dense<0.000000e+00> : vector<4x8xf32>
    %38 = vector.multi_reduction <add>, %37, %cst_21 [2] : vector<4x8x8xf32> to vector<4x8xf32>
    %39 = vector.shape_cast %38 : vector<4x8xf32> to vector<4x8x1xf32>
    %40 = tpu.reciprocal %39 {approx = true} : vector<4x8x1xf32> -> vector<4x8x1xf32>
    %41 = vector.broadcast %40 : vector<4x8x1xf32> to vector<4x8x8xf32>
    %42 = arith.mulf %37, %41 : vector<4x8x8xf32>
    %cst_22 = arith.constant dense<0.000000e+00> : vector<4x8x8xf32>
    %43 = tpu.matmul %42, %31, %cst_22 {dimension_numbers = #tpu.dot_dimension_numbers<[2], [1], [1], [2], [0, 0, 0, 1, 1, 2], [0], [0]>} : vector<4x8x8xf32>, vector<4x8x8xf32>, vector<4x8x8xf32> -> vector<4x8x8xf32>
    %44 = tpu.transpose %43, [1, 0, 2] : vector<4x8x8xf32> -> vector<8x4x8xf32>
    %45 = vector.shape_cast %44 : vector<8x4x8xf32> to vector<8x32xf32>
    %c1 = arith.constant 1 : index
    %c0_23 = arith.constant 0 : index
    %c0_24 = arith.constant 0 : index
    %46 = vector.load %arg6[%c1, %c0_23, %c0_24] : memref<6x32x32xf32, #tpu.memory_space<vmem>>, vector<1x32x32xf32>
    %47 = vector.shape_cast %46 : vector<1x32x32xf32> to vector<32x32xf32>
    %cst_25 = arith.constant dense<0.000000e+00> : vector<8x32xf32>
    %48 = tpu.matmul %45, %47, %cst_25 {dimension_numbers = #tpu.dot_dimension_numbers<[1], [0], [0], [1], [0, 0, 1, 1], [], []>} : vector<8x32xf32>, vector<32x32xf32>, vector<8x32xf32> -> vector<8x32xf32>
    %49 = vector.extract_strided_slice %8 {offsets = [3, 0], sizes = [1, 32], strides = [1, 1]} : vector<16x32xf32> to vector<1x32xf32>
    %50 = vector.broadcast %49 : vector<1x32xf32> to vector<8x32xf32>
    %51 = arith.addf %48, %50 : vector<8x32xf32>
    %52 = arith.addf %1, %51 : vector<8x32xf32>
    %cst_26 = arith.constant dense<0.000000e+00> : vector<8xf32>
    %53 = vector.multi_reduction <add>, %52, %cst_26 [1] : vector<8x32xf32> to vector<8xf32>
    %54 = vector.shape_cast %53 : vector<8xf32> to vector<8x1xf32>
    %cst_27 = arith.constant 3.200000e+01 : f32
    %55 = vector.broadcast %cst_27 : f32 to vector<8x1xf32>
    %56 = arith.divf %54, %55 : vector<8x1xf32>
    %57 = vector.broadcast %56 : vector<8x1xf32> to vector<8x32xf32>
    %58 = arith.subf %52, %57 : vector<8x32xf32>
    %59 = arith.mulf %58, %58 : vector<8x32xf32>
    %cst_28 = arith.constant dense<0.000000e+00> : vector<8xf32>
    %60 = vector.multi_reduction <add>, %59, %cst_28 [1] : vector<8x32xf32> to vector<8xf32>
    %61 = vector.shape_cast %60 : vector<8xf32> to vector<8x1xf32>
    %cst_29 = arith.constant 3.200000e+01 : f32
    %62 = vector.broadcast %cst_29 : f32 to vector<8x1xf32>
    %63 = arith.divf %61, %62 : vector<8x1xf32>
    %cst_30 = arith.constant 9.99999974E-6 : f32
    %64 = vector.broadcast %cst_30 : f32 to vector<8x1xf32>
    %65 = arith.addf %63, %64 : vector<8x1xf32>
    %66 = math.rsqrt %65 : vector<8x1xf32>
    %67 = vector.broadcast %66 : vector<8x1xf32> to vector<8x32xf32>
    %68 = arith.mulf %58, %67 : vector<8x32xf32>
    %69 = vector.extract_strided_slice %8 {offsets = [8, 0], sizes = [1, 32], strides = [1, 1]} : vector<16x32xf32> to vector<1x32xf32>
    %70 = vector.broadcast %69 : vector<1x32xf32> to vector<8x32xf32>
    %71 = arith.mulf %68, %70 : vector<8x32xf32>
    %72 = vector.extract_strided_slice %8 {offsets = [9, 0], sizes = [1, 32], strides = [1, 1]} : vector<16x32xf32> to vector<1x32xf32>
    %73 = vector.broadcast %72 : vector<1x32xf32> to vector<8x32xf32>
    %74 = arith.addf %71, %73 : vector<8x32xf32>
    %75 = arith.addf %74, %5 : vector<8x32xf32>
    %c2 = arith.constant 2 : index
    %c0_31 = arith.constant 0 : index
    %c0_32 = arith.constant 0 : index
    %76 = vector.load %arg6[%c2, %c0_31, %c0_32] : memref<6x32x32xf32, #tpu.memory_space<vmem>>, vector<1x32x32xf32>
    %77 = vector.shape_cast %76 : vector<1x32x32xf32> to vector<32x32xf32>
    %cst_33 = arith.constant dense<0.000000e+00> : vector<8x32xf32>
    %78 = tpu.matmul %75, %77, %cst_33 {dimension_numbers = #tpu.dot_dimension_numbers<[1], [0], [0], [1], [0, 0, 1, 1], [], []>} : vector<8x32xf32>, vector<32x32xf32>, vector<8x32xf32> -> vector<8x32xf32>
    %79 = vector.extract_strided_slice %8 {offsets = [4, 0], sizes = [1, 32], strides = [1, 1]} : vector<16x32xf32> to vector<1x32xf32>
    %80 = vector.broadcast %79 : vector<1x32xf32> to vector<8x32xf32>
    %81 = arith.addf %78, %80 : vector<8x32xf32>
    %82 = arith.addf %3, %7 : vector<12x32xf32>
    %c3 = arith.constant 3 : index
    %c0_34 = arith.constant 0 : index
    %c0_35 = arith.constant 0 : index
    %83 = vector.load %arg6[%c3, %c0_34, %c0_35] : memref<6x32x32xf32, #tpu.memory_space<vmem>>, vector<1x32x32xf32>
    %84 = vector.shape_cast %83 : vector<1x32x32xf32> to vector<32x32xf32>
    %cst_36 = arith.constant dense<0.000000e+00> : vector<12x32xf32>
    %85 = tpu.matmul %82, %84, %cst_36 {dimension_numbers = #tpu.dot_dimension_numbers<[1], [0], [0], [1], [0, 0, 1, 1], [], []>} : vector<12x32xf32>, vector<32x32xf32>, vector<12x32xf32> -> vector<12x32xf32>
    %86 = vector.extract_strided_slice %8 {offsets = [5, 0], sizes = [1, 32], strides = [1, 1]} : vector<16x32xf32> to vector<1x32xf32>
    %87 = vector.broadcast %86 : vector<1x32xf32> to vector<12x32xf32>
    %88 = arith.addf %85, %87 : vector<12x32xf32>
    %c4 = arith.constant 4 : index
    %c0_37 = arith.constant 0 : index
    %c0_38 = arith.constant 0 : index
    %89 = vector.load %arg6[%c4, %c0_37, %c0_38] : memref<6x32x32xf32, #tpu.memory_space<vmem>>, vector<1x32x32xf32>
    %90 = vector.shape_cast %89 : vector<1x32x32xf32> to vector<32x32xf32>
    %cst_39 = arith.constant dense<0.000000e+00> : vector<12x32xf32>
    %91 = tpu.matmul %3, %90, %cst_39 {dimension_numbers = #tpu.dot_dimension_numbers<[1], [0], [0], [1], [0, 0, 1, 1], [], []>} : vector<12x32xf32>, vector<32x32xf32>, vector<12x32xf32> -> vector<12x32xf32>
    %92 = vector.extract_strided_slice %8 {offsets = [6, 0], sizes = [1, 32], strides = [1, 1]} : vector<16x32xf32> to vector<1x32xf32>
    %93 = vector.broadcast %92 : vector<1x32xf32> to vector<12x32xf32>
    %94 = arith.addf %91, %93 : vector<12x32xf32>
    %95 = vector.shape_cast %81 : vector<8x32xf32> to vector<8x4x8xf32>
    %96 = tpu.transpose %95, [1, 0, 2] : vector<8x4x8xf32> -> vector<4x8x8xf32>
    %97 = vector.shape_cast %88 : vector<12x32xf32> to vector<12x4x8xf32>
    %98 = tpu.transpose %97, [1, 0, 2] : vector<12x4x8xf32> -> vector<4x12x8xf32>
    %99 = vector.shape_cast %94 : vector<12x32xf32> to vector<12x4x8xf32>
    %100 = tpu.transpose %99, [1, 0, 2] : vector<12x4x8xf32> -> vector<4x12x8xf32>
    %cst_40 = arith.constant dense<0.000000e+00> : vector<4x8x12xf32>
    %101 = tpu.matmul %96, %98, %cst_40 {dimension_numbers = #tpu.dot_dimension_numbers<[2], [2], [1], [1], [0, 0, 0, 1, 1, 1], [0], [0]>} : vector<4x8x8xf32>, vector<4x12x8xf32>, vector<4x8x12xf32> -> vector<4x8x12xf32>
    %cst_41 = arith.constant dense<0xFF800000> : vector<4x8xf32>
    %102 = vector.multi_reduction <maximumf>, %101, %cst_41 [2] : vector<4x8x12xf32> to vector<4x8xf32>
    %103 = vector.shape_cast %102 : vector<4x8xf32> to vector<4x8x1xf32>
    %104 = vector.broadcast %103 : vector<4x8x1xf32> to vector<4x8x12xf32>
    %105 = arith.subf %101, %104 : vector<4x8x12xf32>
    %106 = math.exp %105 : vector<4x8x12xf32>
    %cst_42 = arith.constant dense<0.000000e+00> : vector<4x8xf32>
    %107 = vector.multi_reduction <add>, %106, %cst_42 [2] : vector<4x8x12xf32> to vector<4x8xf32>
    %108 = vector.shape_cast %107 : vector<4x8xf32> to vector<4x8x1xf32>
    %109 = tpu.reciprocal %108 {approx = true} : vector<4x8x1xf32> -> vector<4x8x1xf32>
    %110 = vector.broadcast %109 : vector<4x8x1xf32> to vector<4x8x12xf32>
    %111 = arith.mulf %106, %110 : vector<4x8x12xf32>
    %cst_43 = arith.constant dense<0.000000e+00> : vector<4x8x8xf32>
    %112 = tpu.matmul %111, %100, %cst_43 {dimension_numbers = #tpu.dot_dimension_numbers<[2], [1], [1], [2], [0, 0, 0, 1, 1, 2], [0], [0]>} : vector<4x8x12xf32>, vector<4x12x8xf32>, vector<4x8x8xf32> -> vector<4x8x8xf32>
    %113 = tpu.transpose %112, [1, 0, 2] : vector<4x8x8xf32> -> vector<8x4x8xf32>
    %114 = vector.shape_cast %113 : vector<8x4x8xf32> to vector<8x32xf32>
    %c5 = arith.constant 5 : index
    %c0_44 = arith.constant 0 : index
    %c0_45 = arith.constant 0 : index
    %115 = vector.load %arg6[%c5, %c0_44, %c0_45] : memref<6x32x32xf32, #tpu.memory_space<vmem>>, vector<1x32x32xf32>
    %116 = vector.shape_cast %115 : vector<1x32x32xf32> to vector<32x32xf32>
    %cst_46 = arith.constant dense<0.000000e+00> : vector<8x32xf32>
    %117 = tpu.matmul %114, %116, %cst_46 {dimension_numbers = #tpu.dot_dimension_numbers<[1], [0], [0], [1], [0, 0, 1, 1], [], []>} : vector<8x32xf32>, vector<32x32xf32>, vector<8x32xf32> -> vector<8x32xf32>
    %118 = vector.extract_strided_slice %8 {offsets = [7, 0], sizes = [1, 32], strides = [1, 1]} : vector<16x32xf32> to vector<1x32xf32>
    %119 = vector.broadcast %118 : vector<1x32xf32> to vector<8x32xf32>
    %120 = arith.addf %117, %119 : vector<8x32xf32>
    %121 = arith.addf %74, %120 : vector<8x32xf32>
    %cst_47 = arith.constant dense<0.000000e+00> : vector<8xf32>
    %122 = vector.multi_reduction <add>, %121, %cst_47 [1] : vector<8x32xf32> to vector<8xf32>
    %123 = vector.shape_cast %122 : vector<8xf32> to vector<8x1xf32>
    %cst_48 = arith.constant 3.200000e+01 : f32
    %124 = vector.broadcast %cst_48 : f32 to vector<8x1xf32>
    %125 = arith.divf %123, %124 : vector<8x1xf32>
    %126 = vector.broadcast %125 : vector<8x1xf32> to vector<8x32xf32>
    %127 = arith.subf %121, %126 : vector<8x32xf32>
    %128 = arith.mulf %127, %127 : vector<8x32xf32>
    %cst_49 = arith.constant dense<0.000000e+00> : vector<8xf32>
    %129 = vector.multi_reduction <add>, %128, %cst_49 [1] : vector<8x32xf32> to vector<8xf32>
    %130 = vector.shape_cast %129 : vector<8xf32> to vector<8x1xf32>
    %cst_50 = arith.constant 3.200000e+01 : f32
    %131 = vector.broadcast %cst_50 : f32 to vector<8x1xf32>
    %132 = arith.divf %130, %131 : vector<8x1xf32>
    %cst_51 = arith.constant 9.99999974E-6 : f32
    %133 = vector.broadcast %cst_51 : f32 to vector<8x1xf32>
    %134 = arith.addf %132, %133 : vector<8x1xf32>
    %135 = math.rsqrt %134 : vector<8x1xf32>
    %136 = vector.broadcast %135 : vector<8x1xf32> to vector<8x32xf32>
    %137 = arith.mulf %127, %136 : vector<8x32xf32>
    %138 = vector.extract_strided_slice %8 {offsets = [10, 0], sizes = [1, 32], strides = [1, 1]} : vector<16x32xf32> to vector<1x32xf32>
    %139 = vector.broadcast %138 : vector<1x32xf32> to vector<8x32xf32>
    %140 = arith.mulf %137, %139 : vector<8x32xf32>
    %141 = vector.extract_strided_slice %8 {offsets = [11, 0], sizes = [1, 32], strides = [1, 1]} : vector<16x32xf32> to vector<1x32xf32>
    %142 = vector.broadcast %141 : vector<1x32xf32> to vector<8x32xf32>
    %143 = arith.addf %140, %142 : vector<8x32xf32>
    %c0_52 = arith.constant 0 : index
    %c0_53 = arith.constant 0 : index
    %144 = vector.load %arg7[%c0_52, %c0_53] : memref<32x64xf32, #tpu.memory_space<vmem>>, vector<32x64xf32>
    %cst_54 = arith.constant dense<0.000000e+00> : vector<8x64xf32>
    %145 = tpu.matmul %143, %144, %cst_54 {dimension_numbers = #tpu.dot_dimension_numbers<[1], [0], [0], [1], [0, 0, 1, 1], [], []>} : vector<8x32xf32>, vector<32x64xf32>, vector<8x64xf32> -> vector<8x64xf32>
    %c0_55 = arith.constant 0 : index
    %c0_56 = arith.constant 0 : index
    %146 = vector.load %arg9[%c0_55, %c0_56] : memref<1x64xf32, #tpu.memory_space<vmem>>, vector<1x64xf32>
    %147 = vector.broadcast %146 : vector<1x64xf32> to vector<8x64xf32>
    %148 = arith.addf %145, %147 : vector<8x64xf32>
    %cst_57 = arith.constant 0.000000e+00 : f32
    %149 = vector.broadcast %cst_57 : f32 to vector<8x64xf32>
    %150 = arith.maximumf %148, %149 : vector<8x64xf32>
    %c0_58 = arith.constant 0 : index
    %c0_59 = arith.constant 0 : index
    %151 = vector.load %arg8[%c0_58, %c0_59] : memref<64x32xf32, #tpu.memory_space<vmem>>, vector<64x32xf32>
    %cst_60 = arith.constant dense<0.000000e+00> : vector<8x32xf32>
    %152 = tpu.matmul %150, %151, %cst_60 {dimension_numbers = #tpu.dot_dimension_numbers<[1], [0], [0], [1], [0, 0, 1, 1], [], []>} : vector<8x64xf32>, vector<64x32xf32>, vector<8x32xf32> -> vector<8x32xf32>
    %153 = vector.extract_strided_slice %8 {offsets = [14, 0], sizes = [1, 32], strides = [1, 1]} : vector<16x32xf32> to vector<1x32xf32>
    %154 = vector.broadcast %153 : vector<1x32xf32> to vector<8x32xf32>
    %155 = arith.addf %152, %154 : vector<8x32xf32>
    %156 = arith.addf %143, %155 : vector<8x32xf32>
    %cst_61 = arith.constant dense<0.000000e+00> : vector<8xf32>
    %157 = vector.multi_reduction <add>, %156, %cst_61 [1] : vector<8x32xf32> to vector<8xf32>
    %158 = vector.shape_cast %157 : vector<8xf32> to vector<8x1xf32>
    %cst_62 = arith.constant 3.200000e+01 : f32
    %159 = vector.broadcast %cst_62 : f32 to vector<8x1xf32>
    %160 = arith.divf %158, %159 : vector<8x1xf32>
    %161 = vector.broadcast %160 : vector<8x1xf32> to vector<8x32xf32>
    %162 = arith.subf %156, %161 : vector<8x32xf32>
    %163 = arith.mulf %162, %162 : vector<8x32xf32>
    %cst_63 = arith.constant dense<0.000000e+00> : vector<8xf32>
    %164 = vector.multi_reduction <add>, %163, %cst_63 [1] : vector<8x32xf32> to vector<8xf32>
    %165 = vector.shape_cast %164 : vector<8xf32> to vector<8x1xf32>
    %cst_64 = arith.constant 3.200000e+01 : f32
    %166 = vector.broadcast %cst_64 : f32 to vector<8x1xf32>
    %167 = arith.divf %165, %166 : vector<8x1xf32>
    %cst_65 = arith.constant 9.99999974E-6 : f32
    %168 = vector.broadcast %cst_65 : f32 to vector<8x1xf32>
    %169 = arith.addf %167, %168 : vector<8x1xf32>
    %170 = math.rsqrt %169 : vector<8x1xf32>
    %171 = vector.broadcast %170 : vector<8x1xf32> to vector<8x32xf32>
    %172 = arith.mulf %162, %171 : vector<8x32xf32>
    %173 = vector.extract_strided_slice %8 {offsets = [12, 0], sizes = [1, 32], strides = [1, 1]} : vector<16x32xf32> to vector<1x32xf32>
    %174 = vector.broadcast %173 : vector<1x32xf32> to vector<8x32xf32>
    %175 = arith.mulf %172, %174 : vector<8x32xf32>
    %176 = vector.extract_strided_slice %8 {offsets = [13, 0], sizes = [1, 32], strides = [1, 1]} : vector<16x32xf32> to vector<1x32xf32>
    %177 = vector.broadcast %176 : vector<1x32xf32> to vector<8x32xf32>
    %178 = arith.addf %175, %177 : vector<8x32xf32>
    %c0_66 = arith.constant 0 : index
    %c0_67 = arith.constant 0 : index
    %c0_68 = arith.constant 0 : index
    %179 = vector.load %arg11[%c0_66, %c0_67, %c0_68] : memref<1x8x32xf32, #tpu.memory_space<vmem>>, vector<1x8x32xf32>
    %180 = vector.shape_cast %179 : vector<1x8x32xf32> to vector<8x32xf32>
    %181 = vector.shape_cast %178 : vector<8x32xf32> to vector<1x8x32xf32>
    tpu.vector_store %arg11[%c0_66, %c0_67, %c0_68], %181 {strides = array<i32>} : memref<1x8x32xf32, #tpu.memory_space<vmem>>, vector<1x8x32xf32>,
    return
  }
  func.func @transform_0(%arg0: i32) -> (i32, i32, i32) {
    %c0_i32 = arith.constant 0 : i32
    %c0_i32_0 = arith.constant 0 : i32
    %c0_i32_1 = arith.constant 0 : i32
    return %arg0, %c0_i32, %c0_i32_0 : i32, i32, i32
  }
  func.func @transform_1(%arg0: i32) -> (i32, i32, i32) {
    %c0_i32 = arith.constant 0 : i32
    %c0_i32_0 = arith.constant 0 : i32
    %c0_i32_1 = arith.constant 0 : i32
    return %arg0, %c0_i32, %c0_i32_0 : i32, i32, i32
  }
  func.func @transform_2(%arg0: i32) -> (i32, i32, i32) {
    %c0_i32 = arith.constant 0 : i32
    %c0_i32_0 = arith.constant 0 : i32
    %c0_i32_1 = arith.constant 0 : i32
    return %arg0, %c0_i32, %c0_i32_0 : i32, i32, i32
  }
  func.func @transform_3(%arg0: i32) -> (i32, i32, i32) {
    %c0_i32 = arith.constant 0 : i32
    %c0_i32_0 = arith.constant 0 : i32
    %c0_i32_1 = arith.constant 0 : i32
    return %arg0, %c0_i32, %c0_i32_0 : i32, i32, i32
  }
  func.func @transform_4(%arg0: i32) -> (i32, i32) {
    %c0_i32 = arith.constant 0 : i32
    %c0_i32_0 = arith.constant 0 : i32
    %c0_i32_1 = arith.constant 0 : i32
    return %c0_i32, %c0_i32_0 : i32, i32
  }
  func.func @transform_5(%arg0: i32) -> (i32, i32, i32) {
    %c0_i32 = arith.constant 0 : i32
    %c0_i32_0 = arith.constant 0 : i32
    %c0_i32_1 = arith.constant 0 : i32
    %c0_i32_2 = arith.constant 0 : i32
    return %c0_i32, %c0_i32_0, %c0_i32_1 : i32, i32, i32
  }
  func.func @transform_6(%arg0: i32) -> (i32, i32) {
    %c0_i32 = arith.constant 0 : i32
    %c0_i32_0 = arith.constant 0 : i32
    %c0_i32_1 = arith.constant 0 : i32
    return %c0_i32, %c0_i32_0 : i32, i32
  }
  func.func @transform_7(%arg0: i32) -> (i32, i32) {
    %c0_i32 = arith.constant 0 : i32
    %c0_i32_0 = arith.constant 0 : i32
    %c0_i32_1 = arith.constant 0 : i32
    return %c0_i32, %c0_i32_0 : i32, i32
  }
  func.func @transform_8(%arg0: i32) -> (i32, i32) {
    %c0_i32 = arith.constant 0 : i32
    %c0_i32_0 = arith.constant 0 : i32
    %c0_i32_1 = arith.constant 0 : i32
    return %c0_i32, %c0_i32_0 : i32, i32
  }
  func.func @transform_9(%arg0: i32) -> (i32, i32) {
    %c0_i32 = arith.constant 0 : i32
    %c0_i32_0 = arith.constant 0 : i32
    %c0_i32_1 = arith.constant 0 : i32
    return %c0_i32, %c0_i32_0 : i32, i32
  }
  func.func @transform_10(%arg0: i32) -> (i32, i32, i32) {
    %c0_i32 = arith.constant 0 : i32
    %c0_i32_0 = arith.constant 0 : i32
    %c0_i32_1 = arith.constant 0 : i32
    return %arg0, %c0_i32, %c0_i32_0 : i32, i32, i32
  }
}

</mosaic_0001>

<llo_original>
// kernel: transformer_decoder_layer.1
$region0: #{transformer_decoder_layer.1}
  #allocation0 [shape = 'u32[]', space=smem, size = 0x4, offset = 0x4, fixed_abs, tag = 'smem constant byte address 0x4 - core index']
  #allocation1 [shape = 'u32[144,128]{1,0:T(1,128)}', space=vmem, size = 0x12000, scoped, tag = 'internal scratch']
  %s0 = inlined_call_operand.vmem [shape: f32[2,8,32], index: 0, kind: input, shape index: {}]
  %s1 = inlined_call_operand.vmem [shape: f32[2,12,32], index: 1, kind: input, shape index: {}]
  %s2 = inlined_call_operand.vmem [shape: f32[2,8,32], index: 2, kind: input, shape index: {}]
  %s3 = inlined_call_operand.vmem [shape: f32[2,12,32], index: 3, kind: input, shape index: {}]
  %s4 = inlined_call_operand.vmem [shape: f32[32,64], index: 4, kind: input, shape index: {}]
  %s5 = inlined_call_operand.vmem [shape: f32[6,32,32], index: 5, kind: input, shape index: {}]
  %s6 = inlined_call_operand.vmem [shape: f32[32,64], index: 6, kind: input, shape index: {}]
  %s7 = inlined_call_operand.vmem [shape: f32[64,32], index: 7, kind: input, shape index: {}]
  %s8 = inlined_call_operand.vmem [shape: f32[1,64], index: 8, kind: input, shape index: {}]
  %s9 = inlined_call_operand.hbm [shape: f32[16,32], index: 9, kind: input, shape index: {}]
  %s10 = inlined_call_operand.vmem [shape: f32[2,8,32], index: 10, kind: output, shape index: {}]
  %s11 = sld [smem:[#allocation0]]
  $region77: #{transformer_decoder_layer.1} parent=0
    _
  %s13 = ssub.s32 1, %s11
  %s14 = scalar_select 0, %s13, %s11
  $region1: #{transformer_decoder_layer.1} parent=0
    #allocation2 [shape = 'u8[8192]{0}', space=vmem, size = 0x2000, scoped, tag = 'input window, operand 9, single buffered']
    #allocation3 [shape = 's32[2]{0}', space=sflag, size = 0x8, scoped, tag = 'scoped memory for transformer_decoder_layer.1']
    %15 = vsyncpa [#allocation3], 0
    loop: start=0, step=1, limit=4
    $region2: #{transformer_decoder_layer.1} parent=1 // loop_pre_header
      _
    $region3: #{transformer_decoder_layer.1} parent=1 // loop_header
      %s17 = sphi 0, %s21
      %p18 = scmp.ge.s32.totalorder %s17, 4
      %s27 = sphi 0, %s29
      %s30 = sphi 0, %s27
      %s31 = sphi 0, %s30
      %s47 = sphi 0, %s31
      %s53 = sphi 0, %s55
      %s56 = sphi 0, %s53
      %s57 = sphi 0, %s56
      %s73 = sphi 0, %s57
      %s79 = sphi 0, %s81
      %s82 = sphi 0, %s79
      %s83 = sphi 0, %s82
      %s99 = sphi 0, %s83
      %s105 = sphi 0, %s107
      %s108 = sphi 0, %s105
      %s109 = sphi 0, %s108
      %s125 = sphi 0, %s109
      %s129 = sphi 0, %s129
      %s131 = sphi 0, %s129
      %s132 = sphi 0, %s131
      %s146 = sphi 0, %s132
      %s150 = sphi 0, %s150
      %s152 = sphi 0, %s150
      %s153 = sphi 0, %s152
      %s167 = sphi 0, %s153
      %s171 = sphi 0, %s171
      %s173 = sphi 0, %s171
      %s174 = sphi 0, %s173
      %s188 = sphi 0, %s174
      %s192 = sphi 0, %s192
      %s194 = sphi 0, %s192
      %s195 = sphi 0, %s194
      %s209 = sphi 0, %s195
      %s213 = sphi 0, %s213
      %s215 = sphi 0, %s213
      %s216 = sphi 0, %s215
      %s230 = sphi 0, %s216
      %s234 = sphi 0, %s234
      %s236 = sphi 0, %s234
      %s237 = sphi 0, %s236
      %s251 = sphi 0, %s237
      %s257 = sphi 0, %s259
      %s260 = sphi 0, %s257
      %s261 = sphi 0, %s260
      %s277 = sphi 0, %s261
    $region4: #{transformer_decoder_layer.1} parent=1 // loop_header_branch
      %20 = sbr.rel (%p18) target = $region8
    $region5: #{transformer_decoder_layer.1} parent=1 // loop_body
      %s22 = ssub.s32 %s17, 1
      %s23 = ssub.s32 %s17, 2
      %s24 = sadd.s32 %s17, 1
      %s25 = ssub.s32 %s17, %s24
      %p26 = scmp.eq.s32.totalorder %s25, 0
      %s28 = sadd.s32 %s27, 1
      %s29 = scalar_select %p26, %s27, %s28
      %p32 = pneg %p26
      %p33 = scmp.eq.s32.totalorder %s17, 1
      %p34 = por %p32, %p33
      %p35 = scmp.ne.s32.totalorder %s27, %s30
      %p36 = scmp.eq.s32.totalorder %s17, 0
      %p37 = por %p35, %p36
      %p38 = scmp.ne.s32.totalorder %s27, %s30
      %p39 = scmp.eq.s32.totalorder %s22, 1
      %p40 = por %p38, %p39
      %p41 = scmp.ne.s32.totalorder %s30, %s31
      %p42 = scmp.eq.s32.totalorder %s22, 0
      %p43 = por %p41, %p42
      %p44 = scmp.ne.s32.totalorder %s30, %s31
      %p45 = scmp.eq.s32.totalorder %s23, 1
      %p46 = por %p44, %p45
      %p48 = scmp.ne.s32.totalorder %s31, %s47
      %p49 = scmp.eq.s32.totalorder %s23, 0
      %p50 = por %p48, %p49
      %s51 = ssub.s32 %s17, %s24
      %p52 = scmp.eq.s32.totalorder %s51, 0
      %s54 = sadd.s32 %s53, 1
      %s55 = scalar_select %p52, %s53, %s54
      %p58 = pneg %p52
      %p59 = scmp.eq.s32.totalorder %s17, 1
      %p60 = por %p58, %p59
      %p61 = scmp.ne.s32.totalorder %s53, %s56
      %p62 = scmp.eq.s32.totalorder %s17, 0
      %p63 = por %p61, %p62
      %p64 = scmp.ne.s32.totalorder %s53, %s56
      %p65 = scmp.eq.s32.totalorder %s22, 1
      %p66 = por %p64, %p65
      %p67 = scmp.ne.s32.totalorder %s56, %s57
      %p68 = scmp.eq.s32.totalorder %s22, 0
      %p69 = por %p67, %p68
      %p70 = scmp.ne.s32.totalorder %s56, %s57
      %p71 = scmp.eq.s32.totalorder %s23, 1
      %p72 = por %p70, %p71
      %p74 = scmp.ne.s32.totalorder %s57, %s73
      %p75 = scmp.eq.s32.totalorder %s23, 0
      %p76 = por %p74, %p75
      %s77 = ssub.s32 %s17, %s24
      %p78 = scmp.eq.s32.totalorder %s77, 0
      %s80 = sadd.s32 %s79, 1
      %s81 = scalar_select %p78, %s79, %s80
      %p84 = pneg %p78
      %p85 = scmp.eq.s32.totalorder %s17, 1
      %p86 = por %p84, %p85
      %p87 = scmp.ne.s32.totalorder %s79, %s82
      %p88 = scmp.eq.s32.totalorder %s17, 0
      %p89 = por %p87, %p88
      %p90 = scmp.ne.s32.totalorder %s79, %s82
      %p91 = scmp.eq.s32.totalorder %s22, 1
      %p92 = por %p90, %p91
      %p93 = scmp.ne.s32.totalorder %s82, %s83
      %p94 = scmp.eq.s32.totalorder %s22, 0
      %p95 = por %p93, %p94
      %p96 = scmp.ne.s32.totalorder %s82, %s83
      %p97 = scmp.eq.s32.totalorder %s23, 1
      %p98 = por %p96, %p97
      %p100 = scmp.ne.s32.totalorder %s83, %s99
      %p101 = scmp.eq.s32.totalorder %s23, 0
      %p102 = por %p100, %p101
      %s103 = ssub.s32 %s17, %s24
      %p104 = scmp.eq.s32.totalorder %s103, 0
      %s106 = sadd.s32 %s105, 1
      %s107 = scalar_select %p104, %s105, %s106
      %p110 = pneg %p104
      %p111 = scmp.eq.s32.totalorder %s17, 1
      %p112 = por %p110, %p111
      %p113 = scmp.ne.s32.totalorder %s105, %s108
      %p114 = scmp.eq.s32.totalorder %s17, 0
      %p115 = por %p113, %p114
      %p116 = scmp.ne.s32.totalorder %s105, %s108
      %p117 = scmp.eq.s32.totalorder %s22, 1
      %p118 = por %p116, %p117
      %p119 = scmp.ne.s32.totalorder %s108, %s109
      %p120 = scmp.eq.s32.totalorder %s22, 0
      %p121 = por %p119, %p120
      %p122 = scmp.ne.s32.totalorder %s108, %s109
      %p123 = scmp.eq.s32.totalorder %s23, 1
      %p124 = por %p122, %p123
      %p126 = scmp.ne.s32.totalorder %s109, %s125
      %p127 = scmp.eq.s32.totalorder %s23, 0
      %p128 = por %p126, %p127
      %s130 = sadd.s32 %s129, 1
      %p133 = scmp.eq.s32.totalorder %s17, 1
      %p134 = scmp.ne.s32.totalorder %s129, %s131
      %p135 = scmp.eq.s32.totalorder %s17, 0
      %p136 = por %p134, %p135
      %p137 = scmp.ne.s32.totalorder %s129, %s131
      %p138 = scmp.eq.s32.totalorder %s22, 1
      %p139 = por %p137, %p138
      %p140 = scmp.ne.s32.totalorder %s131, %s132
      %p141 = scmp.eq.s32.totalorder %s22, 0
      %p142 = por %p140, %p141
      %p143 = scmp.ne.s32.totalorder %s131, %s132
      %p144 = scmp.eq.s32.totalorder %s23, 1
      %p145 = por %p143, %p144
      %p147 = scmp.ne.s32.totalorder %s132, %s146
      %p148 = scmp.eq.s32.totalorder %s23, 0
      %p149 = por %p147, %p148
      %s151 = sadd.s32 %s150, 1
      %p154 = scmp.eq.s32.totalorder %s17, 1
      %p155 = scmp.ne.s32.totalorder %s150, %s152
      %p156 = scmp.eq.s32.totalorder %s17, 0
      %p157 = por %p155, %p156
      %p158 = scmp.ne.s32.totalorder %s150, %s152
      %p159 = scmp.eq.s32.totalorder %s22, 1
      %p160 = por %p158, %p159
      %p161 = scmp.ne.s32.totalorder %s152, %s153
      %p162 = scmp.eq.s32.totalorder %s22, 0
      %p163 = por %p161, %p162
      %p164 = scmp.ne.s32.totalorder %s152, %s153
      %p165 = scmp.eq.s32.totalorder %s23, 1
      %p166 = por %p164, %p165
      %p168 = scmp.ne.s32.totalorder %s153, %s167
      %p169 = scmp.eq.s32.totalorder %s23, 0
      %p170 = por %p168, %p169
      %s172 = sadd.s32 %s171, 1
      %p175 = scmp.eq.s32.totalorder %s17, 1
      %p176 = scmp.ne.s32.totalorder %s171, %s173
      %p177 = scmp.eq.s32.totalorder %s17, 0
      %p178 = por %p176, %p177
      %p179 = scmp.ne.s32.totalorder %s171, %s173
      %p180 = scmp.eq.s32.totalorder %s22, 1
      %p181 = por %p179, %p180
      %p182 = scmp.ne.s32.totalorder %s173, %s174
      %p183 = scmp.eq.s32.totalorder %s22, 0
      %p184 = por %p182, %p183
      %p185 = scmp.ne.s32.totalorder %s173, %s174
      %p186 = scmp.eq.s32.totalorder %s23, 1
      %p187 = por %p185, %p186
      %p189 = scmp.ne.s32.totalorder %s174, %s188
      %p190 = scmp.eq.s32.totalorder %s23, 0
      %p191 = por %p189, %p190
      %s193 = sadd.s32 %s192, 1
      %p196 = scmp.eq.s32.totalorder %s17, 1
      %p197 = scmp.ne.s32.totalorder %s192, %s194
      %p198 = scmp.eq.s32.totalorder %s17, 0
      %p199 = por %p197, %p198
      %p200 = scmp.ne.s32.totalorder %s192, %s194
      %p201 = scmp.eq.s32.totalorder %s22, 1
      %p202 = por %p200, %p201
      %p203 = scmp.ne.s32.totalorder %s194, %s195
      %p204 = scmp.eq.s32.totalorder %s22, 0
      %p205 = por %p203, %p204
      %p206 = scmp.ne.s32.totalorder %s194, %s195
      %p207 = scmp.eq.s32.totalorder %s23, 1
      %p208 = por %p206, %p207
      %p210 = scmp.ne.s32.totalorder %s195, %s209
      %p211 = scmp.eq.s32.totalorder %s23, 0
      %p212 = por %p210, %p211
      %s214 = sadd.s32 %s213, 1
      %p217 = scmp.eq.s32.totalorder %s17, 1
      %p218 = scmp.ne.s32.totalorder %s213, %s215
      %p219 = scmp.eq.s32.totalorder %s17, 0
      %p220 = por %p218, %p219
      %p221 = scmp.ne.s32.totalorder %s213, %s215
      %p222 = scmp.eq.s32.totalorder %s22, 1
      %p223 = por %p221, %p222
      %p224 = scmp.ne.s32.totalorder %s215, %s216
      %p225 = scmp.eq.s32.totalorder %s22, 0
      %p226 = por %p224, %p225
      %p227 = scmp.ne.s32.totalorder %s215, %s216
      %p228 = scmp.eq.s32.totalorder %s23, 1
      %p229 = por %p227, %p228
      %p231 = scmp.ne.s32.totalorder %s216, %s230
      %p232 = scmp.eq.s32.totalorder %s23, 0
      %p233 = por %p231, %p232
      %s235 = sadd.s32 %s234, 1
      %p238 = scmp.eq.s32.totalorder %s17, 1
      %p239 = scmp.ne.s32.totalorder %s234, %s236
      %p240 = scmp.eq.s32.totalorder %s17, 0
      %p241 = por %p239, %p240
      %p242 = scmp.ne.s32.totalorder %s234, %s236
      %p243 = scmp.eq.s32.totalorder %s22, 1
      %p244 = por %p242, %p243
      %p245 = scmp.ne.s32.totalorder %s236, %s237
      %p246 = scmp.eq.s32.totalorder %s22, 0
      %p247 = por %p245, %p246
      %p248 = scmp.ne.s32.totalorder %s236, %s237
      %p249 = scmp.eq.s32.totalorder %s23, 1
      %p250 = por %p248, %p249
      %p252 = scmp.ne.s32.totalorder %s237, %s251
      %p253 = scmp.eq.s32.totalorder %s23, 0
      %p254 = por %p252, %p253
      %s255 = ssub.s32 %s17, %s24
      %p256 = scmp.eq.s32.totalorder %s255, 0
      %s258 = sadd.s32 %s257, 1
      %s259 = scalar_select %p256, %s257, %s258
      %p262 = pneg %p256
      %p263 = scmp.eq.s32.totalorder %s17, 1
      %p264 = por %p262, %p263
      %p265 = scmp.ne.s32.totalorder %s257, %s260
      %p266 = scmp.eq.s32.totalorder %s17, 0
      %p267 = por %p265, %p266
      %p268 = scmp.ne.s32.totalorder %s257, %s260
      %p269 = scmp.eq.s32.totalorder %s22, 1
      %p270 = por %p268, %p269
      %p271 = scmp.ne.s32.totalorder %s260, %s261
      %p272 = scmp.eq.s32.totalorder %s22, 0
      %p273 = por %p271, %p272
      %p274 = scmp.ne.s32.totalorder %s260, %s261
      %p275 = scmp.eq.s32.totalorder %s23, 1
      %p276 = por %p274, %p275
      %p278 = scmp.ne.s32.totalorder %s261, %s277
      %p279 = scmp.eq.s32.totalorder %s23, 0
      %p280 = por %p278, %p279
      %p281 = scmp.le.s32.totalorder 1, %s17
      %p282 = scmp.lt.s32.totalorder %s17, 3
      %p283 = pnand %p281, %p282
      %p284 = pneg %p283
      // Predicated region
      $region9: #{transformer_decoder_layer.1} parent=5 // pred_check
        _
      $region10: #{transformer_decoder_layer.1} parent=5 // pred_check_branch
        %286 = sbr.rel (%p283) target = $region12
      $region11: #{transformer_decoder_layer.1} parent=5 // pred_region
        %s287 = ssub.s32 %s17, 1
        // Predicated region
        $region13: #{transformer_decoder_layer.1} parent=11 // pred_check
          %p288 = pneg %p142
        $region14: #{transformer_decoder_layer.1} parent=11 // pred_check_branch
          %290 = sbr.rel (%p288) target = $region16
        $region15: #{transformer_decoder_layer.1} parent=11 // pred_region
          _
        $region16: #{transformer_decoder_layer.1} parent=11 // pred_fallthru
          _
        // Predicated region
        $region17: #{transformer_decoder_layer.1} parent=11 // pred_check
          %p291 = pneg %p163
        $region18: #{transformer_decoder_layer.1} parent=11 // pred_check_branch
          %293 = sbr.rel (%p291) target = $region20
        $region19: #{transformer_decoder_layer.1} parent=11 // pred_region
          _
        $region20: #{transformer_decoder_layer.1} parent=11 // pred_fallthru
          _
        // Predicated region
        $region21: #{transformer_decoder_layer.1} parent=11 // pred_check
          %p294 = pneg %p184
        $region22: #{transformer_decoder_layer.1} parent=11 // pred_check_branch
          %296 = sbr.rel (%p294) target = $region24
        $region23: #{transformer_decoder_layer.1} parent=11 // pred_region
          _
        $region24: #{transformer_decoder_layer.1} parent=11 // pred_fallthru
          _
        // Predicated region
        $region25: #{transformer_decoder_layer.1} parent=11 // pred_check
          %p297 = pneg %p205
        $region26: #{transformer_decoder_layer.1} parent=11 // pred_check_branch
          %299 = sbr.rel (%p297) target = $region28
        $region27: #{transformer_decoder_layer.1} parent=11 // pred_region
          _
        $region28: #{transformer_decoder_layer.1} parent=11 // pred_fallthru
          _
        // Predicated region
        $region29: #{transformer_decoder_layer.1} parent=11 // pred_check
          %p300 = pneg %p226
        $region30: #{transformer_decoder_layer.1} parent=11 // pred_check_branch
          %302 = sbr.rel (%p300) target = $region32
        $region31: #{transformer_decoder_layer.1} parent=11 // pred_region
          _
        $region32: #{transformer_decoder_layer.1} parent=11 // pred_fallthru
          _
        // Predicated region
        $region33: #{transformer_decoder_layer.1} parent=11 // pred_check
          %p303 = pneg %p247
        $region34: #{transformer_decoder_layer.1} parent=11 // pred_check_branch
          %305 = sbr.rel (%p303) target = $region36
        $region35: #{transformer_decoder_layer.1} parent=11 // pred_region
          %s307 = ssub.s32 256, 256
          %308 = vsyncadd [#allocation3], %s307
          %s309 = sshll.u32 [#allocation2], 4
          %s310 = int_to_ptr.vmem [resolvable:$true] %s309
          %315 = dma.hbm_to_vmem [thread:$0]  %s9, 256, %s310, [#allocation3], 128, 128, 8
        $region36: #{transformer_decoder_layer.1} parent=11 // pred_fallthru
          _
      $region12: #{transformer_decoder_layer.1} parent=5 // pred_fallthru
        _
      %p316 = scmp.lt.s32.totalorder %s17, 2
      // Predicated region
      $region37: #{transformer_decoder_layer.1} parent=5 // pred_check
        %p317 = pneg %p316
      $region38: #{transformer_decoder_layer.1} parent=5 // pred_check_branch
        %319 = sbr.rel (%p317) target = $region40
      $region39: #{transformer_decoder_layer.1} parent=5 // pred_region
        // Predicated region
        $region41: #{transformer_decoder_layer.1} parent=39 // pred_check
          %p320 = pneg %p37
        $region42: #{transformer_decoder_layer.1} parent=39 // pred_check_branch
          %322 = sbr.rel (%p320) target = $region44
        $region43: #{transformer_decoder_layer.1} parent=39 // pred_region
          %p323 = scmp.lt.s32.totalorder %s17, 1
          %s324 = scalar_select %p323, %s17, 1
          %s325 = smul.addr %s324, 8
          %s326 = scalar_lea.vmem %s0, %s325
        $region44: #{transformer_decoder_layer.1} parent=39 // pred_fallthru
          _
        // Predicated region
        $region45: #{transformer_decoder_layer.1} parent=39 // pred_check
          %p327 = pneg %p63
        $region46: #{transformer_decoder_layer.1} parent=39 // pred_check_branch
          %329 = sbr.rel (%p327) target = $region48
        $region47: #{transformer_decoder_layer.1} parent=39 // pred_region
          %p330 = scmp.lt.s32.totalorder %s17, 1
          %s331 = scalar_select %p330, %s17, 1
          %s332 = smul.addr %s331, 2
          %s333 = smul.addr %s332, 8
          %s334 = scalar_lea.vmem %s1, %s333
        $region48: #{transformer_decoder_layer.1} parent=39 // pred_fallthru
          _
        // Predicated region
        $region49: #{transformer_decoder_layer.1} parent=39 // pred_check
          %p335 = pneg %p89
        $region50: #{transformer_decoder_layer.1} parent=39 // pred_check_branch
          %337 = sbr.rel (%p335) target = $region52
        $region51: #{transformer_decoder_layer.1} parent=39 // pred_region
          %p338 = scmp.lt.s32.totalorder %s17, 1
          %s339 = scalar_select %p338, %s17, 1
          %s340 = smul.addr %s339, 8
          %s341 = scalar_lea.vmem %s2, %s340
        $region52: #{transformer_decoder_layer.1} parent=39 // pred_fallthru
          _
        // Predicated region
        $region53: #{transformer_decoder_layer.1} parent=39 // pred_check
          %p342 = pneg %p115
        $region54: #{transformer_decoder_layer.1} parent=39 // pred_check_branch
          %344 = sbr.rel (%p342) target = $region56
        $region55: #{transformer_decoder_layer.1} parent=39 // pred_region
          %p345 = scmp.lt.s32.totalorder %s17, 1
          %s346 = scalar_select %p345, %s17, 1
          %s347 = smul.addr %s346, 2
          %s348 = smul.addr %s347, 8
          %s349 = scalar_lea.vmem %s3, %s348
        $region56: #{transformer_decoder_layer.1} parent=39 // pred_fallthru
          _
      $region40: #{transformer_decoder_layer.1} parent=5 // pred_fallthru
        _
      %p350 = scmp.le.s32.totalorder 1, %s17
      %p351 = scmp.lt.s32.totalorder %s17, 3
      %p352 = pnand %p350, %p351
      %p353 = pneg %p352
      // Predicated region
      $region57: #{transformer_decoder_layer.1} parent=5 // pred_check
        _
      $region58: #{transformer_decoder_layer.1} parent=5 // pred_check_branch
        %355 = sbr.rel (%p352) target = $region60
      $region59: #{transformer_decoder_layer.1} parent=5 // pred_region
        %s356 = ssub.s32 %s17, 1
        // Predicated region
        $region61: #{transformer_decoder_layer.1} parent=59 // pred_check
          %p357 = pneg %p247
        $region62: #{transformer_decoder_layer.1} parent=59 // pred_check_branch
          %359 = sbr.rel (%p357) target = $region64
        $region63: #{transformer_decoder_layer.1} parent=59 // pred_region
          %360 = dma.done [#allocation3], 256
        $region64: #{transformer_decoder_layer.1} parent=59 // pred_fallthru
          _
        %p361 = scmp.lt.s32.totalorder %s22, 1
        %s362 = scalar_select %p361, %s22, 1
        %s363 = smul.addr %s362, 8
        %s364 = scalar_lea.vmem %s0, %s363
        %p365 = pneg %p43
        %p366 = pneg %p40
        %p367 = scmp.lt.s32.totalorder %s22, 1
        %s368 = scalar_select %p367, %s22, 1
        %s369 = smul.addr %s368, 2
        %s370 = smul.addr %s369, 8
        %s371 = scalar_lea.vmem %s1, %s370
        %p372 = pneg %p69
        %p373 = pneg %p66
        %p374 = scmp.lt.s32.totalorder %s22, 1
        %s375 = scalar_select %p374, %s22, 1
        %s376 = smul.addr %s375, 8
        %s377 = scalar_lea.vmem %s2, %s376
        %p378 = pneg %p95
        %p379 = pneg %p92
        %p380 = scmp.lt.s32.totalorder %s22, 1
        %s381 = scalar_select %p380, %s22, 1
        %s382 = smul.addr %s381, 2
        %s383 = smul.addr %s382, 8
        %s384 = scalar_lea.vmem %s3, %s383
        %p385 = pneg %p121
        %p386 = pneg %p118
        %p387 = pneg %p142
        %p388 = pneg %p139
        %p389 = pneg %p163
        %p390 = pneg %p160
        %p391 = pneg %p184
        %p392 = pneg %p181
        %p393 = pneg %p205
        %p394 = pneg %p202
        %p395 = pneg %p226
        %p396 = pneg %p223
        %p397 = pneg %p247
        %p398 = pneg %p244
        %p399 = pneg %p273
        %p400 = pneg %p270
        %p401 = scmp.lt.s32.totalorder %s22, 1
        %s402 = scalar_select %p401, %s22, 1
        %s403 = smul.addr %s402, 8
        %s404 = scalar_lea.vmem %s10, %s403
        %p405 = scmp.lt.s32.totalorder %s22, 1
        %s406 = scalar_select %p405, %s22, 1
        %s407 = smul.addr %s406, 8
        %s408 = scalar_lea.vmem %s0, %s407
        %p409 = scmp.lt.s32.totalorder %s22, 1
        %s410 = scalar_select %p409, %s22, 1
        %s411 = smul.addr %s410, 2
        %s412 = smul.addr %s411, 8
        %s413 = scalar_lea.vmem %s1, %s412
        %p414 = scmp.lt.s32.totalorder %s22, 1
        %s415 = scalar_select %p414, %s22, 1
        %s416 = smul.addr %s415, 8
        %s417 = scalar_lea.vmem %s2, %s416
        %p418 = scmp.lt.s32.totalorder %s22, 1
        %s419 = scalar_select %p418, %s22, 1
        %s420 = smul.addr %s419, 2
        %s421 = smul.addr %s420, 8
        %s422 = scalar_lea.vmem %s3, %s421
        %p423 = scmp.lt.s32.totalorder %s22, 1
        %s424 = scalar_select %p423, %s22, 1
        %s425 = smul.addr %s424, 8
        %s426 = scalar_lea.vmem %s10, %s425
        %v427 = vld [vmem:[%s408] sm:$0xff]
        %v428 = vld [vmem:[%s413] sm:$0xff]
        %v429 = vld [vmem:[%s413 + $0x8] sm:$0xf]
        %v430 = vld [vmem:[%s417] sm:$0xff]
        %v431 = vld [vmem:[%s422] sm:$0xff]
        %v432 = vld [vmem:[%s422 + $0x8] sm:$0xf]
        %v433 = vld [vmem:[#allocation2] sm:$0xff]
        %v434 = vld [vmem:[#allocation2 + $0x8] sm:$0xff]
        %v435 = vadd.f32 %v427, %v430
        %v436 = vld [vmem:[%s4] sm:$0xff]
        %v437 = vld [vmem:[%s4 + $0x8] sm:$0xff]
        %v438 = vld [vmem:[%s4 + $0x10] sm:$0xff]
        %v439 = vld [vmem:[%s4 + $0x18] sm:$0xff]
        %vm440 = vcmask 261120
        %v442 = vsel %vm440, %v435, 0
        %444 = vmatprep.subr.mxu0 0.0
        %445 = vmatpush1.msra.mxu0 %v436
        %446 = vmatprep.subr.mxu0 0.0
        %447 = vmatpush1.msra.mxu0 %v437
        %448 = vmatprep.subr.mxu0 0.0
        %449 = vmatpush1.msra.mxu0 %v438
        %450 = vmatprep.subr.mxu0 0.0
        %451 = vmatpush1.msra.mxu0 %v439
        %452 = vmatprep.subr.mxu0 0.0
        %453 = vmatpush1.msra.mxu0 0.0
        %454 = vmatprep.subr.mxu0 0.0
        %455 = vmatpush1.msra.mxu0 0.0
        %456 = vmatprep.subr.mxu0 0.0
        %457 = vmatpush1.msra.mxu0 0.0
        %458 = vmatprep.subr.mxu0 0.0
        %459 = vmatpush1.msra.mxu0 0.0
        %460 = vmatprep.subr.mxu0 0.0
        %461 = vmatpush1.msra.mxu0 0.0
        %462 = vmatprep.subr.mxu0 0.0
        %463 = vmatpush1.msra.mxu0 0.0
        %464 = vmatprep.subr.mxu0 0.0
        %465 = vmatpush1.msra.mxu0 0.0
        %466 = vmatprep.subr.mxu0 0.0
        %467 = vmatpush1.msra.mxu0 0.0
        %468 = vmatprep.subr.mxu0 0.0
        %469 = vmatpush1.msra.mxu0 0.0
        %470 = vmatprep.subr.mxu0 0.0
        %471 = vmatpush1.msra.mxu0 0.0
        %472 = vmatprep.subr.mxu0 0.0
        %473 = vmatpush1.msra.mxu0 0.0
        %474 = vmatprep.subr.mxu0 0.0
        %475 = vmatpush1.msra.mxu0 0.0
        %476 = vmatprep.subr.mxu0 0.0
        %477 = vmatpush1.msra.mxu0 0.0
        %478 = vmatprep.subr.mxu0 0.0
        %479 = vmatpush1.msra.mxu0 0.0
        %480 = vmatprep.subr.mxu0 0.0
        %481 = vmatpush1.msra.mxu0 0.0
        %482 = vmatprep.subr.mxu0 0.0
        %483 = vmatpush1.msra.mxu0 0.0
        %484 = vmatprep.subr.mxu0 0.0
        %485 = vmatpush1.msra.mxu0 0.0
        %486 = vmatprep.subr.mxu0 0.0
        %487 = vmatpush1.msra.mxu0 0.0
        %488 = vmatprep.subr.mxu0 0.0
        %489 = vmatpush1.msra.mxu0 0.0
        %490 = vmatprep.subr.mxu0 0.0
        %491 = vmatpush1.msra.mxu0 0.0
        %492 = vmatprep.subr.mxu0 0.0
        %493 = vmatpush1.msra.mxu0 0.0
        %494 = vmatprep.subr.mxu0 0.0
        %495 = vmatpush1.msra.mxu0 0.0
        %496 = vmatprep.subr.mxu0 0.0
        %497 = vmatpush1.msra.mxu0 0.0
        %498 = vmatprep.subr.mxu0 0.0
        %499 = vmatpush1.msra.mxu0 0.0
        %500 = vmatprep.subr.mxu0 0.0
        %501 = vmatpush1.msra.mxu0 0.0
        %502 = vmatprep.subr.mxu0 0.0
        %503 = vmatpush1.msra.mxu0 0.0
        %504 = vmatprep.subr.mxu0 0.0
        %505 = vmatpush1.msra.mxu0 0.0
        %506 = vmatprep.subr.mxu0 0.0
        %507 = vmatpush1.msra.mxu0 0.0
        %508 = vmatprep.mubr.f32.mxu0 0.0
        %509 = vmatmul.mubr.f32.gmra.mrb[0].mxu0 %v442
        %v510 = vpop.f32.mrb[0].mxu0
        %v511 = vadd.f32 0.0, %v510
        %v512 = vpop.f32.mrb[0].mxu0
        %513 = vdwg.mxu0
        %v514 = vlaneseq
        %v515 = vshrl.u32 %v514, 7
        %v516 = vsub.s32 0, %v515
        %v517 = vrot.slane %v433, %v516
        %v518 = vadd.f32 %v511, %v517
        %v519 = vlaneseq
        %v520 = vshrl.u32 %v519, 7
        %v521 = vsub.s32 1, %v520
        %v522 = vrot.slane %v433, %v521
        %524 = vrot.lane.b32.xlu0 %v522, 32
        %v525 = vpop.permute.xlu0 %524
        %v527 = vadd.f32 %v511, %v525
        %v528 = vld [vmem:[%s5] sm:$0xff]
        %v529 = vld [vmem:[%s5 + $0x8] sm:$0xff]
        %v530 = vld [vmem:[%s5 + $0x10] sm:$0xff]
        %v531 = vld [vmem:[%s5 + $0x18] sm:$0xff]
        %v532 = vlaneseq
        %v533 = vshrl.u32 %v532, 7
        %v534 = vsub.s32 2, %v533
        %v535 = vrot.slane %v433, %v534
        %v537 = vsel %vm440, %v427, 0
        %539 = vmatprep.subr.mxu0 0.0
        %540 = vmatpush1.msra.mxu0 %v528
        %541 = vmatprep.subr.mxu0 0.0
        %542 = vmatpush1.msra.mxu0 %v529
        %543 = vmatprep.subr.mxu0 0.0
        %544 = vmatpush1.msra.mxu0 %v530
        %545 = vmatprep.subr.mxu0 0.0
        %546 = vmatpush1.msra.mxu0 %v531
        %547 = vmatprep.subr.mxu0 0.0
        %548 = vmatpush1.msra.mxu0 0.0
        %549 = vmatprep.subr.mxu0 0.0
        %550 = vmatpush1.msra.mxu0 0.0
        %551 = vmatprep.subr.mxu0 0.0
        %552 = vmatpush1.msra.mxu0 0.0
        %553 = vmatprep.subr.mxu0 0.0
        %554 = vmatpush1.msra.mxu0 0.0
        %555 = vmatprep.subr.mxu0 0.0
        %556 = vmatpush1.msra.mxu0 0.0
        %557 = vmatprep.subr.mxu0 0.0
        %558 = vmatpush1.msra.mxu0 0.0
        %559 = vmatprep.subr.mxu0 0.0
        %560 = vmatpush1.msra.mxu0 0.0
        %561 = vmatprep.subr.mxu0 0.0
        %562 = vmatpush1.msra.mxu0 0.0
        %563 = vmatprep.subr.mxu0 0.0
        %564 = vmatpush1.msra.mxu0 0.0
        %565 = vmatprep.subr.mxu0 0.0
        %566 = vmatpush1.msra.mxu0 0.0
        %567 = vmatprep.subr.mxu0 0.0
        %568 = vmatpush1.msra.mxu0 0.0
        %569 = vmatprep.subr.mxu0 0.0
        %570 = vmatpush1.msra.mxu0 0.0
        %571 = vmatprep.subr.mxu0 0.0
        %572 = vmatpush1.msra.mxu0 0.0
        %573 = vmatprep.subr.mxu0 0.0
        %574 = vmatpush1.msra.mxu0 0.0
        %575 = vmatprep.subr.mxu0 0.0
        %576 = vmatpush1.msra.mxu0 0.0
        %577 = vmatprep.subr.mxu0 0.0
        %578 = vmatpush1.msra.mxu0 0.0
        %579 = vmatprep.subr.mxu0 0.0
        %580 = vmatpush1.msra.mxu0 0.0
        %581 = vmatprep.subr.mxu0 0.0
        %582 = vmatpush1.msra.mxu0 0.0
        %583 = vmatprep.subr.mxu0 0.0
        %584 = vmatpush1.msra.mxu0 0.0
        %585 = vmatprep.subr.mxu0 0.0
        %586 = vmatpush1.msra.mxu0 0.0
        %587 = vmatprep.subr.mxu0 0.0
        %588 = vmatpush1.msra.mxu0 0.0
        %589 = vmatprep.subr.mxu0 0.0
        %590 = vmatpush1.msra.mxu0 0.0
        %591 = vmatprep.subr.mxu0 0.0
        %592 = vmatpush1.msra.mxu0 0.0
        %593 = vmatprep.subr.mxu0 0.0
        %594 = vmatpush1.msra.mxu0 0.0
        %595 = vmatprep.subr.mxu0 0.0
        %596 = vmatpush1.msra.mxu0 0.0
        %597 = vmatprep.subr.mxu0 0.0
        %598 = vmatpush1.msra.mxu0 0.0
        %599 = vmatprep.subr.mxu0 0.0
        %600 = vmatpush1.msra.mxu0 0.0
        %601 = vmatprep.subr.mxu0 0.0
        %602 = vmatpush1.msra.mxu0 0.0
        %603 = vmatprep.mubr.f32.mxu0 0.0
        %604 = vmatmul.mubr.f32.gmra.mrb[0].mxu0 %v537
        %v605 = vpop.f32.mrb[0].mxu0
        %v606 = vadd.f32 %v535, %v605
        %v607 = vpop.f32.mrb[0].mxu0
        %608 = vdwg.mxu0
        %610 = vrot.lane.b32.xlu0 %v518, 120
        %v611 = vpop.permute.xlu0 %610
        %613 = vrot.lane.b32.xlu0 %v518, 112
        %v614 = vpop.permute.xlu0 %613
        %616 = vrot.lane.b32.xlu0 %v518, 104
        %v617 = vpop.permute.xlu0 %616
        %v619 = vcombine.low %v518, %v614
        %v620 = vcombine.high %v518, %v614
        %v622 = vunpack.c.l.s4 1983009808
        %v623 = vunpack.c.0.s8 %v622
        %v624 = vlaneseq
        %v625 = vshrl.u32 %v624, 7
        %v626 = vsub.s32 %v623, %v625
        %v627 = vrot.slane %v619, %v626
        %v629 = vunpack.c.l.s4 1983009808
        %v630 = vunpack.c.0.s8 %v629
        %v631 = vlaneseq
        %v632 = vshrl.u32 %v631, 7
        %v633 = vsub.s32 %v630, %v632
        %v634 = vrot.slane %v620, %v633
        %v635 = vcombine.low %v611, %v617
        %v636 = vcombine.high %v611, %v617
        %v638 = vunpack.c.l.s4 1983009808
        %v639 = vunpack.c.0.s8 %v638
        %v640 = vlaneseq
        %v641 = vshrl.u32 %v640, 7
        %v642 = vsub.s32 %v639, %v641
        %v643 = vrot.slane %v635, %v642
        %v645 = vunpack.c.l.s4 1983009808
        %v646 = vunpack.c.0.s8 %v645
        %v647 = vlaneseq
        %v648 = vshrl.u32 %v647, 7
        %v649 = vsub.s32 %v646, %v648
        %v650 = vrot.slane %v636, %v649
        %v651 = vcombine.low %v627, %v643
        %v652 = vcombine.high %v627, %v643
        %v654 = vunpack.c.l.s4 1934713408
        %v655 = vunpack.c.0.s8 %v654
        %v656 = vlaneseq
        %v657 = vshrl.u32 %v656, 7
        %v658 = vsub.s32 %v655, %v657
        %v659 = vrot.slane %v651, %v658
        %v661 = vunpack.c.l.s4 1934713408
        %v662 = vunpack.c.0.s8 %v661
        %v663 = vlaneseq
        %v664 = vshrl.u32 %v663, 7
        %v665 = vsub.s32 %v662, %v664
        %v666 = vrot.slane %v652, %v665
        %v667 = vcombine.low %v634, %v650
        %v668 = vcombine.high %v634, %v650
        %v670 = vunpack.c.l.s4 1934713408
        %v671 = vunpack.c.0.s8 %v670
        %v672 = vlaneseq
        %v673 = vshrl.u32 %v672, 7
        %v674 = vsub.s32 %v671, %v673
        %v675 = vrot.slane %v667, %v674
        %v677 = vunpack.c.l.s4 1934713408
        %v678 = vunpack.c.0.s8 %v677
        %v679 = vlaneseq
        %v680 = vshrl.u32 %v679, 7
        %v681 = vsub.s32 %v678, %v680
        %v682 = vrot.slane %v668, %v681
        %v683 = vcombine.high %v659, 0.0
        %v684 = vcombine.high %v666, 0.0
        %v685 = vcombine.high %v675, 0.0
        %v686 = vcombine.high %v682, 0.0
        %v687 = vcombine.low %v659, %v666
        %v689 = vunpack.c.l.s4 1983009808
        %v690 = vunpack.c.0.s8 %v689
        %v691 = vlaneseq
        %v692 = vshrl.u32 %v691, 7
        %v693 = vsub.s32 %v690, %v692
        %v694 = vrot.slane %v687, %v693
        %v695 = vcombine.low %v683, %v684
        %v697 = vunpack.c.l.s4 1983009808
        %v698 = vunpack.c.0.s8 %v697
        %v699 = vlaneseq
        %v700 = vshrl.u32 %v699, 7
        %v701 = vsub.s32 %v698, %v700
        %v702 = vrot.slane %v695, %v701
        %v703 = vcombine.low %v675, %v682
        %v705 = vunpack.c.l.s4 1983009808
        %v706 = vunpack.c.0.s8 %v705
        %v707 = vlaneseq
        %v708 = vshrl.u32 %v707, 7
        %v709 = vsub.s32 %v706, %v708
        %v710 = vrot.slane %v703, %v709
        %v711 = vcombine.low %v685, %v686
        %v713 = vunpack.c.l.s4 1983009808
        %v714 = vunpack.c.0.s8 %v713
        %v715 = vlaneseq
        %v716 = vshrl.u32 %v715, 7
        %v717 = vsub.s32 %v714, %v716
        %v718 = vrot.slane %v711, %v717
        %v719 = vcombine.low %v694, %v702
        %v720 = vcombine.high %v694, %v702
        %v722 = vunpack.c.l.s4 1934713408
        %v723 = vunpack.c.0.s8 %v722
        %v724 = vlaneseq
        %v725 = vshrl.u32 %v724, 7
        %v726 = vsub.s32 %v723, %v725
        %v727 = vrot.slane %v719, %v726
        %v729 = vunpack.c.l.s4 1934713408
        %v730 = vunpack.c.0.s8 %v729
        %v731 = vlaneseq
        %v732 = vshrl.u32 %v731, 7
        %v733 = vsub.s32 %v730, %v732
        %v734 = vrot.slane %v720, %v733
        %v735 = vcombine.low %v710, %v718
        %v736 = vcombine.high %v710, %v718
        %v738 = vunpack.c.l.s4 1934713408
        %v739 = vunpack.c.0.s8 %v738
        %v740 = vlaneseq
        %v741 = vshrl.u32 %v740, 7
        %v742 = vsub.s32 %v739, %v741
        %v743 = vrot.slane %v735, %v742
        %v745 = vunpack.c.l.s4 1934713408
        %v746 = vunpack.c.0.s8 %v745
        %v747 = vlaneseq
        %v748 = vshrl.u32 %v747, 7
        %v749 = vsub.s32 %v746, %v748
        %v750 = vrot.slane %v736, %v749
        %v751 = vcombine.low %v727, %v743
        %v752 = vcombine.high %v727, %v743
        %v753 = vcombine.low %v734, %v750
        %v754 = vcombine.high %v734, %v750
        %756 = vrot.lane.b32.xlu0 %v527, 120
        %v757 = vpop.permute.xlu0 %756
        %758 = vrot.lane.b32.xlu0 %v527, 112
        %v759 = vpop.permute.xlu0 %758
        %760 = vrot.lane.b32.xlu0 %v527, 104
        %v761 = vpop.permute.xlu0 %760
        %762 = vrot.lane.b32.xlu0 %v527, 96
        %v763 = vpop.permute.xlu0 %762
        %764 = vrot.lane.b32.xlu0 %v757, 96
        %v765 = vpop.permute.xlu0 %764
        %766 = vrot.lane.b32.xlu0 %v759, 96
        %v767 = vpop.permute.xlu0 %766
        %768 = vrot.lane.b32.xlu0 %v761, 96
        %v769 = vpop.permute.xlu0 %768
        %v774 = vcombine.low %v763, %v767
        %v775 = vcombine.high %v763, %v767
        %v777 = vunpack.c.l.s4 1983009808
        %v778 = vunpack.c.0.s8 %v777
        %v779 = vlaneseq
        %v780 = vshrl.u32 %v779, 7
        %v781 = vsub.s32 %v778, %v780
        %v782 = vrot.slane %v774, %v781
        %v784 = vunpack.c.l.s4 1983009808
        %v785 = vunpack.c.0.s8 %v784
        %v786 = vlaneseq
        %v787 = vshrl.u32 %v786, 7
        %v788 = vsub.s32 %v785, %v787
        %v789 = vrot.slane %v775, %v788
        %v790 = vcombine.low %v765, %v769
        %v791 = vcombine.high %v765, %v769
        %v793 = vunpack.c.l.s4 1983009808
        %v794 = vunpack.c.0.s8 %v793
        %v795 = vlaneseq
        %v796 = vshrl.u32 %v795, 7
        %v797 = vsub.s32 %v794, %v796
        %v798 = vrot.slane %v790, %v797
        %v800 = vunpack.c.l.s4 1983009808
        %v801 = vunpack.c.0.s8 %v800
        %v802 = vlaneseq
        %v803 = vshrl.u32 %v802, 7
        %v804 = vsub.s32 %v801, %v803
        %v805 = vrot.slane %v791, %v804
        %v806 = vcombine.low %v782, %v798
        %v807 = vcombine.high %v782, %v798
        %v809 = vunpack.c.l.s4 1934713408
        %v810 = vunpack.c.0.s8 %v809
        %v811 = vlaneseq
        %v812 = vshrl.u32 %v811, 7
        %v813 = vsub.s32 %v810, %v812
        %v814 = vrot.slane %v806, %v813
        %v816 = vunpack.c.l.s4 1934713408
        %v817 = vunpack.c.0.s8 %v816
        %v818 = vlaneseq
        %v819 = vshrl.u32 %v818, 7
        %v820 = vsub.s32 %v817, %v819
        %v821 = vrot.slane %v807, %v820
        %v822 = vcombine.low %v789, %v805
        %v823 = vcombine.high %v789, %v805
        %v825 = vunpack.c.l.s4 1934713408
        %v826 = vunpack.c.0.s8 %v825
        %v827 = vlaneseq
        %v828 = vshrl.u32 %v827, 7
        %v829 = vsub.s32 %v826, %v828
        %v830 = vrot.slane %v822, %v829
        %v832 = vunpack.c.l.s4 1934713408
        %v833 = vunpack.c.0.s8 %v832
        %v834 = vlaneseq
        %v835 = vshrl.u32 %v834, 7
        %v836 = vsub.s32 %v833, %v835
        %v837 = vrot.slane %v823, %v836
        %v838 = vcombine.high %v814, 0.0
        %v839 = vcombine.high %v821, 0.0
        %v840 = vcombine.high %v830, 0.0
        %v841 = vcombine.high %v837, 0.0
        %v842 = vcombine.low %v814, %v821
        %v844 = vunpack.c.l.s4 1983009808
        %v845 = vunpack.c.0.s8 %v844
        %v846 = vlaneseq
        %v847 = vshrl.u32 %v846, 7
        %v848 = vsub.s32 %v845, %v847
        %v849 = vrot.slane %v842, %v848
        %v850 = vcombine.low %v838, %v839
        %v852 = vunpack.c.l.s4 1983009808
        %v853 = vunpack.c.0.s8 %v852
        %v854 = vlaneseq
        %v855 = vshrl.u32 %v854, 7
        %v856 = vsub.s32 %v853, %v855
        %v857 = vrot.slane %v850, %v856
        %v858 = vcombine.low %v830, %v837
        %v860 = vunpack.c.l.s4 1983009808
        %v861 = vunpack.c.0.s8 %v860
        %v862 = vlaneseq
        %v863 = vshrl.u32 %v862, 7
        %v864 = vsub.s32 %v861, %v863
        %v865 = vrot.slane %v858, %v864
        %v866 = vcombine.low %v840, %v841
        %v868 = vunpack.c.l.s4 1983009808
        %v869 = vunpack.c.0.s8 %v868
        %v870 = vlaneseq
        %v871 = vshrl.u32 %v870, 7
        %v872 = vsub.s32 %v869, %v871
        %v873 = vrot.slane %v866, %v872
        %v874 = vcombine.low %v849, %v857
        %v875 = vcombine.high %v849, %v857
        %v877 = vunpack.c.l.s4 1934713408
        %v878 = vunpack.c.0.s8 %v877
        %v879 = vlaneseq
        %v880 = vshrl.u32 %v879, 7
        %v881 = vsub.s32 %v878, %v880
        %v882 = vrot.slane %v874, %v881
        %v884 = vunpack.c.l.s4 1934713408
        %v885 = vunpack.c.0.s8 %v884
        %v886 = vlaneseq
        %v887 = vshrl.u32 %v886, 7
        %v888 = vsub.s32 %v885, %v887
        %v889 = vrot.slane %v875, %v888
        %v890 = vcombine.low %v865, %v873
        %v891 = vcombine.high %v865, %v873
        %v893 = vunpack.c.l.s4 1934713408
        %v894 = vunpack.c.0.s8 %v893
        %v895 = vlaneseq
        %v896 = vshrl.u32 %v895, 7
        %v897 = vsub.s32 %v894, %v896
        %v898 = vrot.slane %v890, %v897
        %v900 = vunpack.c.l.s4 1934713408
        %v901 = vunpack.c.0.s8 %v900
        %v902 = vlaneseq
        %v903 = vshrl.u32 %v902, 7
        %v904 = vsub.s32 %v901, %v903
        %v905 = vrot.slane %v891, %v904
        %v906 = vcombine.low %v882, %v898
        %v907 = vcombine.high %v882, %v898
        %v908 = vcombine.low %v889, %v905
        %v909 = vcombine.high %v889, %v905
        %911 = vrot.lane.b32.xlu0 %v606, 120
        %v912 = vpop.permute.xlu0 %911
        %914 = vrot.lane.b32.xlu0 %v606, 112
        %v915 = vpop.permute.xlu0 %914
        %917 = vrot.lane.b32.xlu0 %v606, 104
        %v918 = vpop.permute.xlu0 %917
        %v920 = vcombine.low %v606, %v915
        %v921 = vcombine.high %v606, %v915
        %v923 = vunpack.c.l.s4 1983009808
        %v924 = vunpack.c.0.s8 %v923
        %v925 = vlaneseq
        %v926 = vshrl.u32 %v925, 7
        %v927 = vsub.s32 %v924, %v926
        %v928 = vrot.slane %v920, %v927
        %v930 = vunpack.c.l.s4 1983009808
        %v931 = vunpack.c.0.s8 %v930
        %v932 = vlaneseq
        %v933 = vshrl.u32 %v932, 7
        %v934 = vsub.s32 %v931, %v933
        %v935 = vrot.slane %v921, %v934
        %v936 = vcombine.low %v912, %v918
        %v937 = vcombine.high %v912, %v918
        %v939 = vunpack.c.l.s4 1983009808
        %v940 = vunpack.c.0.s8 %v939
        %v941 = vlaneseq
        %v942 = vshrl.u32 %v941, 7
        %v943 = vsub.s32 %v940, %v942
        %v944 = vrot.slane %v936, %v943
        %v946 = vunpack.c.l.s4 1983009808
        %v947 = vunpack.c.0.s8 %v946
        %v948 = vlaneseq
        %v949 = vshrl.u32 %v948, 7
        %v950 = vsub.s32 %v947, %v949
        %v951 = vrot.slane %v937, %v950
        %v952 = vcombine.low %v928, %v944
        %v953 = vcombine.high %v928, %v944
        %v955 = vunpack.c.l.s4 1934713408
        %v956 = vunpack.c.0.s8 %v955
        %v957 = vlaneseq
        %v958 = vshrl.u32 %v957, 7
        %v959 = vsub.s32 %v956, %v958
        %v960 = vrot.slane %v952, %v959
        %v962 = vunpack.c.l.s4 1934713408
        %v963 = vunpack.c.0.s8 %v962
        %v964 = vlaneseq
        %v965 = vshrl.u32 %v964, 7
        %v966 = vsub.s32 %v963, %v965
        %v967 = vrot.slane %v953, %v966
        %v968 = vcombine.low %v935, %v951
        %v969 = vcombine.high %v935, %v951
        %v971 = vunpack.c.l.s4 1934713408
        %v972 = vunpack.c.0.s8 %v971
        %v973 = vlaneseq
        %v974 = vshrl.u32 %v973, 7
        %v975 = vsub.s32 %v972, %v974
        %v976 = vrot.slane %v968, %v975
        %v978 = vunpack.c.l.s4 1934713408
        %v979 = vunpack.c.0.s8 %v978
        %v980 = vlaneseq
        %v981 = vshrl.u32 %v980, 7
        %v982 = vsub.s32 %v979, %v981
        %v983 = vrot.slane %v969, %v982
        %v984 = vcombine.high %v960, 0.0
        %v985 = vcombine.high %v967, 0.0
        %v986 = vcombine.high %v976, 0.0
        %v987 = vcombine.high %v983, 0.0
        %v988 = vcombine.low %v960, %v967
        %v990 = vunpack.c.l.s4 1983009808
        %v991 = vunpack.c.0.s8 %v990
        %v992 = vlaneseq
        %v993 = vshrl.u32 %v992, 7
        %v994 = vsub.s32 %v991, %v993
        %v995 = vrot.slane %v988, %v994
        %v996 = vcombine.low %v984, %v985
        %v998 = vunpack.c.l.s4 1983009808
        %v999 = vunpack.c.0.s8 %v998
        %v1000 = vlaneseq
        %v1001 = vshrl.u32 %v1000, 7
        %v1002 = vsub.s32 %v999, %v1001
        %v1003 = vrot.slane %v996, %v1002
        %v1004 = vcombine.low %v976, %v983
        %v1006 = vunpack.c.l.s4 1983009808
        %v1007 = vunpack.c.0.s8 %v1006
        %v1008 = vlaneseq
        %v1009 = vshrl.u32 %v1008, 7
        %v1010 = vsub.s32 %v1007, %v1009
        %v1011 = vrot.slane %v1004, %v1010
        %v1012 = vcombine.low %v986, %v987
        %v1014 = vunpack.c.l.s4 1983009808
        %v1015 = vunpack.c.0.s8 %v1014
        %v1016 = vlaneseq
        %v1017 = vshrl.u32 %v1016, 7
        %v1018 = vsub.s32 %v1015, %v1017
        %v1019 = vrot.slane %v1012, %v1018
        %v1020 = vcombine.low %v995, %v1003
        %v1021 = vcombine.high %v995, %v1003
        %v1023 = vunpack.c.l.s4 1934713408
        %v1024 = vunpack.c.0.s8 %v1023
        %v1025 = vlaneseq
        %v1026 = vshrl.u32 %v1025, 7
        %v1027 = vsub.s32 %v1024, %v1026
        %v1028 = vrot.slane %v1020, %v1027
        %v1030 = vunpack.c.l.s4 1934713408
        %v1031 = vunpack.c.0.s8 %v1030
        %v1032 = vlaneseq
        %v1033 = vshrl.u32 %v1032, 7
        %v1034 = vsub.s32 %v1031, %v1033
        %v1035 = vrot.slane %v1021, %v1034
        %v1036 = vcombine.low %v1011, %v1019
        %v1037 = vcombine.high %v1011, %v1019
        %v1039 = vunpack.c.l.s4 1934713408
        %v1040 = vunpack.c.0.s8 %v1039
        %v1041 = vlaneseq
        %v1042 = vshrl.u32 %v1041, 7
        %v1043 = vsub.s32 %v1040, %v1042
        %v1044 = vrot.slane %v1036, %v1043
        %v1046 = vunpack.c.l.s4 1934713408
        %v1047 = vunpack.c.0.s8 %v1046
        %v1048 = vlaneseq
        %v1049 = vshrl.u32 %v1048, 7
        %v1050 = vsub.s32 %v1047, %v1049
        %v1051 = vrot.slane %v1037, %v1050
        %v1052 = vcombine.low %v1028, %v1044
        %v1053 = vcombine.high %v1028, %v1044
        %v1054 = vcombine.low %v1035, %v1051
        %v1055 = vcombine.high %v1035, %v1051
        %vm1056 = vcmask 64512
        %v1058 = vsel %vm1056, %v751, 0
        %v1061 = vsel %vm1056, %v906, 0
        %1063 = vmatprep.subr.mxu0 0.0
        %1064 = vmatpush1.xpose.msra.mxu0 %v1061
        %1065 = vmatprep.subr.mxu0 0.0
        %1066 = vmatpush1.xpose.msra.mxu0 0.0
        %1067 = vmatprep.subr.mxu0 0.0
        %1068 = vmatpush1.xpose.msra.mxu0 0.0
        %1069 = vmatprep.subr.mxu0 0.0
        %1070 = vmatpush1.xpose.msra.mxu0 0.0
        %1071 = vmatprep.subr.mxu0 0.0
        %1072 = vmatpush1.xpose.msra.mxu0 0.0
        %1073 = vmatprep.subr.mxu0 0.0
        %1074 = vmatpush1.xpose.msra.mxu0 0.0
        %1075 = vmatprep.subr.mxu0 0.0
        %1076 = vmatpush1.xpose.msra.mxu0 0.0
        %1077 = vmatprep.subr.mxu0 0.0
        %1078 = vmatpush1.xpose.msra.mxu0 0.0
        %1079 = vmatprep.subr.mxu0 0.0
        %1080 = vmatpush1.xpose.msra.mxu0 0.0
        %1081 = vmatprep.subr.mxu0 0.0
        %1082 = vmatpush1.xpose.msra.mxu0 0.0
        %1083 = vmatprep.subr.mxu0 0.0
        %1084 = vmatpush1.xpose.msra.mxu0 0.0
        %1085 = vmatprep.subr.mxu0 0.0
        %1086 = vmatpush1.xpose.msra.mxu0 0.0
        %1087 = vmatprep.subr.mxu0 0.0
        %1088 = vmatpush1.xpose.msra.mxu0 0.0
        %1089 = vmatprep.subr.mxu0 0.0
        %1090 = vmatpush1.xpose.msra.mxu0 0.0
        %1091 = vmatprep.subr.mxu0 0.0
        %1092 = vmatpush1.xpose.msra.mxu0 0.0
        %1093 = vmatprep.subr.mxu0 0.0
        %1094 = vmatpush1.xpose.msra.mxu0 0.0
        %1095 = vmatprep.subr.mxu0 0.0
        %1096 = vmatpush1.xpose.msra.mxu0 0.0
        %1097 = vmatprep.subr.mxu0 0.0
        %1098 = vmatpush1.xpose.msra.mxu0 0.0
        %1099 = vmatprep.subr.mxu0 0.0
        %1100 = vmatpush1.xpose.msra.mxu0 0.0
        %1101 = vmatprep.subr.mxu0 0.0
        %1102 = vmatpush1.xpose.msra.mxu0 0.0
        %1103 = vmatprep.subr.mxu0 0.0
        %1104 = vmatpush1.xpose.msra.mxu0 0.0
        %1105 = vmatprep.subr.mxu0 0.0
        %1106 = vmatpush1.xpose.msra.mxu0 0.0
        %1107 = vmatprep.subr.mxu0 0.0
        %1108 = vmatpush1.xpose.msra.mxu0 0.0
        %1109 = vmatprep.subr.mxu0 0.0
        %1110 = vmatpush1.xpose.msra.mxu0 0.0
        %1111 = vmatprep.subr.mxu0 0.0
        %1112 = vmatpush1.xpose.msra.mxu0 0.0
        %1113 = vmatprep.subr.mxu0 0.0
        %1114 = vmatpush1.xpose.msra.mxu0 0.0
        %1115 = vmatprep.subr.mxu0 0.0
        %1116 = vmatpush1.xpose.msra.mxu0 0.0
        %1117 = vmatprep.subr.mxu0 0.0
        %1118 = vmatpush1.xpose.msra.mxu0 0.0
        %1119 = vmatprep.subr.mxu0 0.0
        %1120 = vmatpush1.xpose.msra.mxu0 0.0
        %1121 = vmatprep.subr.mxu0 0.0
        %1122 = vmatpush1.xpose.msra.mxu0 0.0
        %1123 = vmatprep.subr.mxu0 0.0
        %1124 = vmatpush1.xpose.msra.mxu0 0.0
        %1125 = vmatprep.subr.mxu0 0.0
        %1126 = vmatpush1.xpose.msra.mxu0 0.0
        %1127 = vmatprep.mubr.f32.mxu0 0.0
        %1128 = vmatmul.mubr.f32.gmra.mrb[0].mxu0 %v1058
        %v1129 = vpop.f32.mrb[0].mxu0
        %v1130 = vadd.f32 0.0, %v1129
        %v1131 = vpop.f32.mrb[0].mxu0
        %1132 = vdwg.mxu0
        %v1134 = vsel %vm1056, %v752, 0
        %v1137 = vsel %vm1056, %v907, 0
        %1139 = vmatprep.subr.mxu0 0.0
        %1140 = vmatpush1.xpose.msra.mxu0 %v1137
        %1141 = vmatprep.subr.mxu0 0.0
        %1142 = vmatpush1.xpose.msra.mxu0 0.0
        %1143 = vmatprep.subr.mxu0 0.0
        %1144 = vmatpush1.xpose.msra.mxu0 0.0
        %1145 = vmatprep.subr.mxu0 0.0
        %1146 = vmatpush1.xpose.msra.mxu0 0.0
        %1147 = vmatprep.subr.mxu0 0.0
        %1148 = vmatpush1.xpose.msra.mxu0 0.0
        %1149 = vmatprep.subr.mxu0 0.0
        %1150 = vmatpush1.xpose.msra.mxu0 0.0
        %1151 = vmatprep.subr.mxu0 0.0
        %1152 = vmatpush1.xpose.msra.mxu0 0.0
        %1153 = vmatprep.subr.mxu0 0.0
        %1154 = vmatpush1.xpose.msra.mxu0 0.0
        %1155 = vmatprep.subr.mxu0 0.0
        %1156 = vmatpush1.xpose.msra.mxu0 0.0
        %1157 = vmatprep.subr.mxu0 0.0
        %1158 = vmatpush1.xpose.msra.mxu0 0.0
        %1159 = vmatprep.subr.mxu0 0.0
        %1160 = vmatpush1.xpose.msra.mxu0 0.0
        %1161 = vmatprep.subr.mxu0 0.0
        %1162 = vmatpush1.xpose.msra.mxu0 0.0
        %1163 = vmatprep.subr.mxu0 0.0
        %1164 = vmatpush1.xpose.msra.mxu0 0.0
        %1165 = vmatprep.subr.mxu0 0.0
        %1166 = vmatpush1.xpose.msra.mxu0 0.0
        %1167 = vmatprep.subr.mxu0 0.0
        %1168 = vmatpush1.xpose.msra.mxu0 0.0
        %1169 = vmatprep.subr.mxu0 0.0
        %1170 = vmatpush1.xpose.msra.mxu0 0.0
        %1171 = vmatprep.subr.mxu0 0.0
        %1172 = vmatpush1.xpose.msra.mxu0 0.0
        %1173 = vmatprep.subr.mxu0 0.0
        %1174 = vmatpush1.xpose.msra.mxu0 0.0
        %1175 = vmatprep.subr.mxu0 0.0
        %1176 = vmatpush1.xpose.msra.mxu0 0.0
        %1177 = vmatprep.subr.mxu0 0.0
        %1178 = vmatpush1.xpose.msra.mxu0 0.0
        %1179 = vmatprep.subr.mxu0 0.0
        %1180 = vmatpush1.xpose.msra.mxu0 0.0
        %1181 = vmatprep.subr.mxu0 0.0
        %1182 = vmatpush1.xpose.msra.mxu0 0.0
        %1183 = vmatprep.subr.mxu0 0.0
        %1184 = vmatpush1.xpose.msra.mxu0 0.0
        %1185 = vmatprep.subr.mxu0 0.0
        %1186 = vmatpush1.xpose.msra.mxu0 0.0
        %1187 = vmatprep.subr.mxu0 0.0
        %1188 = vmatpush1.xpose.msra.mxu0 0.0
        %1189 = vmatprep.subr.mxu0 0.0
        %1190 = vmatpush1.xpose.msra.mxu0 0.0
        %1191 = vmatprep.subr.mxu0 0.0
        %1192 = vmatpush1.xpose.msra.mxu0 0.0
        %1193 = vmatprep.subr.mxu0 0.0
        %1194 = vmatpush1.xpose.msra.mxu0 0.0
        %1195 = vmatprep.subr.mxu0 0.0
        %1196 = vmatpush1.xpose.msra.mxu0 0.0
        %1197 = vmatprep.subr.mxu0 0.0
        %1198 = vmatpush1.xpose.msra.mxu0 0.0
        %1199 = vmatprep.subr.mxu0 0.0
        %1200 = vmatpush1.xpose.msra.mxu0 0.0
        %1201 = vmatprep.subr.mxu0 0.0
        %1202 = vmatpush1.xpose.msra.mxu0 0.0
        %1203 = vmatprep.mubr.f32.mxu0 0.0
        %1204 = vmatmul.mubr.f32.gmra.mrb[0].mxu0 %v1134
        %v1205 = vpop.f32.mrb[0].mxu0
        %v1206 = vadd.f32 0.0, %v1205
        %v1207 = vpop.f32.mrb[0].mxu0
        %1208 = vdwg.mxu0
        %v1210 = vsel %vm1056, %v753, 0
        %v1213 = vsel %vm1056, %v908, 0
        %1215 = vmatprep.subr.mxu0 0.0
        %1216 = vmatpush1.xpose.msra.mxu0 %v1213
        %1217 = vmatprep.subr.mxu0 0.0
        %1218 = vmatpush1.xpose.msra.mxu0 0.0
        %1219 = vmatprep.subr.mxu0 0.0
        %1220 = vmatpush1.xpose.msra.mxu0 0.0
        %1221 = vmatprep.subr.mxu0 0.0
        %1222 = vmatpush1.xpose.msra.mxu0 0.0
        %1223 = vmatprep.subr.mxu0 0.0
        %1224 = vmatpush1.xpose.msra.mxu0 0.0
        %1225 = vmatprep.subr.mxu0 0.0
        %1226 = vmatpush1.xpose.msra.mxu0 0.0
        %1227 = vmatprep.subr.mxu0 0.0
        %1228 = vmatpush1.xpose.msra.mxu0 0.0
        %1229 = vmatprep.subr.mxu0 0.0
        %1230 = vmatpush1.xpose.msra.mxu0 0.0
        %1231 = vmatprep.subr.mxu0 0.0
        %1232 = vmatpush1.xpose.msra.mxu0 0.0
        %1233 = vmatprep.subr.mxu0 0.0
        %1234 = vmatpush1.xpose.msra.mxu0 0.0
        %1235 = vmatprep.subr.mxu0 0.0
        %1236 = vmatpush1.xpose.msra.mxu0 0.0
        %1237 = vmatprep.subr.mxu0 0.0
        %1238 = vmatpush1.xpose.msra.mxu0 0.0
        %1239 = vmatprep.subr.mxu0 0.0
        %1240 = vmatpush1.xpose.msra.mxu0 0.0
        %1241 = vmatprep.subr.mxu0 0.0
        %1242 = vmatpush1.xpose.msra.mxu0 0.0
        %1243 = vmatprep.subr.mxu0 0.0
        %1244 = vmatpush1.xpose.msra.mxu0 0.0
        %1245 = vmatprep.subr.mxu0 0.0
        %1246 = vmatpush1.xpose.msra.mxu0 0.0
        %1247 = vmatprep.subr.mxu0 0.0
        %1248 = vmatpush1.xpose.msra.mxu0 0.0
        %1249 = vmatprep.subr.mxu0 0.0
        %1250 = vmatpush1.xpose.msra.mxu0 0.0
        %1251 = vmatprep.subr.mxu0 0.0
        %1252 = vmatpush1.xpose.msra.mxu0 0.0
        %1253 = vmatprep.subr.mxu0 0.0
        %1254 = vmatpush1.xpose.msra.mxu0 0.0
        %1255 = vmatprep.subr.mxu0 0.0
        %1256 = vmatpush1.xpose.msra.mxu0 0.0
        %1257 = vmatprep.subr.mxu0 0.0
        %1258 = vmatpush1.xpose.msra.mxu0 0.0
        %1259 = vmatprep.subr.mxu0 0.0
        %1260 = vmatpush1.xpose.msra.mxu0 0.0
        %1261 = vmatprep.subr.mxu0 0.0
        %1262 = vmatpush1.xpose.msra.mxu0 0.0
        %1263 = vmatprep.subr.mxu0 0.0
        %1264 = vmatpush1.xpose.msra.mxu0 0.0
        %1265 = vmatprep.subr.mxu0 0.0
        %1266 = vmatpush1.xpose.msra.mxu0 0.0
        %1267 = vmatprep.subr.mxu0 0.0
        %1268 = vmatpush1.xpose.msra.mxu0 0.0
        %1269 = vmatprep.subr.mxu0 0.0
        %1270 = vmatpush1.xpose.msra.mxu0 0.0
        %1271 = vmatprep.subr.mxu0 0.0
        %1272 = vmatpush1.xpose.msra.mxu0 0.0
        %1273 = vmatprep.subr.mxu0 0.0
        %1274 = vmatpush1.xpose.msra.mxu0 0.0
        %1275 = vmatprep.subr.mxu0 0.0
        %1276 = vmatpush1.xpose.msra.mxu0 0.0
        %1277 = vmatprep.subr.mxu0 0.0
        %1278 = vmatpush1.xpose.msra.mxu0 0.0
        %1279 = vmatprep.mubr.f32.mxu0 0.0
        %1280 = vmatmul.mubr.f32.gmra.mrb[0].mxu0 %v1210
        %v1281 = vpop.f32.mrb[0].mxu0
        %v1282 = vadd.f32 0.0, %v1281
        %v1283 = vpop.f32.mrb[0].mxu0
        %1284 = vdwg.mxu0
        %v1286 = vsel %vm1056, %v754, 0
        %v1289 = vsel %vm1056, %v909, 0
        %1291 = vmatprep.subr.mxu0 0.0
        %1292 = vmatpush1.xpose.msra.mxu0 %v1289
        %1293 = vmatprep.subr.mxu0 0.0
        %1294 = vmatpush1.xpose.msra.mxu0 0.0
        %1295 = vmatprep.subr.mxu0 0.0
        %1296 = vmatpush1.xpose.msra.mxu0 0.0
        %1297 = vmatprep.subr.mxu0 0.0
        %1298 = vmatpush1.xpose.msra.mxu0 0.0
        %1299 = vmatprep.subr.mxu0 0.0
        %1300 = vmatpush1.xpose.msra.mxu0 0.0
        %1301 = vmatprep.subr.mxu0 0.0
        %1302 = vmatpush1.xpose.msra.mxu0 0.0
        %1303 = vmatprep.subr.mxu0 0.0
        %1304 = vmatpush1.xpose.msra.mxu0 0.0
        %1305 = vmatprep.subr.mxu0 0.0
        %1306 = vmatpush1.xpose.msra.mxu0 0.0
        %1307 = vmatprep.subr.mxu0 0.0
        %1308 = vmatpush1.xpose.msra.mxu0 0.0
        %1309 = vmatprep.subr.mxu0 0.0
        %1310 = vmatpush1.xpose.msra.mxu0 0.0
        %1311 = vmatprep.subr.mxu0 0.0
        %1312 = vmatpush1.xpose.msra.mxu0 0.0
        %1313 = vmatprep.subr.mxu0 0.0
        %1314 = vmatpush1.xpose.msra.mxu0 0.0
        %1315 = vmatprep.subr.mxu0 0.0
        %1316 = vmatpush1.xpose.msra.mxu0 0.0
        %1317 = vmatprep.subr.mxu0 0.0
        %1318 = vmatpush1.xpose.msra.mxu0 0.0
        %1319 = vmatprep.subr.mxu0 0.0
        %1320 = vmatpush1.xpose.msra.mxu0 0.0
        %1321 = vmatprep.subr.mxu0 0.0
        %1322 = vmatpush1.xpose.msra.mxu0 0.0
        %1323 = vmatprep.subr.mxu0 0.0
        %1324 = vmatpush1.xpose.msra.mxu0 0.0
        %1325 = vmatprep.subr.mxu0 0.0
        %1326 = vmatpush1.xpose.msra.mxu0 0.0
        %1327 = vmatprep.subr.mxu0 0.0
        %1328 = vmatpush1.xpose.msra.mxu0 0.0
        %1329 = vmatprep.subr.mxu0 0.0
        %1330 = vmatpush1.xpose.msra.mxu0 0.0
        %1331 = vmatprep.subr.mxu0 0.0
        %1332 = vmatpush1.xpose.msra.mxu0 0.0
        %1333 = vmatprep.subr.mxu0 0.0
        %1334 = vmatpush1.xpose.msra.mxu0 0.0
        %1335 = vmatprep.subr.mxu0 0.0
        %1336 = vmatpush1.xpose.msra.mxu0 0.0
        %1337 = vmatprep.subr.mxu0 0.0
        %1338 = vmatpush1.xpose.msra.mxu0 0.0
        %1339 = vmatprep.subr.mxu0 0.0
        %1340 = vmatpush1.xpose.msra.mxu0 0.0
        %1341 = vmatprep.subr.mxu0 0.0
        %1342 = vmatpush1.xpose.msra.mxu0 0.0
        %1343 = vmatprep.subr.mxu0 0.0
        %1344 = vmatpush1.xpose.msra.mxu0 0.0
        %1345 = vmatprep.subr.mxu0 0.0
        %1346 = vmatpush1.xpose.msra.mxu0 0.0
        %1347 = vmatprep.subr.mxu0 0.0
        %1348 = vmatpush1.xpose.msra.mxu0 0.0
        %1349 = vmatprep.subr.mxu0 0.0
        %1350 = vmatpush1.xpose.msra.mxu0 0.0
        %1351 = vmatprep.subr.mxu0 0.0
        %1352 = vmatpush1.xpose.msra.mxu0 0.0
        %1353 = vmatprep.subr.mxu0 0.0
        %1354 = vmatpush1.xpose.msra.mxu0 0.0
        %1355 = vmatprep.mubr.f32.mxu0 0.0
        %1356 = vmatmul.mubr.f32.gmra.mrb[0].mxu0 %v1286
        %v1357 = vpop.f32.mrb[0].mxu0
        %v1358 = vadd.f32 0.0, %v1357
        %v1359 = vpop.f32.mrb[0].mxu0
        %1360 = vdwg.mxu0
        %v1361 = vsel %vm1056, %v1130, -inf
        %1362 = vmax.xlane.f32.xlu0 %v1361
        %v1363 = vpop.xlane.xlu0 %1362
        %v1364 = vsel %vm1056, %v1206, -inf
        %1365 = vmax.xlane.f32.xlu0 %v1364
        %v1366 = vpop.xlane.xlu0 %1365
        %v1367 = vsel %vm1056, %v1282, -inf
        %1368 = vmax.xlane.f32.xlu0 %v1367
        %v1369 = vpop.xlane.xlu0 %1368
        %v1370 = vsel %vm1056, %v1358, -inf
        %1371 = vmax.xlane.f32.xlu0 %v1370
        %v1372 = vpop.xlane.xlu0 %1371
        %v1373 = vsub.f32 %v1130, %v1363
        %v1374 = vsub.f32 %v1206, %v1366
        %v1375 = vsub.f32 %v1282, %v1369
        %v1376 = vsub.f32 %v1358, %v1372
        %v1377 = vmul.f32 %v1373, 1.442695
        %v1378 = vpow.pop %v1377
        %v1379 = vmul.f32 %v1374, 1.442695
        %v1380 = vpow.pop %v1379
        %v1381 = vmul.f32 %v1375, 1.442695
        %v1382 = vpow.pop %v1381
        %v1383 = vmul.f32 %v1376, 1.442695
        %v1384 = vpow.pop %v1383
        %v1385 = vsel %vm1056, %v1378, 0.0
        %1386 = vadd.xlane.f32.xlu0 %v1385
        %v1387 = vpop.xlane.xlu0 %1386
        %v1388 = vsel %vm1056, %v1380, 0.0
        %1389 = vadd.xlane.f32.xlu0 %v1388
        %v1390 = vpop.xlane.xlu0 %1389
        %v1391 = vsel %vm1056, %v1382, 0.0
        %1392 = vadd.xlane.f32.xlu0 %v1391
        %v1393 = vpop.xlane.xlu0 %1392
        %v1394 = vsel %vm1056, %v1384, 0.0
        %1395 = vadd.xlane.f32.xlu0 %v1394
        %v1396 = vpop.xlane.xlu0 %1395
        %v1397 = vrcp.pop %v1387
        %v1398 = vrcp.pop %v1390
        %v1399 = vrcp.pop %v1393
        %v1400 = vrcp.pop %v1396
        %v1401 = vmul.f32 %v1378, %v1397
        %v1402 = vmul.f32 %v1380, %v1398
        %v1403 = vmul.f32 %v1382, %v1399
        %v1404 = vmul.f32 %v1384, %v1400
        %v1406 = vsel %vm1056, %v1401, 0
        %1408 = vmatprep.subr.mxu0 0.0
        %1409 = vmatpush1.msra.mxu0 %v1052
        %1410 = vmatprep.subr.mxu0 0.0
        %1411 = vmatpush1.msra.mxu0 0.0
        %1412 = vmatprep.subr.mxu0 0.0
        %1413 = vmatpush1.msra.mxu0 0.0
        %1414 = vmatprep.subr.mxu0 0.0
        %1415 = vmatpush1.msra.mxu0 0.0
        %1416 = vmatprep.subr.mxu0 0.0
        %1417 = vmatpush1.msra.mxu0 0.0
        %1418 = vmatprep.subr.mxu0 0.0
        %1419 = vmatpush1.msra.mxu0 0.0
        %1420 = vmatprep.subr.mxu0 0.0
        %1421 = vmatpush1.msra.mxu0 0.0
        %1422 = vmatprep.subr.mxu0 0.0
        %1423 = vmatpush1.msra.mxu0 0.0
        %1424 = vmatprep.subr.mxu0 0.0
        %1425 = vmatpush1.msra.mxu0 0.0
        %1426 = vmatprep.subr.mxu0 0.0
        %1427 = vmatpush1.msra.mxu0 0.0
        %1428 = vmatprep.subr.mxu0 0.0
        %1429 = vmatpush1.msra.mxu0 0.0
        %1430 = vmatprep.subr.mxu0 0.0
        %1431 = vmatpush1.msra.mxu0 0.0
        %1432 = vmatprep.subr.mxu0 0.0
        %1433 = vmatpush1.msra.mxu0 0.0
        %1434 = vmatprep.subr.mxu0 0.0
        %1435 = vmatpush1.msra.mxu0 0.0
        %1436 = vmatprep.subr.mxu0 0.0
        %1437 = vmatpush1.msra.mxu0 0.0
        %1438 = vmatprep.subr.mxu0 0.0
        %1439 = vmatpush1.msra.mxu0 0.0
        %1440 = vmatprep.subr.mxu0 0.0
        %1441 = vmatpush1.msra.mxu0 0.0
        %1442 = vmatprep.subr.mxu0 0.0
        %1443 = vmatpush1.msra.mxu0 0.0
        %1444 = vmatprep.subr.mxu0 0.0
        %1445 = vmatpush1.msra.mxu0 0.0
        %1446 = vmatprep.subr.mxu0 0.0
        %1447 = vmatpush1.msra.mxu0 0.0
        %1448 = vmatprep.subr.mxu0 0.0
        %1449 = vmatpush1.msra.mxu0 0.0
        %1450 = vmatprep.subr.mxu0 0.0
        %1451 = vmatpush1.msra.mxu0 0.0
        %1452 = vmatprep.subr.mxu0 0.0
        %1453 = vmatpush1.msra.mxu0 0.0
        %1454 = vmatprep.subr.mxu0 0.0
        %1455 = vmatpush1.msra.mxu0 0.0
        %1456 = vmatprep.subr.mxu0 0.0
        %1457 = vmatpush1.msra.mxu0 0.0
        %1458 = vmatprep.subr.mxu0 0.0
        %1459 = vmatpush1.msra.mxu0 0.0
        %1460 = vmatprep.subr.mxu0 0.0
        %1461 = vmatpush1.msra.mxu0 0.0
        %1462 = vmatprep.subr.mxu0 0.0
        %1463 = vmatpush1.msra.mxu0 0.0
        %1464 = vmatprep.subr.mxu0 0.0
        %1465 = vmatpush1.msra.mxu0 0.0
        %1466 = vmatprep.subr.mxu0 0.0
        %1467 = vmatpush1.msra.mxu0 0.0
        %1468 = vmatprep.subr.mxu0 0.0
        %1469 = vmatpush1.msra.mxu0 0.0
        %1470 = vmatprep.subr.mxu0 0.0
        %1471 = vmatpush1.msra.mxu0 0.0
        %1472 = vmatprep.mubr.f32.mxu0 0.0
        %1473 = vmatmul.mubr.f32.gmra.mrb[0].mxu0 %v1406
        %v1474 = vpop.f32.mrb[0].mxu0
        %v1475 = vadd.f32 0.0, %v1474
        %v1476 = vpop.f32.mrb[0].mxu0
        %1477 = vdwg.mxu0
        %v1479 = vsel %vm1056, %v1402, 0
        %1481 = vmatprep.subr.mxu0 0.0
        %1482 = vmatpush1.msra.mxu0 %v1053
        %1483 = vmatprep.subr.mxu0 0.0
        %1484 = vmatpush1.msra.mxu0 0.0
        %1485 = vmatprep.subr.mxu0 0.0
        %1486 = vmatpush1.msra.mxu0 0.0
        %1487 = vmatprep.subr.mxu0 0.0
        %1488 = vmatpush1.msra.mxu0 0.0
        %1489 = vmatprep.subr.mxu0 0.0
        %1490 = vmatpush1.msra.mxu0 0.0
        %1491 = vmatprep.subr.mxu0 0.0
        %1492 = vmatpush1.msra.mxu0 0.0
        %1493 = vmatprep.subr.mxu0 0.0
        %1494 = vmatpush1.msra.mxu0 0.0
        %1495 = vmatprep.subr.mxu0 0.0
        %1496 = vmatpush1.msra.mxu0 0.0
        %1497 = vmatprep.subr.mxu0 0.0
        %1498 = vmatpush1.msra.mxu0 0.0
        %1499 = vmatprep.subr.mxu0 0.0
        %1500 = vmatpush1.msra.mxu0 0.0
        %1501 = vmatprep.subr.mxu0 0.0
        %1502 = vmatpush1.msra.mxu0 0.0
        %1503 = vmatprep.subr.mxu0 0.0
        %1504 = vmatpush1.msra.mxu0 0.0
        %1505 = vmatprep.subr.mxu0 0.0
        %1506 = vmatpush1.msra.mxu0 0.0
        %1507 = vmatprep.subr.mxu0 0.0
        %1508 = vmatpush1.msra.mxu0 0.0
        %1509 = vmatprep.subr.mxu0 0.0
        %1510 = vmatpush1.msra.mxu0 0.0
        %1511 = vmatprep.subr.mxu0 0.0
        %1512 = vmatpush1.msra.mxu0 0.0
        %1513 = vmatprep.subr.mxu0 0.0
        %1514 = vmatpush1.msra.mxu0 0.0
        %1515 = vmatprep.subr.mxu0 0.0
        %1516 = vmatpush1.msra.mxu0 0.0
        %1517 = vmatprep.subr.mxu0 0.0
        %1518 = vmatpush1.msra.mxu0 0.0
        %1519 = vmatprep.subr.mxu0 0.0
        %1520 = vmatpush1.msra.mxu0 0.0
        %1521 = vmatprep.subr.mxu0 0.0
        %1522 = vmatpush1.msra.mxu0 0.0
        %1523 = vmatprep.subr.mxu0 0.0
        %1524 = vmatpush1.msra.mxu0 0.0
        %1525 = vmatprep.subr.mxu0 0.0
        %1526 = vmatpush1.msra.mxu0 0.0
        %1527 = vmatprep.subr.mxu0 0.0
        %1528 = vmatpush1.msra.mxu0 0.0
        %1529 = vmatprep.subr.mxu0 0.0
        %1530 = vmatpush1.msra.mxu0 0.0
        %1531 = vmatprep.subr.mxu0 0.0
        %1532 = vmatpush1.msra.mxu0 0.0
        %1533 = vmatprep.subr.mxu0 0.0
        %1534 = vmatpush1.msra.mxu0 0.0
        %1535 = vmatprep.subr.mxu0 0.0
        %1536 = vmatpush1.msra.mxu0 0.0
        %1537 = vmatprep.subr.mxu0 0.0
        %1538 = vmatpush1.msra.mxu0 0.0
        %1539 = vmatprep.subr.mxu0 0.0
        %1540 = vmatpush1.msra.mxu0 0.0
        %1541 = vmatprep.subr.mxu0 0.0
        %1542 = vmatpush1.msra.mxu0 0.0
        %1543 = vmatprep.subr.mxu0 0.0
        %1544 = vmatpush1.msra.mxu0 0.0
        %1545 = vmatprep.mubr.f32.mxu0 0.0
        %1546 = vmatmul.mubr.f32.gmra.mrb[0].mxu0 %v1479
        %v1547 = vpop.f32.mrb[0].mxu0
        %v1548 = vadd.f32 0.0, %v1547
        %v1549 = vpop.f32.mrb[0].mxu0
        %1550 = vdwg.mxu0
        %v1552 = vsel %vm1056, %v1403, 0
        %1554 = vmatprep.subr.mxu0 0.0
        %1555 = vmatpush1.msra.mxu0 %v1054
        %1556 = vmatprep.subr.mxu0 0.0
        %1557 = vmatpush1.msra.mxu0 0.0
        %1558 = vmatprep.subr.mxu0 0.0
        %1559 = vmatpush1.msra.mxu0 0.0
        %1560 = vmatprep.subr.mxu0 0.0
        %1561 = vmatpush1.msra.mxu0 0.0
        %1562 = vmatprep.subr.mxu0 0.0
        %1563 = vmatpush1.msra.mxu0 0.0
        %1564 = vmatprep.subr.mxu0 0.0
        %1565 = vmatpush1.msra.mxu0 0.0
        %1566 = vmatprep.subr.mxu0 0.0
        %1567 = vmatpush1.msra.mxu0 0.0
        %1568 = vmatprep.subr.mxu0 0.0
        %1569 = vmatpush1.msra.mxu0 0.0
        %1570 = vmatprep.subr.mxu0 0.0
        %1571 = vmatpush1.msra.mxu0 0.0
        %1572 = vmatprep.subr.mxu0 0.0
        %1573 = vmatpush1.msra.mxu0 0.0
        %1574 = vmatprep.subr.mxu0 0.0
        %1575 = vmatpush1.msra.mxu0 0.0
        %1576 = vmatprep.subr.mxu0 0.0
        %1577 = vmatpush1.msra.mxu0 0.0
        %1578 = vmatprep.subr.mxu0 0.0
        %1579 = vmatpush1.msra.mxu0 0.0
        %1580 = vmatprep.subr.mxu0 0.0
        %1581 = vmatpush1.msra.mxu0 0.0
        %1582 = vmatprep.subr.mxu0 0.0
        %1583 = vmatpush1.msra.mxu0 0.0
        %1584 = vmatprep.subr.mxu0 0.0
        %1585 = vmatpush1.msra.mxu0 0.0
        %1586 = vmatprep.subr.mxu0 0.0
        %1587 = vmatpush1.msra.mxu0 0.0
        %1588 = vmatprep.subr.mxu0 0.0
        %1589 = vmatpush1.msra.mxu0 0.0
        %1590 = vmatprep.subr.mxu0 0.0
        %1591 = vmatpush1.msra.mxu0 0.0
        %1592 = vmatprep.subr.mxu0 0.0
        %1593 = vmatpush1.msra.mxu0 0.0
        %1594 = vmatprep.subr.mxu0 0.0
        %1595 = vmatpush1.msra.mxu0 0.0
        %1596 = vmatprep.subr.mxu0 0.0
        %1597 = vmatpush1.msra.mxu0 0.0
        %1598 = vmatprep.subr.mxu0 0.0
        %1599 = vmatpush1.msra.mxu0 0.0
        %1600 = vmatprep.subr.mxu0 0.0
        %1601 = vmatpush1.msra.mxu0 0.0
        %1602 = vmatprep.subr.mxu0 0.0
        %1603 = vmatpush1.msra.mxu0 0.0
        %1604 = vmatprep.subr.mxu0 0.0
        %1605 = vmatpush1.msra.mxu0 0.0
        %1606 = vmatprep.subr.mxu0 0.0
        %1607 = vmatpush1.msra.mxu0 0.0
        %1608 = vmatprep.subr.mxu0 0.0
        %1609 = vmatpush1.msra.mxu0 0.0
        %1610 = vmatprep.subr.mxu0 0.0
        %1611 = vmatpush1.msra.mxu0 0.0
        %1612 = vmatprep.subr.mxu0 0.0
        %1613 = vmatpush1.msra.mxu0 0.0
        %1614 = vmatprep.subr.mxu0 0.0
        %1615 = vmatpush1.msra.mxu0 0.0
        %1616 = vmatprep.subr.mxu0 0.0
        %1617 = vmatpush1.msra.mxu0 0.0
        %1618 = vmatprep.mubr.f32.mxu0 0.0
        %1619 = vmatmul.mubr.f32.gmra.mrb[0].mxu0 %v1552
        %v1620 = vpop.f32.mrb[0].mxu0
        %v1621 = vadd.f32 0.0, %v1620
        %v1622 = vpop.f32.mrb[0].mxu0
        %1623 = vdwg.mxu0
        %v1625 = vsel %vm1056, %v1404, 0
        %1627 = vmatprep.subr.mxu0 0.0
        %1628 = vmatpush1.msra.mxu0 %v1055
        %1629 = vmatprep.subr.mxu0 0.0
        %1630 = vmatpush1.msra.mxu0 0.0
        %1631 = vmatprep.subr.mxu0 0.0
        %1632 = vmatpush1.msra.mxu0 0.0
        %1633 = vmatprep.subr.mxu0 0.0
        %1634 = vmatpush1.msra.mxu0 0.0
        %1635 = vmatprep.subr.mxu0 0.0
        %1636 = vmatpush1.msra.mxu0 0.0
        %1637 = vmatprep.subr.mxu0 0.0
        %1638 = vmatpush1.msra.mxu0 0.0
        %1639 = vmatprep.subr.mxu0 0.0
        %1640 = vmatpush1.msra.mxu0 0.0
        %1641 = vmatprep.subr.mxu0 0.0
        %1642 = vmatpush1.msra.mxu0 0.0
        %1643 = vmatprep.subr.mxu0 0.0
        %1644 = vmatpush1.msra.mxu0 0.0
        %1645 = vmatprep.subr.mxu0 0.0
        %1646 = vmatpush1.msra.mxu0 0.0
        %1647 = vmatprep.subr.mxu0 0.0
        %1648 = vmatpush1.msra.mxu0 0.0
        %1649 = vmatprep.subr.mxu0 0.0
        %1650 = vmatpush1.msra.mxu0 0.0
        %1651 = vmatprep.subr.mxu0 0.0
        %1652 = vmatpush1.msra.mxu0 0.0
        %1653 = vmatprep.subr.mxu0 0.0
        %1654 = vmatpush1.msra.mxu0 0.0
        %1655 = vmatprep.subr.mxu0 0.0
        %1656 = vmatpush1.msra.mxu0 0.0
        %1657 = vmatprep.subr.mxu0 0.0
        %1658 = vmatpush1.msra.mxu0 0.0
        %1659 = vmatprep.subr.mxu0 0.0
        %1660 = vmatpush1.msra.mxu0 0.0
        %1661 = vmatprep.subr.mxu0 0.0
        %1662 = vmatpush1.msra.mxu0 0.0
        %1663 = vmatprep.subr.mxu0 0.0
        %1664 = vmatpush1.msra.mxu0 0.0
        %1665 = vmatprep.subr.mxu0 0.0
        %1666 = vmatpush1.msra.mxu0 0.0
        %1667 = vmatprep.subr.mxu0 0.0
        %1668 = vmatpush1.msra.mxu0 0.0
        %1669 = vmatprep.subr.mxu0 0.0
        %1670 = vmatpush1.msra.mxu0 0.0
        %1671 = vmatprep.subr.mxu0 0.0
        %1672 = vmatpush1.msra.mxu0 0.0
        %1673 = vmatprep.subr.mxu0 0.0
        %1674 = vmatpush1.msra.mxu0 0.0
        %1675 = vmatprep.subr.mxu0 0.0
        %1676 = vmatpush1.msra.mxu0 0.0
        %1677 = vmatprep.subr.mxu0 0.0
        %1678 = vmatpush1.msra.mxu0 0.0
        %1679 = vmatprep.subr.mxu0 0.0
        %1680 = vmatpush1.msra.mxu0 0.0
        %1681 = vmatprep.subr.mxu0 0.0
        %1682 = vmatpush1.msra.mxu0 0.0
        %1683 = vmatprep.subr.mxu0 0.0
        %1684 = vmatpush1.msra.mxu0 0.0
        %1685 = vmatprep.subr.mxu0 0.0
        %1686 = vmatpush1.msra.mxu0 0.0
        %1687 = vmatprep.subr.mxu0 0.0
        %1688 = vmatpush1.msra.mxu0 0.0
        %1689 = vmatprep.subr.mxu0 0.0
        %1690 = vmatpush1.msra.mxu0 0.0
        %1691 = vmatprep.mubr.f32.mxu0 0.0
        %1692 = vmatmul.mubr.f32.gmra.mrb[0].mxu0 %v1625
        %v1693 = vpop.f32.mrb[0].mxu0
        %v1694 = vadd.f32 0.0, %v1693
        %v1695 = vpop.f32.mrb[0].mxu0
        %1696 = vdwg.mxu0
        %v1697 = vcombine.low %v1475, %v1621
        %v1698 = vcombine.high %v1475, %v1621
        %v1700 = vunpack.c.l.s4 1983009808
        %v1701 = vunpack.c.0.s8 %v1700
        %v1702 = vlaneseq
        %v1703 = vshrl.u32 %v1702, 7
        %v1704 = vsub.s32 %v1701, %v1703
        %v1705 = vrot.slane %v1697, %v1704
        %v1707 = vunpack.c.l.s4 1983009808
        %v1708 = vunpack.c.0.s8 %v1707
        %v1709 = vlaneseq
        %v1710 = vshrl.u32 %v1709, 7
        %v1711 = vsub.s32 %v1708, %v1710
        %v1712 = vrot.slane %v1698, %v1711
        %v1713 = vcombine.low %v1548, %v1694
        %v1714 = vcombine.high %v1548, %v1694
        %v1716 = vunpack.c.l.s4 1983009808
        %v1717 = vunpack.c.0.s8 %v1716
        %v1718 = vlaneseq
        %v1719 = vshrl.u32 %v1718, 7
        %v1720 = vsub.s32 %v1717, %v1719
        %v1721 = vrot.slane %v1713, %v1720
        %v1723 = vunpack.c.l.s4 1983009808
        %v1724 = vunpack.c.0.s8 %v1723
        %v1725 = vlaneseq
        %v1726 = vshrl.u32 %v1725, 7
        %v1727 = vsub.s32 %v1724, %v1726
        %v1728 = vrot.slane %v1714, %v1727
        %v1729 = vcombine.low %v1705, %v1721
        %v1730 = vcombine.high %v1705, %v1721
        %v1732 = vunpack.c.l.s4 1934713408
        %v1733 = vunpack.c.0.s8 %v1732
        %v1734 = vlaneseq
        %v1735 = vshrl.u32 %v1734, 7
        %v1736 = vsub.s32 %v1733, %v1735
        %v1737 = vrot.slane %v1729, %v1736
        %v1739 = vunpack.c.l.s4 1934713408
        %v1740 = vunpack.c.0.s8 %v1739
        %v1741 = vlaneseq
        %v1742 = vshrl.u32 %v1741, 7
        %v1743 = vsub.s32 %v1740, %v1742
        %v1744 = vrot.slane %v1730, %v1743
        %v1745 = vcombine.low %v1712, %v1728
        %v1746 = vcombine.high %v1712, %v1728
        %v1748 = vunpack.c.l.s4 1934713408
        %v1749 = vunpack.c.0.s8 %v1748
        %v1750 = vlaneseq
        %v1751 = vshrl.u32 %v1750, 7
        %v1752 = vsub.s32 %v1749, %v1751
        %v1753 = vrot.slane %v1745, %v1752
        %v1755 = vunpack.c.l.s4 1934713408
        %v1756 = vunpack.c.0.s8 %v1755
        %v1757 = vlaneseq
        %v1758 = vshrl.u32 %v1757, 7
        %v1759 = vsub.s32 %v1756, %v1758
        %v1760 = vrot.slane %v1746, %v1759
        %v1761 = vcombine.high %v1737, 0.0
        %v1762 = vcombine.high %v1744, 0.0
        %v1763 = vcombine.high %v1753, 0.0
        %v1764 = vcombine.high %v1760, 0.0
        %v1765 = vcombine.low %v1737, %v1744
        %v1767 = vunpack.c.l.s4 1983009808
        %v1768 = vunpack.c.0.s8 %v1767
        %v1769 = vlaneseq
        %v1770 = vshrl.u32 %v1769, 7
        %v1771 = vsub.s32 %v1768, %v1770
        %v1772 = vrot.slane %v1765, %v1771
        %v1773 = vcombine.low %v1761, %v1762
        %v1775 = vunpack.c.l.s4 1983009808
        %v1776 = vunpack.c.0.s8 %v1775
        %v1777 = vlaneseq
        %v1778 = vshrl.u32 %v1777, 7
        %v1779 = vsub.s32 %v1776, %v1778
        %v1780 = vrot.slane %v1773, %v1779
        %v1781 = vcombine.low %v1753, %v1760
        %v1783 = vunpack.c.l.s4 1983009808
        %v1784 = vunpack.c.0.s8 %v1783
        %v1785 = vlaneseq
        %v1786 = vshrl.u32 %v1785, 7
        %v1787 = vsub.s32 %v1784, %v1786
        %v1788 = vrot.slane %v1781, %v1787
        %v1789 = vcombine.low %v1763, %v1764
        %v1791 = vunpack.c.l.s4 1983009808
        %v1792 = vunpack.c.0.s8 %v1791
        %v1793 = vlaneseq
        %v1794 = vshrl.u32 %v1793, 7
        %v1795 = vsub.s32 %v1792, %v1794
        %v1796 = vrot.slane %v1789, %v1795
        %v1797 = vcombine.low %v1772, %v1780
        %v1798 = vcombine.high %v1772, %v1780
        %v1800 = vunpack.c.l.s4 1934713408
        %v1801 = vunpack.c.0.s8 %v1800
        %v1802 = vlaneseq
        %v1803 = vshrl.u32 %v1802, 7
        %v1804 = vsub.s32 %v1801, %v1803
        %v1805 = vrot.slane %v1797, %v1804
        %v1807 = vunpack.c.l.s4 1934713408
        %v1808 = vunpack.c.0.s8 %v1807
        %v1809 = vlaneseq
        %v1810 = vshrl.u32 %v1809, 7
        %v1811 = vsub.s32 %v1808, %v1810
        %v1812 = vrot.slane %v1798, %v1811
        %v1813 = vcombine.low %v1788, %v1796
        %v1814 = vcombine.high %v1788, %v1796
        %v1816 = vunpack.c.l.s4 1934713408
        %v1817 = vunpack.c.0.s8 %v1816
        %v1818 = vlaneseq
        %v1819 = vshrl.u32 %v1818, 7
        %v1820 = vsub.s32 %v1817, %v1819
        %v1821 = vrot.slane %v1813, %v1820
        %v1823 = vunpack.c.l.s4 1934713408
        %v1824 = vunpack.c.0.s8 %v1823
        %v1825 = vlaneseq
        %v1826 = vshrl.u32 %v1825, 7
        %v1827 = vsub.s32 %v1824, %v1826
        %v1828 = vrot.slane %v1814, %v1827
        %v1829 = vcombine.low %v1805, %v1821
        %v1830 = vcombine.high %v1805, %v1821
        %v1831 = vcombine.low %v1812, %v1828
        %v1832 = vcombine.high %v1812, %v1828
        %1834 = vrot.lane.b32.xlu0 %v1830, 8
        %v1835 = vpop.permute.xlu0 %1834
        %1838 = vrot.lane.b32.xlu0 %v1831, 16
        %v1839 = vpop.permute.xlu0 %1838
        %1842 = vrot.lane.b32.xlu0 %v1832, 24
        %v1843 = vpop.permute.xlu0 %1842
        %v1845 = vsel %vm1056, %v1829, %v1835
        %vm1846 = vcmask 130048
        %v1847 = vsel %vm1846, %v1845, %v1839
        %vm1848 = vcmask 195584
        %v1849 = vsel %vm1848, %v1847, %v1843
        %s1850 = scalar_lea.vmem %s5, 32
        %v1851 = vld [vmem:[%s1850] sm:$0xff]
        %v1852 = vld [vmem:[%s1850 + $0x8] sm:$0xff]
        %v1853 = vld [vmem:[%s1850 + $0x10] sm:$0xff]
        %v1854 = vld [vmem:[%s1850 + $0x18] sm:$0xff]
        %v1855 = vlaneseq
        %v1856 = vshrl.u32 %v1855, 7
        %v1857 = vsub.s32 3, %v1856
        %v1858 = vrot.slane %v433, %v1857
        %v1860 = vsel %vm440, %v1849, 0
        %1862 = vmatprep.subr.mxu0 0.0
        %1863 = vmatpush1.msra.mxu0 %v1851
        %1864 = vmatprep.subr.mxu0 0.0
        %1865 = vmatpush1.msra.mxu0 %v1852
        %1866 = vmatprep.subr.mxu0 0.0
        %1867 = vmatpush1.msra.mxu0 %v1853
        %1868 = vmatprep.subr.mxu0 0.0
        %1869 = vmatpush1.msra.mxu0 %v1854
        %1870 = vmatprep.subr.mxu0 0.0
        %1871 = vmatpush1.msra.mxu0 0.0
        %1872 = vmatprep.subr.mxu0 0.0
        %1873 = vmatpush1.msra.mxu0 0.0
        %1874 = vmatprep.subr.mxu0 0.0
        %1875 = vmatpush1.msra.mxu0 0.0
        %1876 = vmatprep.subr.mxu0 0.0
        %1877 = vmatpush1.msra.mxu0 0.0
        %1878 = vmatprep.subr.mxu0 0.0
        %1879 = vmatpush1.msra.mxu0 0.0
        %1880 = vmatprep.subr.mxu0 0.0
        %1881 = vmatpush1.msra.mxu0 0.0
        %1882 = vmatprep.subr.mxu0 0.0
        %1883 = vmatpush1.msra.mxu0 0.0
        %1884 = vmatprep.subr.mxu0 0.0
        %1885 = vmatpush1.msra.mxu0 0.0
        %1886 = vmatprep.subr.mxu0 0.0
        %1887 = vmatpush1.msra.mxu0 0.0
        %1888 = vmatprep.subr.mxu0 0.0
        %1889 = vmatpush1.msra.mxu0 0.0
        %1890 = vmatprep.subr.mxu0 0.0
        %1891 = vmatpush1.msra.mxu0 0.0
        %1892 = vmatprep.subr.mxu0 0.0
        %1893 = vmatpush1.msra.mxu0 0.0
        %1894 = vmatprep.subr.mxu0 0.0
        %1895 = vmatpush1.msra.mxu0 0.0
        %1896 = vmatprep.subr.mxu0 0.0
        %1897 = vmatpush1.msra.mxu0 0.0
        %1898 = vmatprep.subr.mxu0 0.0
        %1899 = vmatpush1.msra.mxu0 0.0
        %1900 = vmatprep.subr.mxu0 0.0
        %1901 = vmatpush1.msra.mxu0 0.0
        %1902 = vmatprep.subr.mxu0 0.0
        %1903 = vmatpush1.msra.mxu0 0.0
        %1904 = vmatprep.subr.mxu0 0.0
        %1905 = vmatpush1.msra.mxu0 0.0
        %1906 = vmatprep.subr.mxu0 0.0
        %1907 = vmatpush1.msra.mxu0 0.0
        %1908 = vmatprep.subr.mxu0 0.0
        %1909 = vmatpush1.msra.mxu0 0.0
        %1910 = vmatprep.subr.mxu0 0.0
        %1911 = vmatpush1.msra.mxu0 0.0
        %1912 = vmatprep.subr.mxu0 0.0
        %1913 = vmatpush1.msra.mxu0 0.0
        %1914 = vmatprep.subr.mxu0 0.0
        %1915 = vmatpush1.msra.mxu0 0.0
        %1916 = vmatprep.subr.mxu0 0.0
        %1917 = vmatpush1.msra.mxu0 0.0
        %1918 = vmatprep.subr.mxu0 0.0
        %1919 = vmatpush1.msra.mxu0 0.0
        %1920 = vmatprep.subr.mxu0 0.0
        %1921 = vmatpush1.msra.mxu0 0.0
        %1922 = vmatprep.subr.mxu0 0.0
        %1923 = vmatpush1.msra.mxu0 0.0
        %1924 = vmatprep.subr.mxu0 0.0
        %1925 = vmatpush1.msra.mxu0 0.0
        %1926 = vmatprep.mubr.f32.mxu0 0.0
        %1927 = vmatmul.mubr.f32.gmra.mrb[0].mxu0 %v1860
        %v1928 = vpop.f32.mrb[0].mxu0
        %v1929 = vadd.f32 %v1858, %v1928
        %v1930 = vpop.f32.mrb[0].mxu0
        %1931 = vdwg.mxu0
        %v1932 = vadd.f32 %v427, %v1929
        %v1933 = vsel %vm440, %v1932, 0.0
        %1934 = vadd.xlane.f32.xlu0 %v1933
        %v1935 = vpop.xlane.xlu0 %1934
        %v1936 = vrcp.pop 32.0
        %v1937 = vmul.f32 %v1935, %v1936
        %v1938 = vsub.f32 %v1932, %v1937
        %v1939 = vmul.f32 %v1938, %v1938
        %v1940 = vsel %vm440, %v1939, 0.0
        %1941 = vadd.xlane.f32.xlu0 %v1940
        %v1942 = vpop.xlane.xlu0 %1941
        %v1943 = vmul.f32 %v1942, %v1936
        %v1944 = vadd.f32 %v1943, 1e-05
        %v1945 = vrsqrt.pop %v1944
        %v1946 = vmul.f32 %v1938, %v1945
        %v1947 = vlaneseq
        %v1948 = vshrl.u32 %v1947, 7
        %v1949 = vsub.s32 0, %v1948
        %v1950 = vrot.slane %v434, %v1949
        %v1951 = vmul.f32 %v1946, %v1950
        %v1952 = vlaneseq
        %v1953 = vshrl.u32 %v1952, 7
        %v1954 = vsub.s32 1, %v1953
        %v1955 = vrot.slane %v434, %v1954
        %v1956 = vadd.f32 %v1951, %v1955
        %v1957 = vadd.f32 %v1956, %v430
        %s1958 = scalar_lea.vmem %s5, 64
        %v1959 = vld [vmem:[%s1958] sm:$0xff]
        %v1960 = vld [vmem:[%s1958 + $0x8] sm:$0xff]
        %v1961 = vld [vmem:[%s1958 + $0x10] sm:$0xff]
        %v1962 = vld [vmem:[%s1958 + $0x18] sm:$0xff]
        %v1963 = vlaneseq
        %v1964 = vshrl.u32 %v1963, 7
        %v1965 = vsub.s32 4, %v1964
        %v1966 = vrot.slane %v433, %v1965
        %v1968 = vsel %vm440, %v1957, 0
        %1970 = vmatprep.subr.mxu0 0.0
        %1971 = vmatpush1.msra.mxu0 %v1959
        %1972 = vmatprep.subr.mxu0 0.0
        %1973 = vmatpush1.msra.mxu0 %v1960
        %1974 = vmatprep.subr.mxu0 0.0
        %1975 = vmatpush1.msra.mxu0 %v1961
        %1976 = vmatprep.subr.mxu0 0.0
        %1977 = vmatpush1.msra.mxu0 %v1962
        %1978 = vmatprep.subr.mxu0 0.0
        %1979 = vmatpush1.msra.mxu0 0.0
        %1980 = vmatprep.subr.mxu0 0.0
        %1981 = vmatpush1.msra.mxu0 0.0
        %1982 = vmatprep.subr.mxu0 0.0
        %1983 = vmatpush1.msra.mxu0 0.0
        %1984 = vmatprep.subr.mxu0 0.0
        %1985 = vmatpush1.msra.mxu0 0.0
        %1986 = vmatprep.subr.mxu0 0.0
        %1987 = vmatpush1.msra.mxu0 0.0
        %1988 = vmatprep.subr.mxu0 0.0
        %1989 = vmatpush1.msra.mxu0 0.0
        %1990 = vmatprep.subr.mxu0 0.0
        %1991 = vmatpush1.msra.mxu0 0.0
        %1992 = vmatprep.subr.mxu0 0.0
        %1993 = vmatpush1.msra.mxu0 0.0
        %1994 = vmatprep.subr.mxu0 0.0
        %1995 = vmatpush1.msra.mxu0 0.0
        %1996 = vmatprep.subr.mxu0 0.0
        %1997 = vmatpush1.msra.mxu0 0.0
        %1998 = vmatprep.subr.mxu0 0.0
        %1999 = vmatpush1.msra.mxu0 0.0
        %2000 = vmatprep.subr.mxu0 0.0
        %2001 = vmatpush1.msra.mxu0 0.0
        %2002 = vmatprep.subr.mxu0 0.0
        %2003 = vmatpush1.msra.mxu0 0.0
        %2004 = vmatprep.subr.mxu0 0.0
        %2005 = vmatpush1.msra.mxu0 0.0
        %2006 = vmatprep.subr.mxu0 0.0
        %2007 = vmatpush1.msra.mxu0 0.0
        %2008 = vmatprep.subr.mxu0 0.0
        %2009 = vmatpush1.msra.mxu0 0.0
        %2010 = vmatprep.subr.mxu0 0.0
        %2011 = vmatpush1.msra.mxu0 0.0
        %2012 = vmatprep.subr.mxu0 0.0
        %2013 = vmatpush1.msra.mxu0 0.0
        %2014 = vmatprep.subr.mxu0 0.0
        %2015 = vmatpush1.msra.mxu0 0.0
        %2016 = vmatprep.subr.mxu0 0.0
        %2017 = vmatpush1.msra.mxu0 0.0
        %2018 = vmatprep.subr.mxu0 0.0
        %2019 = vmatpush1.msra.mxu0 0.0
        %2020 = vmatprep.subr.mxu0 0.0
        %2021 = vmatpush1.msra.mxu0 0.0
        %2022 = vmatprep.subr.mxu0 0.0
        %2023 = vmatpush1.msra.mxu0 0.0
        %2024 = vmatprep.subr.mxu0 0.0
        %2025 = vmatpush1.msra.mxu0 0.0
        %2026 = vmatprep.subr.mxu0 0.0
        %2027 = vmatpush1.msra.mxu0 0.0
        %2028 = vmatprep.subr.mxu0 0.0
        %2029 = vmatpush1.msra.mxu0 0.0
        %2030 = vmatprep.subr.mxu0 0.0
        %2031 = vmatpush1.msra.mxu0 0.0
        %2032 = vmatprep.subr.mxu0 0.0
        %2033 = vmatpush1.msra.mxu0 0.0
        %2034 = vmatprep.mubr.f32.mxu0 0.0
        %2035 = vmatmul.mubr.f32.gmra.mrb[0].mxu0 %v1968
        %v2036 = vpop.f32.mrb[0].mxu0
        %v2037 = vadd.f32 %v1966, %v2036
        %v2038 = vpop.f32.mrb[0].mxu0
        %2039 = vdwg.mxu0
        %v2040 = vadd.f32 %v428, %v431
        %v2041 = vadd.f32 %v429, %v432
        %s2042 = scalar_lea.vmem %s5, 96
        %v2043 = vld [vmem:[%s2042] sm:$0xff]
        %v2044 = vld [vmem:[%s2042 + $0x8] sm:$0xff]
        %v2045 = vld [vmem:[%s2042 + $0x10] sm:$0xff]
        %v2046 = vld [vmem:[%s2042 + $0x18] sm:$0xff]
        %v2047 = vlaneseq
        %v2048 = vshrl.u32 %v2047, 7
        %v2049 = vsub.s32 5, %v2048
        %v2050 = vrot.slane %v433, %v2049
        %v2052 = vsel %vm440, %v2040, 0
        %v2055 = vsel %vm440, %v2041, 0
        %2057 = vmatprep.subr.mxu0 0.0
        %2058 = vmatpush1.msra.mxu0 %v2043
        %2059 = vmatprep.subr.mxu0 0.0
        %2060 = vmatpush1.msra.mxu0 %v2044
        %2061 = vmatprep.subr.mxu0 0.0
        %2062 = vmatpush1.msra.mxu0 %v2045
        %2063 = vmatprep.subr.mxu0 0.0
        %2064 = vmatpush1.msra.mxu0 %v2046
        %2065 = vmatprep.subr.mxu0 0.0
        %2066 = vmatpush1.msra.mxu0 0.0
        %2067 = vmatprep.subr.mxu0 0.0
        %2068 = vmatpush1.msra.mxu0 0.0
        %2069 = vmatprep.subr.mxu0 0.0
        %2070 = vmatpush1.msra.mxu0 0.0
        %2071 = vmatprep.subr.mxu0 0.0
        %2072 = vmatpush1.msra.mxu0 0.0
        %2073 = vmatprep.subr.mxu0 0.0
        %2074 = vmatpush1.msra.mxu0 0.0
        %2075 = vmatprep.subr.mxu0 0.0
        %2076 = vmatpush1.msra.mxu0 0.0
        %2077 = vmatprep.subr.mxu0 0.0
        %2078 = vmatpush1.msra.mxu0 0.0
        %2079 = vmatprep.subr.mxu0 0.0
        %2080 = vmatpush1.msra.mxu0 0.0
        %2081 = vmatprep.subr.mxu0 0.0
        %2082 = vmatpush1.msra.mxu0 0.0
        %2083 = vmatprep.subr.mxu0 0.0
        %2084 = vmatpush1.msra.mxu0 0.0
        %2085 = vmatprep.subr.mxu0 0.0
        %2086 = vmatpush1.msra.mxu0 0.0
        %2087 = vmatprep.subr.mxu0 0.0
        %2088 = vmatpush1.msra.mxu0 0.0
        %2089 = vmatprep.subr.mxu0 0.0
        %2090 = vmatpush1.msra.mxu0 0.0
        %2091 = vmatprep.subr.mxu0 0.0
        %2092 = vmatpush1.msra.mxu0 0.0
        %2093 = vmatprep.subr.mxu0 0.0
        %2094 = vmatpush1.msra.mxu0 0.0
        %2095 = vmatprep.subr.mxu0 0.0
        %2096 = vmatpush1.msra.mxu0 0.0
        %2097 = vmatprep.subr.mxu0 0.0
        %2098 = vmatpush1.msra.mxu0 0.0
        %2099 = vmatprep.subr.mxu0 0.0
        %2100 = vmatpush1.msra.mxu0 0.0
        %2101 = vmatprep.subr.mxu0 0.0
        %2102 = vmatpush1.msra.mxu0 0.0
        %2103 = vmatprep.subr.mxu0 0.0
        %2104 = vmatpush1.msra.mxu0 0.0
        %2105 = vmatprep.subr.mxu0 0.0
        %2106 = vmatpush1.msra.mxu0 0.0
        %2107 = vmatprep.subr.mxu0 0.0
        %2108 = vmatpush1.msra.mxu0 0.0
        %2109 = vmatprep.subr.mxu0 0.0
        %2110 = vmatpush1.msra.mxu0 0.0
        %2111 = vmatprep.subr.mxu0 0.0
        %2112 = vmatpush1.msra.mxu0 0.0
        %2113 = vmatprep.subr.mxu0 0.0
        %2114 = vmatpush1.msra.mxu0 0.0
        %2115 = vmatprep.subr.mxu0 0.0
        %2116 = vmatpush1.msra.mxu0 0.0
        %2117 = vmatprep.subr.mxu0 0.0
        %2118 = vmatpush1.msra.mxu0 0.0
        %2119 = vmatprep.subr.mxu0 0.0
        %2120 = vmatpush1.msra.mxu0 0.0
        %2121 = vmatprep.mubr.f32.mxu0 0.0
        %2122 = vmatmul.mubr.f32.gmra.mrb[0].mxu0 %v2052
        %v2123 = vpop.f32.mrb[0].mxu0
        %v2124 = vadd.f32 %v2050, %v2123
        %v2125 = vpop.f32.mrb[0].mxu0
        %2126 = vmatprep.mubr.f32.mxu0 0.0
        %2127 = vmatmul.mubr.f32.gmra.mrb[0].mxu0 %v2055
        %v2128 = vpop.f32.mrb[0].mxu0
        %v2129 = vadd.f32 %v2050, %v2128
        %v2130 = vpop.f32.mrb[0].mxu0
        %2131 = vdwg.mxu0
        %s2132 = scalar_lea.vmem %s5, 128
        %v2133 = vld [vmem:[%s2132] sm:$0xff]
        %v2134 = vld [vmem:[%s2132 + $0x8] sm:$0xff]
        %v2135 = vld [vmem:[%s2132 + $0x10] sm:$0xff]
        %v2136 = vld [vmem:[%s2132 + $0x18] sm:$0xff]
        %v2137 = vlaneseq
        %v2138 = vshrl.u32 %v2137, 7
        %v2139 = vsub.s32 6, %v2138
        %v2140 = vrot.slane %v433, %v2139
        %v2142 = vsel %vm440, %v428, 0
        %v2145 = vsel %vm440, %v429, 0
        %2147 = vmatprep.subr.mxu0 0.0
        %2148 = vmatpush1.msra.mxu0 %v2133
        %2149 = vmatprep.subr.mxu0 0.0
        %2150 = vmatpush1.msra.mxu0 %v2134
        %2151 = vmatprep.subr.mxu0 0.0
        %2152 = vmatpush1.msra.mxu0 %v2135
        %2153 = vmatprep.subr.mxu0 0.0
        %2154 = vmatpush1.msra.mxu0 %v2136
        %2155 = vmatprep.subr.mxu0 0.0
        %2156 = vmatpush1.msra.mxu0 0.0
        %2157 = vmatprep.subr.mxu0 0.0
        %2158 = vmatpush1.msra.mxu0 0.0
        %2159 = vmatprep.subr.mxu0 0.0
        %2160 = vmatpush1.msra.mxu0 0.0
        %2161 = vmatprep.subr.mxu0 0.0
        %2162 = vmatpush1.msra.mxu0 0.0
        %2163 = vmatprep.subr.mxu0 0.0
        %2164 = vmatpush1.msra.mxu0 0.0
        %2165 = vmatprep.subr.mxu0 0.0
        %2166 = vmatpush1.msra.mxu0 0.0
        %2167 = vmatprep.subr.mxu0 0.0
        %2168 = vmatpush1.msra.mxu0 0.0
        %2169 = vmatprep.subr.mxu0 0.0
        %2170 = vmatpush1.msra.mxu0 0.0
        %2171 = vmatprep.subr.mxu0 0.0
        %2172 = vmatpush1.msra.mxu0 0.0
        %2173 = vmatprep.subr.mxu0 0.0
        %2174 = vmatpush1.msra.mxu0 0.0
        %2175 = vmatprep.subr.mxu0 0.0
        %2176 = vmatpush1.msra.mxu0 0.0
        %2177 = vmatprep.subr.mxu0 0.0
        %2178 = vmatpush1.msra.mxu0 0.0
        %2179 = vmatprep.subr.mxu0 0.0
        %2180 = vmatpush1.msra.mxu0 0.0
        %2181 = vmatprep.subr.mxu0 0.0
        %2182 = vmatpush1.msra.mxu0 0.0
        %2183 = vmatprep.subr.mxu0 0.0
        %2184 = vmatpush1.msra.mxu0 0.0
        %2185 = vmatprep.subr.mxu0 0.0
        %2186 = vmatpush1.msra.mxu0 0.0
        %2187 = vmatprep.subr.mxu0 0.0
        %2188 = vmatpush1.msra.mxu0 0.0
        %2189 = vmatprep.subr.mxu0 0.0
        %2190 = vmatpush1.msra.mxu0 0.0
        %2191 = vmatprep.subr.mxu0 0.0
        %2192 = vmatpush1.msra.mxu0 0.0
        %2193 = vmatprep.subr.mxu0 0.0
        %2194 = vmatpush1.msra.mxu0 0.0
        %2195 = vmatprep.subr.mxu0 0.0
        %2196 = vmatpush1.msra.mxu0 0.0
        %2197 = vmatprep.subr.mxu0 0.0
        %2198 = vmatpush1.msra.mxu0 0.0
        %2199 = vmatprep.subr.mxu0 0.0
        %2200 = vmatpush1.msra.mxu0 0.0
        %2201 = vmatprep.subr.mxu0 0.0
        %2202 = vmatpush1.msra.mxu0 0.0
        %2203 = vmatprep.subr.mxu0 0.0
        %2204 = vmatpush1.msra.mxu0 0.0
        %2205 = vmatprep.subr.mxu0 0.0
        %2206 = vmatpush1.msra.mxu0 0.0
        %2207 = vmatprep.subr.mxu0 0.0
        %2208 = vmatpush1.msra.mxu0 0.0
        %2209 = vmatprep.subr.mxu0 0.0
        %2210 = vmatpush1.msra.mxu0 0.0
        %2211 = vmatprep.mubr.f32.mxu0 0.0
        %2212 = vmatmul.mubr.f32.gmra.mrb[0].mxu0 %v2142
        %v2213 = vpop.f32.mrb[0].mxu0
        %v2214 = vadd.f32 %v2140, %v2213
        %v2215 = vpop.f32.mrb[0].mxu0
        %2216 = vmatprep.mubr.f32.mxu0 0.0
        %2217 = vmatmul.mubr.f32.gmra.mrb[0].mxu0 %v2145
        %v2218 = vpop.f32.mrb[0].mxu0
        %v2219 = vadd.f32 %v2140, %v2218
        %v2220 = vpop.f32.mrb[0].mxu0
        %2221 = vdwg.mxu0
        %2223 = vrot.lane.b32.xlu0 %v2037, 120
        %v2224 = vpop.permute.xlu0 %2223
        %2226 = vrot.lane.b32.xlu0 %v2037, 112
        %v2227 = vpop.permute.xlu0 %2226
        %2229 = vrot.lane.b32.xlu0 %v2037, 104
        %v2230 = vpop.permute.xlu0 %2229
        %v2232 = vcombine.low %v2037, %v2227
        %v2233 = vcombine.high %v2037, %v2227
        %v2235 = vunpack.c.l.s4 1983009808
        %v2236 = vunpack.c.0.s8 %v2235
        %v2237 = vlaneseq
        %v2238 = vshrl.u32 %v2237, 7
        %v2239 = vsub.s32 %v2236, %v2238
        %v2240 = vrot.slane %v2232, %v2239
        %v2242 = vunpack.c.l.s4 1983009808
        %v2243 = vunpack.c.0.s8 %v2242
        %v2244 = vlaneseq
        %v2245 = vshrl.u32 %v2244, 7
        %v2246 = vsub.s32 %v2243, %v2245
        %v2247 = vrot.slane %v2233, %v2246
        %v2248 = vcombine.low %v2224, %v2230
        %v2249 = vcombine.high %v2224, %v2230
        %v2251 = vunpack.c.l.s4 1983009808
        %v2252 = vunpack.c.0.s8 %v2251
        %v2253 = vlaneseq
        %v2254 = vshrl.u32 %v2253, 7
        %v2255 = vsub.s32 %v2252, %v2254
        %v2256 = vrot.slane %v2248, %v2255
        %v2258 = vunpack.c.l.s4 1983009808
        %v2259 = vunpack.c.0.s8 %v2258
        %v2260 = vlaneseq
        %v2261 = vshrl.u32 %v2260, 7
        %v2262 = vsub.s32 %v2259, %v2261
        %v2263 = vrot.slane %v2249, %v2262
        %v2264 = vcombine.low %v2240, %v2256
        %v2265 = vcombine.high %v2240, %v2256
        %v2267 = vunpack.c.l.s4 1934713408
        %v2268 = vunpack.c.0.s8 %v2267
        %v2269 = vlaneseq
        %v2270 = vshrl.u32 %v2269, 7
        %v2271 = vsub.s32 %v2268, %v2270
        %v2272 = vrot.slane %v2264, %v2271
        %v2274 = vunpack.c.l.s4 1934713408
        %v2275 = vunpack.c.0.s8 %v2274
        %v2276 = vlaneseq
        %v2277 = vshrl.u32 %v2276, 7
        %v2278 = vsub.s32 %v2275, %v2277
        %v2279 = vrot.slane %v2265, %v2278
        %v2280 = vcombine.low %v2247, %v2263
        %v2281 = vcombine.high %v2247, %v2263
        %v2283 = vunpack.c.l.s4 1934713408
        %v2284 = vunpack.c.0.s8 %v2283
        %v2285 = vlaneseq
        %v2286 = vshrl.u32 %v2285, 7
        %v2287 = vsub.s32 %v2284, %v2286
        %v2288 = vrot.slane %v2280, %v2287
        %v2290 = vunpack.c.l.s4 1934713408
        %v2291 = vunpack.c.0.s8 %v2290
        %v2292 = vlaneseq
        %v2293 = vshrl.u32 %v2292, 7
        %v2294 = vsub.s32 %v2291, %v2293
        %v2295 = vrot.slane %v2281, %v2294
        %v2296 = vcombine.high %v2272, 0.0
        %v2297 = vcombine.high %v2279, 0.0
        %v2298 = vcombine.high %v2288, 0.0
        %v2299 = vcombine.high %v2295, 0.0
        %v2300 = vcombine.low %v2272, %v2279
        %v2302 = vunpack.c.l.s4 1983009808
        %v2303 = vunpack.c.0.s8 %v2302
        %v2304 = vlaneseq
        %v2305 = vshrl.u32 %v2304, 7
        %v2306 = vsub.s32 %v2303, %v2305
        %v2307 = vrot.slane %v2300, %v2306
        %v2308 = vcombine.low %v2296, %v2297
        %v2310 = vunpack.c.l.s4 1983009808
        %v2311 = vunpack.c.0.s8 %v2310
        %v2312 = vlaneseq
        %v2313 = vshrl.u32 %v2312, 7
        %v2314 = vsub.s32 %v2311, %v2313
        %v2315 = vrot.slane %v2308, %v2314
        %v2316 = vcombine.low %v2288, %v2295
        %v2318 = vunpack.c.l.s4 1983009808
        %v2319 = vunpack.c.0.s8 %v2318
        %v2320 = vlaneseq
        %v2321 = vshrl.u32 %v2320, 7
        %v2322 = vsub.s32 %v2319, %v2321
        %v2323 = vrot.slane %v2316, %v2322
        %v2324 = vcombine.low %v2298, %v2299
        %v2326 = vunpack.c.l.s4 1983009808
        %v2327 = vunpack.c.0.s8 %v2326
        %v2328 = vlaneseq
        %v2329 = vshrl.u32 %v2328, 7
        %v2330 = vsub.s32 %v2327, %v2329
        %v2331 = vrot.slane %v2324, %v2330
        %v2332 = vcombine.low %v2307, %v2315
        %v2333 = vcombine.high %v2307, %v2315
        %v2335 = vunpack.c.l.s4 1934713408
        %v2336 = vunpack.c.0.s8 %v2335
        %v2337 = vlaneseq
        %v2338 = vshrl.u32 %v2337, 7
        %v2339 = vsub.s32 %v2336, %v2338
        %v2340 = vrot.slane %v2332, %v2339
        %v2342 = vunpack.c.l.s4 1934713408
        %v2343 = vunpack.c.0.s8 %v2342
        %v2344 = vlaneseq
        %v2345 = vshrl.u32 %v2344, 7
        %v2346 = vsub.s32 %v2343, %v2345
        %v2347 = vrot.slane %v2333, %v2346
        %v2348 = vcombine.low %v2323, %v2331
        %v2349 = vcombine.high %v2323, %v2331
        %v2351 = vunpack.c.l.s4 1934713408
        %v2352 = vunpack.c.0.s8 %v2351
        %v2353 = vlaneseq
        %v2354 = vshrl.u32 %v2353, 7
        %v2355 = vsub.s32 %v2352, %v2354
        %v2356 = vrot.slane %v2348, %v2355
        %v2358 = vunpack.c.l.s4 1934713408
        %v2359 = vunpack.c.0.s8 %v2358
        %v2360 = vlaneseq
        %v2361 = vshrl.u32 %v2360, 7
        %v2362 = vsub.s32 %v2359, %v2361
        %v2363 = vrot.slane %v2349, %v2362
        %v2364 = vcombine.low %v2340, %v2356
        %v2365 = vcombine.high %v2340, %v2356
        %v2366 = vcombine.low %v2347, %v2363
        %v2367 = vcombine.high %v2347, %v2363
        %2370 = vrot.lane.b32.xlu0 %v2124, 120
        %v2371 = vpop.permute.xlu0 %2370
        %2372 = vrot.lane.b32.xlu0 %v2129, 120
        %v2373 = vpop.permute.xlu0 %2372
        %2376 = vrot.lane.b32.xlu0 %v2124, 112
        %v2377 = vpop.permute.xlu0 %2376
        %2378 = vrot.lane.b32.xlu0 %v2129, 112
        %v2379 = vpop.permute.xlu0 %2378
        %2382 = vrot.lane.b32.xlu0 %v2124, 104
        %v2383 = vpop.permute.xlu0 %2382
        %2384 = vrot.lane.b32.xlu0 %v2129, 104
        %v2385 = vpop.permute.xlu0 %2384
        %v2388 = vcombine.low %v2124, %v2377
        %v2389 = vcombine.high %v2124, %v2377
        %v2391 = vunpack.c.l.s4 1983009808
        %v2392 = vunpack.c.0.s8 %v2391
        %v2393 = vlaneseq
        %v2394 = vshrl.u32 %v2393, 7
        %v2395 = vsub.s32 %v2392, %v2394
        %v2396 = vrot.slane %v2388, %v2395
        %v2398 = vunpack.c.l.s4 1983009808
        %v2399 = vunpack.c.0.s8 %v2398
        %v2400 = vlaneseq
        %v2401 = vshrl.u32 %v2400, 7
        %v2402 = vsub.s32 %v2399, %v2401
        %v2403 = vrot.slane %v2389, %v2402
        %v2404 = vcombine.low %v2371, %v2383
        %v2405 = vcombine.high %v2371, %v2383
        %v2407 = vunpack.c.l.s4 1983009808
        %v2408 = vunpack.c.0.s8 %v2407
        %v2409 = vlaneseq
        %v2410 = vshrl.u32 %v2409, 7
        %v2411 = vsub.s32 %v2408, %v2410
        %v2412 = vrot.slane %v2404, %v2411
        %v2414 = vunpack.c.l.s4 1983009808
        %v2415 = vunpack.c.0.s8 %v2414
        %v2416 = vlaneseq
        %v2417 = vshrl.u32 %v2416, 7
        %v2418 = vsub.s32 %v2415, %v2417
        %v2419 = vrot.slane %v2405, %v2418
        %v2420 = vcombine.low %v2396, %v2412
        %v2421 = vcombine.high %v2396, %v2412
        %v2423 = vunpack.c.l.s4 1934713408
        %v2424 = vunpack.c.0.s8 %v2423
        %v2425 = vlaneseq
        %v2426 = vshrl.u32 %v2425, 7
        %v2427 = vsub.s32 %v2424, %v2426
        %v2428 = vrot.slane %v2420, %v2427
        %v2430 = vunpack.c.l.s4 1934713408
        %v2431 = vunpack.c.0.s8 %v2430
        %v2432 = vlaneseq
        %v2433 = vshrl.u32 %v2432, 7
        %v2434 = vsub.s32 %v2431, %v2433
        %v2435 = vrot.slane %v2421, %v2434
        %v2436 = vcombine.low %v2403, %v2419
        %v2437 = vcombine.high %v2403, %v2419
        %v2439 = vunpack.c.l.s4 1934713408
        %v2440 = vunpack.c.0.s8 %v2439
        %v2441 = vlaneseq
        %v2442 = vshrl.u32 %v2441, 7
        %v2443 = vsub.s32 %v2440, %v2442
        %v2444 = vrot.slane %v2436, %v2443
        %v2446 = vunpack.c.l.s4 1934713408
        %v2447 = vunpack.c.0.s8 %v2446
        %v2448 = vlaneseq
        %v2449 = vshrl.u32 %v2448, 7
        %v2450 = vsub.s32 %v2447, %v2449
        %v2451 = vrot.slane %v2437, %v2450
        %v2452 = vcombine.high %v2428, 0.0
        %v2453 = vcombine.high %v2435, 0.0
        %v2454 = vcombine.high %v2444, 0.0
        %v2455 = vcombine.high %v2451, 0.0
        %v2456 = vcombine.low %v2129, %v2379
        %v2458 = vunpack.c.l.s4 1983009808
        %v2459 = vunpack.c.0.s8 %v2458
        %v2460 = vlaneseq
        %v2461 = vshrl.u32 %v2460, 7
        %v2462 = vsub.s32 %v2459, %v2461
        %v2463 = vrot.slane %v2456, %v2462
        %v2464 = vcombine.low %v2373, %v2385
        %v2466 = vunpack.c.l.s4 1983009808
        %v2467 = vunpack.c.0.s8 %v2466
        %v2468 = vlaneseq
        %v2469 = vshrl.u32 %v2468, 7
        %v2470 = vsub.s32 %v2467, %v2469
        %v2471 = vrot.slane %v2464, %v2470
        %v2472 = vcombine.low %v2463, %v2471
        %v2473 = vcombine.high %v2463, %v2471
        %v2475 = vunpack.c.l.s4 1934713408
        %v2476 = vunpack.c.0.s8 %v2475
        %v2477 = vlaneseq
        %v2478 = vshrl.u32 %v2477, 7
        %v2479 = vsub.s32 %v2476, %v2478
        %v2480 = vrot.slane %v2472, %v2479
        %v2482 = vunpack.c.l.s4 1934713408
        %v2483 = vunpack.c.0.s8 %v2482
        %v2484 = vlaneseq
        %v2485 = vshrl.u32 %v2484, 7
        %v2486 = vsub.s32 %v2483, %v2485
        %v2487 = vrot.slane %v2473, %v2486
        %v2488 = vcombine.high %v2480, 0.0
        %v2489 = vcombine.high %v2487, 0.0
        %v2490 = vcombine.low %v2428, %v2435
        %v2492 = vunpack.c.l.s4 1983009808
        %v2493 = vunpack.c.0.s8 %v2492
        %v2494 = vlaneseq
        %v2495 = vshrl.u32 %v2494, 7
        %v2496 = vsub.s32 %v2493, %v2495
        %v2497 = vrot.slane %v2490, %v2496
        %v2498 = vcombine.low %v2452, %v2453
        %v2500 = vunpack.c.l.s4 1983009808
        %v2501 = vunpack.c.0.s8 %v2500
        %v2502 = vlaneseq
        %v2503 = vshrl.u32 %v2502, 7
        %v2504 = vsub.s32 %v2501, %v2503
        %v2505 = vrot.slane %v2498, %v2504
        %v2506 = vcombine.low %v2444, %v2451
        %v2508 = vunpack.c.l.s4 1983009808
        %v2509 = vunpack.c.0.s8 %v2508
        %v2510 = vlaneseq
        %v2511 = vshrl.u32 %v2510, 7
        %v2512 = vsub.s32 %v2509, %v2511
        %v2513 = vrot.slane %v2506, %v2512
        %v2514 = vcombine.low %v2454, %v2455
        %v2516 = vunpack.c.l.s4 1983009808
        %v2517 = vunpack.c.0.s8 %v2516
        %v2518 = vlaneseq
        %v2519 = vshrl.u32 %v2518, 7
        %v2520 = vsub.s32 %v2517, %v2519
        %v2521 = vrot.slane %v2514, %v2520
        %v2522 = vcombine.low %v2497, %v2505
        %v2523 = vcombine.high %v2497, %v2505
        %v2525 = vunpack.c.l.s4 1934713408
        %v2526 = vunpack.c.0.s8 %v2525
        %v2527 = vlaneseq
        %v2528 = vshrl.u32 %v2527, 7
        %v2529 = vsub.s32 %v2526, %v2528
        %v2530 = vrot.slane %v2522, %v2529
        %v2532 = vunpack.c.l.s4 1934713408
        %v2533 = vunpack.c.0.s8 %v2532
        %v2534 = vlaneseq
        %v2535 = vshrl.u32 %v2534, 7
        %v2536 = vsub.s32 %v2533, %v2535
        %v2537 = vrot.slane %v2523, %v2536
        %v2538 = vcombine.low %v2513, %v2521
        %v2539 = vcombine.high %v2513, %v2521
        %v2541 = vunpack.c.l.s4 1934713408
        %v2542 = vunpack.c.0.s8 %v2541
        %v2543 = vlaneseq
        %v2544 = vshrl.u32 %v2543, 7
        %v2545 = vsub.s32 %v2542, %v2544
        %v2546 = vrot.slane %v2538, %v2545
        %v2548 = vunpack.c.l.s4 1934713408
        %v2549 = vunpack.c.0.s8 %v2548
        %v2550 = vlaneseq
        %v2551 = vshrl.u32 %v2550, 7
        %v2552 = vsub.s32 %v2549, %v2551
        %v2553 = vrot.slane %v2539, %v2552
        %v2554 = vcombine.low %v2530, %v2546
        %v2555 = vcombine.high %v2530, %v2546
        %v2556 = vcombine.low %v2537, %v2553
        %v2557 = vcombine.high %v2537, %v2553
        %v2558 = vcombine.low %v2480, %v2487
        %v2560 = vunpack.c.l.s4 1983009808
        %v2561 = vunpack.c.0.s8 %v2560
        %v2562 = vlaneseq
        %v2563 = vshrl.u32 %v2562, 7
        %v2564 = vsub.s32 %v2561, %v2563
        %v2565 = vrot.slane %v2558, %v2564
        %v2566 = vcombine.low %v2488, %v2489
        %v2568 = vunpack.c.l.s4 1983009808
        %v2569 = vunpack.c.0.s8 %v2568
        %v2570 = vlaneseq
        %v2571 = vshrl.u32 %v2570, 7
        %v2572 = vsub.s32 %v2569, %v2571
        %v2573 = vrot.slane %v2566, %v2572
        %v2574 = vcombine.low %v2565, %v2573
        %v2575 = vcombine.high %v2565, %v2573
        %v2577 = vunpack.c.l.s4 1934713408
        %v2578 = vunpack.c.0.s8 %v2577
        %v2579 = vlaneseq
        %v2580 = vshrl.u32 %v2579, 7
        %v2581 = vsub.s32 %v2578, %v2580
        %v2582 = vrot.slane %v2574, %v2581
        %v2584 = vunpack.c.l.s4 1934713408
        %v2585 = vunpack.c.0.s8 %v2584
        %v2586 = vlaneseq
        %v2587 = vshrl.u32 %v2586, 7
        %v2588 = vsub.s32 %v2585, %v2587
        %v2589 = vrot.slane %v2575, %v2588
        %v2590 = vcombine.high %v2582, 0.0
        %v2591 = vcombine.high %v2589, 0.0
        %2594 = vrot.lane.b32.xlu0 %v2214, 120
        %v2595 = vpop.permute.xlu0 %2594
        %2596 = vrot.lane.b32.xlu0 %v2219, 120
        %v2597 = vpop.permute.xlu0 %2596
        %2600 = vrot.lane.b32.xlu0 %v2214, 112
        %v2601 = vpop.permute.xlu0 %2600
        %2602 = vrot.lane.b32.xlu0 %v2219, 112
        %v2603 = vpop.permute.xlu0 %2602
        %2606 = vrot.lane.b32.xlu0 %v2214, 104
        %v2607 = vpop.permute.xlu0 %2606
        %2608 = vrot.lane.b32.xlu0 %v2219, 104
        %v2609 = vpop.permute.xlu0 %2608
        %v2612 = vcombine.low %v2214, %v2601
        %v2613 = vcombine.high %v2214, %v2601
        %v2615 = vunpack.c.l.s4 1983009808
        %v2616 = vunpack.c.0.s8 %v2615
        %v2617 = vlaneseq
        %v2618 = vshrl.u32 %v2617, 7
        %v2619 = vsub.s32 %v2616, %v2618
        %v2620 = vrot.slane %v2612, %v2619
        %v2622 = vunpack.c.l.s4 1983009808
        %v2623 = vunpack.c.0.s8 %v2622
        %v2624 = vlaneseq
        %v2625 = vshrl.u32 %v2624, 7
        %v2626 = vsub.s32 %v2623, %v2625
        %v2627 = vrot.slane %v2613, %v2626
        %v2628 = vcombine.low %v2595, %v2607
        %v2629 = vcombine.high %v2595, %v2607
        %v2631 = vunpack.c.l.s4 1983009808
        %v2632 = vunpack.c.0.s8 %v2631
        %v2633 = vlaneseq
        %v2634 = vshrl.u32 %v2633, 7
        %v2635 = vsub.s32 %v2632, %v2634
        %v2636 = vrot.slane %v2628, %v2635
        %v2638 = vunpack.c.l.s4 1983009808
        %v2639 = vunpack.c.0.s8 %v2638
        %v2640 = vlaneseq
        %v2641 = vshrl.u32 %v2640, 7
        %v2642 = vsub.s32 %v2639, %v2641
        %v2643 = vrot.slane %v2629, %v2642
        %v2644 = vcombine.low %v2620, %v2636
        %v2645 = vcombine.high %v2620, %v2636
        %v2647 = vunpack.c.l.s4 1934713408
        %v2648 = vunpack.c.0.s8 %v2647
        %v2649 = vlaneseq
        %v2650 = vshrl.u32 %v2649, 7
        %v2651 = vsub.s32 %v2648, %v2650
        %v2652 = vrot.slane %v2644, %v2651
        %v2654 = vunpack.c.l.s4 1934713408
        %v2655 = vunpack.c.0.s8 %v2654
        %v2656 = vlaneseq
        %v2657 = vshrl.u32 %v2656, 7
        %v2658 = vsub.s32 %v2655, %v2657
        %v2659 = vrot.slane %v2645, %v2658
        %v2660 = vcombine.low %v2627, %v2643
        %v2661 = vcombine.high %v2627, %v2643
        %v2663 = vunpack.c.l.s4 1934713408
        %v2664 = vunpack.c.0.s8 %v2663
        %v2665 = vlaneseq
        %v2666 = vshrl.u32 %v2665, 7
        %v2667 = vsub.s32 %v2664, %v2666
        %v2668 = vrot.slane %v2660, %v2667
        %v2670 = vunpack.c.l.s4 1934713408
        %v2671 = vunpack.c.0.s8 %v2670
        %v2672 = vlaneseq
        %v2673 = vshrl.u32 %v2672, 7
        %v2674 = vsub.s32 %v2671, %v2673
        %v2675 = vrot.slane %v2661, %v2674
        %v2676 = vcombine.high %v2652, 0.0
        %v2677 = vcombine.high %v2659, 0.0
        %v2678 = vcombine.high %v2668, 0.0
        %v2679 = vcombine.high %v2675, 0.0
        %v2680 = vcombine.low %v2219, %v2603
        %v2682 = vunpack.c.l.s4 1983009808
        %v2683 = vunpack.c.0.s8 %v2682
        %v2684 = vlaneseq
        %v2685 = vshrl.u32 %v2684, 7
        %v2686 = vsub.s32 %v2683, %v2685
        %v2687 = vrot.slane %v2680, %v2686
        %v2688 = vcombine.low %v2597, %v2609
        %v2690 = vunpack.c.l.s4 1983009808
        %v2691 = vunpack.c.0.s8 %v2690
        %v2692 = vlaneseq
        %v2693 = vshrl.u32 %v2692, 7
        %v2694 = vsub.s32 %v2691, %v2693
        %v2695 = vrot.slane %v2688, %v2694
        %v2696 = vcombine.low %v2687, %v2695
        %v2697 = vcombine.high %v2687, %v2695
        %v2699 = vunpack.c.l.s4 1934713408
        %v2700 = vunpack.c.0.s8 %v2699
        %v2701 = vlaneseq
        %v2702 = vshrl.u32 %v2701, 7
        %v2703 = vsub.s32 %v2700, %v2702
        %v2704 = vrot.slane %v2696, %v2703
        %v2706 = vunpack.c.l.s4 1934713408
        %v2707 = vunpack.c.0.s8 %v2706
        %v2708 = vlaneseq
        %v2709 = vshrl.u32 %v2708, 7
        %v2710 = vsub.s32 %v2707, %v2709
        %v2711 = vrot.slane %v2697, %v2710
        %v2712 = vcombine.high %v2704, 0.0
        %v2713 = vcombine.high %v2711, 0.0
        %v2714 = vcombine.low %v2652, %v2659
        %v2716 = vunpack.c.l.s4 1983009808
        %v2717 = vunpack.c.0.s8 %v2716
        %v2718 = vlaneseq
        %v2719 = vshrl.u32 %v2718, 7
        %v2720 = vsub.s32 %v2717, %v2719
        %v2721 = vrot.slane %v2714, %v2720
        %v2722 = vcombine.low %v2676, %v2677
        %v2724 = vunpack.c.l.s4 1983009808
        %v2725 = vunpack.c.0.s8 %v2724
        %v2726 = vlaneseq
        %v2727 = vshrl.u32 %v2726, 7
        %v2728 = vsub.s32 %v2725, %v2727
        %v2729 = vrot.slane %v2722, %v2728
        %v2730 = vcombine.low %v2668, %v2675
        %v2732 = vunpack.c.l.s4 1983009808
        %v2733 = vunpack.c.0.s8 %v2732
        %v2734 = vlaneseq
        %v2735 = vshrl.u32 %v2734, 7
        %v2736 = vsub.s32 %v2733, %v2735
        %v2737 = vrot.slane %v2730, %v2736
        %v2738 = vcombine.low %v2678, %v2679
        %v2740 = vunpack.c.l.s4 1983009808
        %v2741 = vunpack.c.0.s8 %v2740
        %v2742 = vlaneseq
        %v2743 = vshrl.u32 %v2742, 7
        %v2744 = vsub.s32 %v2741, %v2743
        %v2745 = vrot.slane %v2738, %v2744
        %v2746 = vcombine.low %v2721, %v2729
        %v2747 = vcombine.high %v2721, %v2729
        %v2749 = vunpack.c.l.s4 1934713408
        %v2750 = vunpack.c.0.s8 %v2749
        %v2751 = vlaneseq
        %v2752 = vshrl.u32 %v2751, 7
        %v2753 = vsub.s32 %v2750, %v2752
        %v2754 = vrot.slane %v2746, %v2753
        %v2756 = vunpack.c.l.s4 1934713408
        %v2757 = vunpack.c.0.s8 %v2756
        %v2758 = vlaneseq
        %v2759 = vshrl.u32 %v2758, 7
        %v2760 = vsub.s32 %v2757, %v2759
        %v2761 = vrot.slane %v2747, %v2760
        %v2762 = vcombine.low %v2737, %v2745
        %v2763 = vcombine.high %v2737, %v2745
        %v2765 = vunpack.c.l.s4 1934713408
        %v2766 = vunpack.c.0.s8 %v2765
        %v2767 = vlaneseq
        %v2768 = vshrl.u32 %v2767, 7
        %v2769 = vsub.s32 %v2766, %v2768
        %v2770 = vrot.slane %v2762, %v2769
        %v2772 = vunpack.c.l.s4 1934713408
        %v2773 = vunpack.c.0.s8 %v2772
        %v2774 = vlaneseq
        %v2775 = vshrl.u32 %v2774, 7
        %v2776 = vsub.s32 %v2773, %v2775
        %v2777 = vrot.slane %v2763, %v2776
        %v2778 = vcombine.low %v2754, %v2770
        %v2779 = vcombine.high %v2754, %v2770
        %v2780 = vcombine.low %v2761, %v2777
        %v2781 = vcombine.high %v2761, %v2777
        %v2782 = vcombine.low %v2704, %v2711
        %v2784 = vunpack.c.l.s4 1983009808
        %v2785 = vunpack.c.0.s8 %v2784
        %v2786 = vlaneseq
        %v2787 = vshrl.u32 %v2786, 7
        %v2788 = vsub.s32 %v2785, %v2787
        %v2789 = vrot.slane %v2782, %v2788
        %v2790 = vcombine.low %v2712, %v2713
        %v2792 = vunpack.c.l.s4 1983009808
        %v2793 = vunpack.c.0.s8 %v2792
        %v2794 = vlaneseq
        %v2795 = vshrl.u32 %v2794, 7
        %v2796 = vsub.s32 %v2793, %v2795
        %v2797 = vrot.slane %v2790, %v2796
        %v2798 = vcombine.low %v2789, %v2797
        %v2799 = vcombine.high %v2789, %v2797
        %v2801 = vunpack.c.l.s4 1934713408
        %v2802 = vunpack.c.0.s8 %v2801
        %v2803 = vlaneseq
        %v2804 = vshrl.u32 %v2803, 7
        %v2805 = vsub.s32 %v2802, %v2804
        %v2806 = vrot.slane %v2798, %v2805
        %v2808 = vunpack.c.l.s4 1934713408
        %v2809 = vunpack.c.0.s8 %v2808
        %v2810 = vlaneseq
        %v2811 = vshrl.u32 %v2810, 7
        %v2812 = vsub.s32 %v2809, %v2811
        %v2813 = vrot.slane %v2799, %v2812
        %v2814 = vcombine.high %v2806, 0.0
        %v2815 = vcombine.high %v2813, 0.0
        %v2817 = vsel %vm1056, %v2364, 0
        %v2820 = vsel %vm1056, %v2554, 0
        %v2823 = vsel %vm1056, %v2582, 0
        %2825 = vmatprep.subr.mxu0 0.0
        %2826 = vmatpush1.xpose.msra.mxu0 %v2820
        %2827 = vmatprep.subr.mxu0 0.0
        %2828 = vmatpush1.xpose.msra.mxu0 %v2823
        %2829 = vmatprep.subr.mxu0 0.0
        %2830 = vmatpush1.xpose.msra.mxu0 0.0
        %2831 = vmatprep.subr.mxu0 0.0
        %2832 = vmatpush1.xpose.msra.mxu0 0.0
        %2833 = vmatprep.subr.mxu0 0.0
        %2834 = vmatpush1.xpose.msra.mxu0 0.0
        %2835 = vmatprep.subr.mxu0 0.0
        %2836 = vmatpush1.xpose.msra.mxu0 0.0
        %2837 = vmatprep.subr.mxu0 0.0
        %2838 = vmatpush1.xpose.msra.mxu0 0.0
        %2839 = vmatprep.subr.mxu0 0.0
        %2840 = vmatpush1.xpose.msra.mxu0 0.0
        %2841 = vmatprep.subr.mxu0 0.0
        %2842 = vmatpush1.xpose.msra.mxu0 0.0
        %2843 = vmatprep.subr.mxu0 0.0
        %2844 = vmatpush1.xpose.msra.mxu0 0.0
        %2845 = vmatprep.subr.mxu0 0.0
        %2846 = vmatpush1.xpose.msra.mxu0 0.0
        %2847 = vmatprep.subr.mxu0 0.0
        %2848 = vmatpush1.xpose.msra.mxu0 0.0
        %2849 = vmatprep.subr.mxu0 0.0
        %2850 = vmatpush1.xpose.msra.mxu0 0.0
        %2851 = vmatprep.subr.mxu0 0.0
        %2852 = vmatpush1.xpose.msra.mxu0 0.0
        %2853 = vmatprep.subr.mxu0 0.0
        %2854 = vmatpush1.xpose.msra.mxu0 0.0
        %2855 = vmatprep.subr.mxu0 0.0
        %2856 = vmatpush1.xpose.msra.mxu0 0.0
        %2857 = vmatprep.subr.mxu0 0.0
        %2858 = vmatpush1.xpose.msra.mxu0 0.0
        %2859 = vmatprep.subr.mxu0 0.0
        %2860 = vmatpush1.xpose.msra.mxu0 0.0
        %2861 = vmatprep.subr.mxu0 0.0
        %2862 = vmatpush1.xpose.msra.mxu0 0.0
        %2863 = vmatprep.subr.mxu0 0.0
        %2864 = vmatpush1.xpose.msra.mxu0 0.0
        %2865 = vmatprep.subr.mxu0 0.0
        %2866 = vmatpush1.xpose.msra.mxu0 0.0
        %2867 = vmatprep.subr.mxu0 0.0
        %2868 = vmatpush1.xpose.msra.mxu0 0.0
        %2869 = vmatprep.subr.mxu0 0.0
        %2870 = vmatpush1.xpose.msra.mxu0 0.0
        %2871 = vmatprep.subr.mxu0 0.0
        %2872 = vmatpush1.xpose.msra.mxu0 0.0
        %2873 = vmatprep.subr.mxu0 0.0
        %2874 = vmatpush1.xpose.msra.mxu0 0.0
        %2875 = vmatprep.subr.mxu0 0.0
        %2876 = vmatpush1.xpose.msra.mxu0 0.0
        %2877 = vmatprep.subr.mxu0 0.0
        %2878 = vmatpush1.xpose.msra.mxu0 0.0
        %2879 = vmatprep.subr.mxu0 0.0
        %2880 = vmatpush1.xpose.msra.mxu0 0.0
        %2881 = vmatprep.subr.mxu0 0.0
        %2882 = vmatpush1.xpose.msra.mxu0 0.0
        %2883 = vmatprep.subr.mxu0 0.0
        %2884 = vmatpush1.xpose.msra.mxu0 0.0
        %2885 = vmatprep.subr.mxu0 0.0
        %2886 = vmatpush1.xpose.msra.mxu0 0.0
        %2887 = vmatprep.subr.mxu0 0.0
        %2888 = vmatpush1.xpose.msra.mxu0 0.0
        %2889 = vmatprep.mubr.f32.mxu0 0.0
        %2890 = vmatmul.mubr.f32.gmra.mrb[0].mxu0 %v2817
        %v2891 = vpop.f32.mrb[0].mxu0
        %v2892 = vadd.f32 0.0, %v2891
        %v2893 = vpop.f32.mrb[0].mxu0
        %2894 = vdwg.mxu0
        %v2896 = vsel %vm1056, %v2365, 0
        %v2899 = vsel %vm1056, %v2555, 0
        %v2902 = vsel %vm1056, %v2590, 0
        %2904 = vmatprep.subr.mxu0 0.0
        %2905 = vmatpush1.xpose.msra.mxu0 %v2899
        %2906 = vmatprep.subr.mxu0 0.0
        %2907 = vmatpush1.xpose.msra.mxu0 %v2902
        %2908 = vmatprep.subr.mxu0 0.0
        %2909 = vmatpush1.xpose.msra.mxu0 0.0
        %2910 = vmatprep.subr.mxu0 0.0
        %2911 = vmatpush1.xpose.msra.mxu0 0.0
        %2912 = vmatprep.subr.mxu0 0.0
        %2913 = vmatpush1.xpose.msra.mxu0 0.0
        %2914 = vmatprep.subr.mxu0 0.0
        %2915 = vmatpush1.xpose.msra.mxu0 0.0
        %2916 = vmatprep.subr.mxu0 0.0
        %2917 = vmatpush1.xpose.msra.mxu0 0.0
        %2918 = vmatprep.subr.mxu0 0.0
        %2919 = vmatpush1.xpose.msra.mxu0 0.0
        %2920 = vmatprep.subr.mxu0 0.0
        %2921 = vmatpush1.xpose.msra.mxu0 0.0
        %2922 = vmatprep.subr.mxu0 0.0
        %2923 = vmatpush1.xpose.msra.mxu0 0.0
        %2924 = vmatprep.subr.mxu0 0.0
        %2925 = vmatpush1.xpose.msra.mxu0 0.0
        %2926 = vmatprep.subr.mxu0 0.0
        %2927 = vmatpush1.xpose.msra.mxu0 0.0
        %2928 = vmatprep.subr.mxu0 0.0
        %2929 = vmatpush1.xpose.msra.mxu0 0.0
        %2930 = vmatprep.subr.mxu0 0.0
        %2931 = vmatpush1.xpose.msra.mxu0 0.0
        %2932 = vmatprep.subr.mxu0 0.0
        %2933 = vmatpush1.xpose.msra.mxu0 0.0
        %2934 = vmatprep.subr.mxu0 0.0
        %2935 = vmatpush1.xpose.msra.mxu0 0.0
        %2936 = vmatprep.subr.mxu0 0.0
        %2937 = vmatpush1.xpose.msra.mxu0 0.0
        %2938 = vmatprep.subr.mxu0 0.0
        %2939 = vmatpush1.xpose.msra.mxu0 0.0
        %2940 = vmatprep.subr.mxu0 0.0
        %2941 = vmatpush1.xpose.msra.mxu0 0.0
        %2942 = vmatprep.subr.mxu0 0.0
        %2943 = vmatpush1.xpose.msra.mxu0 0.0
        %2944 = vmatprep.subr.mxu0 0.0
        %2945 = vmatpush1.xpose.msra.mxu0 0.0
        %2946 = vmatprep.subr.mxu0 0.0
        %2947 = vmatpush1.xpose.msra.mxu0 0.0
        %2948 = vmatprep.subr.mxu0 0.0
        %2949 = vmatpush1.xpose.msra.mxu0 0.0
        %2950 = vmatprep.subr.mxu0 0.0
        %2951 = vmatpush1.xpose.msra.mxu0 0.0
        %2952 = vmatprep.subr.mxu0 0.0
        %2953 = vmatpush1.xpose.msra.mxu0 0.0
        %2954 = vmatprep.subr.mxu0 0.0
        %2955 = vmatpush1.xpose.msra.mxu0 0.0
        %2956 = vmatprep.subr.mxu0 0.0
        %2957 = vmatpush1.xpose.msra.mxu0 0.0
        %2958 = vmatprep.subr.mxu0 0.0
        %2959 = vmatpush1.xpose.msra.mxu0 0.0
        %2960 = vmatprep.subr.mxu0 0.0
        %2961 = vmatpush1.xpose.msra.mxu0 0.0
        %2962 = vmatprep.subr.mxu0 0.0
        %2963 = vmatpush1.xpose.msra.mxu0 0.0
        %2964 = vmatprep.subr.mxu0 0.0
        %2965 = vmatpush1.xpose.msra.mxu0 0.0
        %2966 = vmatprep.subr.mxu0 0.0
        %2967 = vmatpush1.xpose.msra.mxu0 0.0
        %2968 = vmatprep.mubr.f32.mxu0 0.0
        %2969 = vmatmul.mubr.f32.gmra.mrb[0].mxu0 %v2896
        %v2970 = vpop.f32.mrb[0].mxu0
        %v2971 = vadd.f32 0.0, %v2970
        %v2972 = vpop.f32.mrb[0].mxu0
        %2973 = vdwg.mxu0
        %v2975 = vsel %vm1056, %v2366, 0
        %v2978 = vsel %vm1056, %v2556, 0
        %v2981 = vsel %vm1056, %v2589, 0
        %2983 = vmatprep.subr.mxu0 0.0
        %2984 = vmatpush1.xpose.msra.mxu0 %v2978
        %2985 = vmatprep.subr.mxu0 0.0
        %2986 = vmatpush1.xpose.msra.mxu0 %v2981
        %2987 = vmatprep.subr.mxu0 0.0
        %2988 = vmatpush1.xpose.msra.mxu0 0.0
        %2989 = vmatprep.subr.mxu0 0.0
        %2990 = vmatpush1.xpose.msra.mxu0 0.0
        %2991 = vmatprep.subr.mxu0 0.0
        %2992 = vmatpush1.xpose.msra.mxu0 0.0
        %2993 = vmatprep.subr.mxu0 0.0
        %2994 = vmatpush1.xpose.msra.mxu0 0.0
        %2995 = vmatprep.subr.mxu0 0.0
        %2996 = vmatpush1.xpose.msra.mxu0 0.0
        %2997 = vmatprep.subr.mxu0 0.0
        %2998 = vmatpush1.xpose.msra.mxu0 0.0
        %2999 = vmatprep.subr.mxu0 0.0
        %3000 = vmatpush1.xpose.msra.mxu0 0.0
        %3001 = vmatprep.subr.mxu0 0.0
        %3002 = vmatpush1.xpose.msra.mxu0 0.0
        %3003 = vmatprep.subr.mxu0 0.0
        %3004 = vmatpush1.xpose.msra.mxu0 0.0
        %3005 = vmatprep.subr.mxu0 0.0
        %3006 = vmatpush1.xpose.msra.mxu0 0.0
        %3007 = vmatprep.subr.mxu0 0.0
        %3008 = vmatpush1.xpose.msra.mxu0 0.0
        %3009 = vmatprep.subr.mxu0 0.0
        %3010 = vmatpush1.xpose.msra.mxu0 0.0
        %3011 = vmatprep.subr.mxu0 0.0
        %3012 = vmatpush1.xpose.msra.mxu0 0.0
        %3013 = vmatprep.subr.mxu0 0.0
        %3014 = vmatpush1.xpose.msra.mxu0 0.0
        %3015 = vmatprep.subr.mxu0 0.0
        %3016 = vmatpush1.xpose.msra.mxu0 0.0
        %3017 = vmatprep.subr.mxu0 0.0
        %3018 = vmatpush1.xpose.msra.mxu0 0.0
        %3019 = vmatprep.subr.mxu0 0.0
        %3020 = vmatpush1.xpose.msra.mxu0 0.0
        %3021 = vmatprep.subr.mxu0 0.0
        %3022 = vmatpush1.xpose.msra.mxu0 0.0
        %3023 = vmatprep.subr.mxu0 0.0
        %3024 = vmatpush1.xpose.msra.mxu0 0.0
        %3025 = vmatprep.subr.mxu0 0.0
        %3026 = vmatpush1.xpose.msra.mxu0 0.0
        %3027 = vmatprep.subr.mxu0 0.0
        %3028 = vmatpush1.xpose.msra.mxu0 0.0
        %3029 = vmatprep.subr.mxu0 0.0
        %3030 = vmatpush1.xpose.msra.mxu0 0.0
        %3031 = vmatprep.subr.mxu0 0.0
        %3032 = vmatpush1.xpose.msra.mxu0 0.0
        %3033 = vmatprep.subr.mxu0 0.0
        %3034 = vmatpush1.xpose.msra.mxu0 0.0
        %3035 = vmatprep.subr.mxu0 0.0
        %3036 = vmatpush1.xpose.msra.mxu0 0.0
        %3037 = vmatprep.subr.mxu0 0.0
        %3038 = vmatpush1.xpose.msra.mxu0 0.0
        %3039 = vmatprep.subr.mxu0 0.0
        %3040 = vmatpush1.xpose.msra.mxu0 0.0
        %3041 = vmatprep.subr.mxu0 0.0
        %3042 = vmatpush1.xpose.msra.mxu0 0.0
        %3043 = vmatprep.subr.mxu0 0.0
        %3044 = vmatpush1.xpose.msra.mxu0 0.0
        %3045 = vmatprep.subr.mxu0 0.0
        %3046 = vmatpush1.xpose.msra.mxu0 0.0
        %3047 = vmatprep.mubr.f32.mxu0 0.0
        %3048 = vmatmul.mubr.f32.gmra.mrb[0].mxu0 %v2975
        %v3049 = vpop.f32.mrb[0].mxu0
        %v3050 = vadd.f32 0.0, %v3049
        %v3051 = vpop.f32.mrb[0].mxu0
        %3052 = vdwg.mxu0
        %v3054 = vsel %vm1056, %v2367, 0
        %v3057 = vsel %vm1056, %v2557, 0
        %v3060 = vsel %vm1056, %v2591, 0
        %3062 = vmatprep.subr.mxu0 0.0
        %3063 = vmatpush1.xpose.msra.mxu0 %v3057
        %3064 = vmatprep.subr.mxu0 0.0
        %3065 = vmatpush1.xpose.msra.mxu0 %v3060
        %3066 = vmatprep.subr.mxu0 0.0
        %3067 = vmatpush1.xpose.msra.mxu0 0.0
        %3068 = vmatprep.subr.mxu0 0.0
        %3069 = vmatpush1.xpose.msra.mxu0 0.0
        %3070 = vmatprep.subr.mxu0 0.0
        %3071 = vmatpush1.xpose.msra.mxu0 0.0
        %3072 = vmatprep.subr.mxu0 0.0
        %3073 = vmatpush1.xpose.msra.mxu0 0.0
        %3074 = vmatprep.subr.mxu0 0.0
        %3075 = vmatpush1.xpose.msra.mxu0 0.0
        %3076 = vmatprep.subr.mxu0 0.0
        %3077 = vmatpush1.xpose.msra.mxu0 0.0
        %3078 = vmatprep.subr.mxu0 0.0
        %3079 = vmatpush1.xpose.msra.mxu0 0.0
        %3080 = vmatprep.subr.mxu0 0.0
        %3081 = vmatpush1.xpose.msra.mxu0 0.0
        %3082 = vmatprep.subr.mxu0 0.0
        %3083 = vmatpush1.xpose.msra.mxu0 0.0
        %3084 = vmatprep.subr.mxu0 0.0
        %3085 = vmatpush1.xpose.msra.mxu0 0.0
        %3086 = vmatprep.subr.mxu0 0.0
        %3087 = vmatpush1.xpose.msra.mxu0 0.0
        %3088 = vmatprep.subr.mxu0 0.0
        %3089 = vmatpush1.xpose.msra.mxu0 0.0
        %3090 = vmatprep.subr.mxu0 0.0
        %3091 = vmatpush1.xpose.msra.mxu0 0.0
        %3092 = vmatprep.subr.mxu0 0.0
        %3093 = vmatpush1.xpose.msra.mxu0 0.0
        %3094 = vmatprep.subr.mxu0 0.0
        %3095 = vmatpush1.xpose.msra.mxu0 0.0
        %3096 = vmatprep.subr.mxu0 0.0
        %3097 = vmatpush1.xpose.msra.mxu0 0.0
        %3098 = vmatprep.subr.mxu0 0.0
        %3099 = vmatpush1.xpose.msra.mxu0 0.0
        %3100 = vmatprep.subr.mxu0 0.0
        %3101 = vmatpush1.xpose.msra.mxu0 0.0
        %3102 = vmatprep.subr.mxu0 0.0
        %3103 = vmatpush1.xpose.msra.mxu0 0.0
        %3104 = vmatprep.subr.mxu0 0.0
        %3105 = vmatpush1.xpose.msra.mxu0 0.0
        %3106 = vmatprep.subr.mxu0 0.0
        %3107 = vmatpush1.xpose.msra.mxu0 0.0
        %3108 = vmatprep.subr.mxu0 0.0
        %3109 = vmatpush1.xpose.msra.mxu0 0.0
        %3110 = vmatprep.subr.mxu0 0.0
        %3111 = vmatpush1.xpose.msra.mxu0 0.0
        %3112 = vmatprep.subr.mxu0 0.0
        %3113 = vmatpush1.xpose.msra.mxu0 0.0
        %3114 = vmatprep.subr.mxu0 0.0
        %3115 = vmatpush1.xpose.msra.mxu0 0.0
        %3116 = vmatprep.subr.mxu0 0.0
        %3117 = vmatpush1.xpose.msra.mxu0 0.0
        %3118 = vmatprep.subr.mxu0 0.0
        %3119 = vmatpush1.xpose.msra.mxu0 0.0
        %3120 = vmatprep.subr.mxu0 0.0
        %3121 = vmatpush1.xpose.msra.mxu0 0.0
        %3122 = vmatprep.subr.mxu0 0.0
        %3123 = vmatpush1.xpose.msra.mxu0 0.0
        %3124 = vmatprep.subr.mxu0 0.0
        %3125 = vmatpush1.xpose.msra.mxu0 0.0
        %3126 = vmatprep.mubr.f32.mxu0 0.0
        %3127 = vmatmul.mubr.f32.gmra.mrb[0].mxu0 %v3054
        %v3128 = vpop.f32.mrb[0].mxu0
        %v3129 = vadd.f32 0.0, %v3128
        %v3130 = vpop.f32.mrb[0].mxu0
        %3131 = vdwg.mxu0
        %vm3132 = vcmask 97280
        %v3133 = vsel %vm3132, %v2892, -inf
        %3134 = vmax.xlane.f32.xlu0 %v3133
        %v3135 = vpop.xlane.xlu0 %3134
        %v3136 = vsel %vm3132, %v2971, -inf
        %3137 = vmax.xlane.f32.xlu0 %v3136
        %v3138 = vpop.xlane.xlu0 %3137
        %v3139 = vsel %vm3132, %v3050, -inf
        %3140 = vmax.xlane.f32.xlu0 %v3139
        %v3141 = vpop.xlane.xlu0 %3140
        %v3142 = vsel %vm3132, %v3129, -inf
        %3143 = vmax.xlane.f32.xlu0 %v3142
        %v3144 = vpop.xlane.xlu0 %3143
        %v3145 = vsub.f32 %v2892, %v3135
        %v3146 = vsub.f32 %v2971, %v3138
        %v3147 = vsub.f32 %v3050, %v3141
        %v3148 = vsub.f32 %v3129, %v3144
        %v3149 = vmul.f32 %v3145, 1.442695
        %v3150 = vpow.pop %v3149
        %v3151 = vmul.f32 %v3146, 1.442695
        %v3152 = vpow.pop %v3151
        %v3153 = vmul.f32 %v3147, 1.442695
        %v3154 = vpow.pop %v3153
        %v3155 = vmul.f32 %v3148, 1.442695
        %v3156 = vpow.pop %v3155
        %v3157 = vsel %vm3132, %v3150, 0.0
        %3158 = vadd.xlane.f32.xlu0 %v3157
        %v3159 = vpop.xlane.xlu0 %3158
        %v3160 = vsel %vm3132, %v3152, 0.0
        %3161 = vadd.xlane.f32.xlu0 %v3160
        %v3162 = vpop.xlane.xlu0 %3161
        %v3163 = vsel %vm3132, %v3154, 0.0
        %3164 = vadd.xlane.f32.xlu0 %v3163
        %v3165 = vpop.xlane.xlu0 %3164
        %v3166 = vsel %vm3132, %v3156, 0.0
        %3167 = vadd.xlane.f32.xlu0 %v3166
        %v3168 = vpop.xlane.xlu0 %3167
        %v3169 = vrcp.pop %v3159
        %v3170 = vrcp.pop %v3162
        %v3171 = vrcp.pop %v3165
        %v3172 = vrcp.pop %v3168
        %v3173 = vmul.f32 %v3150, %v3169
        %v3174 = vmul.f32 %v3152, %v3170
        %v3175 = vmul.f32 %v3154, %v3171
        %v3176 = vmul.f32 %v3156, %v3172
        %v3178 = vsel %vm3132, %v3173, 0
        %vm3180 = vcmask 1043456
        %v3182 = vsel %vm3180, %v2806, 0
        %3184 = vmatprep.subr.mxu0 0.0
        %3185 = vmatpush1.msra.mxu0 %v2778
        %3186 = vmatprep.subr.mxu0 0.0
        %3187 = vmatpush1.msra.mxu0 %v3182
        %3188 = vmatprep.subr.mxu0 0.0
        %3189 = vmatpush1.msra.mxu0 0.0
        %3190 = vmatprep.subr.mxu0 0.0
        %3191 = vmatpush1.msra.mxu0 0.0
        %3192 = vmatprep.subr.mxu0 0.0
        %3193 = vmatpush1.msra.mxu0 0.0
        %3194 = vmatprep.subr.mxu0 0.0
        %3195 = vmatpush1.msra.mxu0 0.0
        %3196 = vmatprep.subr.mxu0 0.0
        %3197 = vmatpush1.msra.mxu0 0.0
        %3198 = vmatprep.subr.mxu0 0.0
        %3199 = vmatpush1.msra.mxu0 0.0
        %3200 = vmatprep.subr.mxu0 0.0
        %3201 = vmatpush1.msra.mxu0 0.0
        %3202 = vmatprep.subr.mxu0 0.0
        %3203 = vmatpush1.msra.mxu0 0.0
        %3204 = vmatprep.subr.mxu0 0.0
        %3205 = vmatpush1.msra.mxu0 0.0
        %3206 = vmatprep.subr.mxu0 0.0
        %3207 = vmatpush1.msra.mxu0 0.0
        %3208 = vmatprep.subr.mxu0 0.0
        %3209 = vmatpush1.msra.mxu0 0.0
        %3210 = vmatprep.subr.mxu0 0.0
        %3211 = vmatpush1.msra.mxu0 0.0
        %3212 = vmatprep.subr.mxu0 0.0
        %3213 = vmatpush1.msra.mxu0 0.0
        %3214 = vmatprep.subr.mxu0 0.0
        %3215 = vmatpush1.msra.mxu0 0.0
        %3216 = vmatprep.subr.mxu0 0.0
        %3217 = vmatpush1.msra.mxu0 0.0
        %3218 = vmatprep.subr.mxu0 0.0
        %3219 = vmatpush1.msra.mxu0 0.0
        %3220 = vmatprep.subr.mxu0 0.0
        %3221 = vmatpush1.msra.mxu0 0.0
        %3222 = vmatprep.subr.mxu0 0.0
        %3223 = vmatpush1.msra.mxu0 0.0
        %3224 = vmatprep.subr.mxu0 0.0
        %3225 = vmatpush1.msra.mxu0 0.0
        %3226 = vmatprep.subr.mxu0 0.0
        %3227 = vmatpush1.msra.mxu0 0.0
        %3228 = vmatprep.subr.mxu0 0.0
        %3229 = vmatpush1.msra.mxu0 0.0
        %3230 = vmatprep.subr.mxu0 0.0
        %3231 = vmatpush1.msra.mxu0 0.0
        %3232 = vmatprep.subr.mxu0 0.0
        %3233 = vmatpush1.msra.mxu0 0.0
        %3234 = vmatprep.subr.mxu0 0.0
        %3235 = vmatpush1.msra.mxu0 0.0
        %3236 = vmatprep.subr.mxu0 0.0
        %3237 = vmatpush1.msra.mxu0 0.0
        %3238 = vmatprep.subr.mxu0 0.0
        %3239 = vmatpush1.msra.mxu0 0.0
        %3240 = vmatprep.subr.mxu0 0.0
        %3241 = vmatpush1.msra.mxu0 0.0
        %3242 = vmatprep.subr.mxu0 0.0
        %3243 = vmatpush1.msra.mxu0 0.0
        %3244 = vmatprep.subr.mxu0 0.0
        %3245 = vmatpush1.msra.mxu0 0.0
        %3246 = vmatprep.subr.mxu0 0.0
        %3247 = vmatpush1.msra.mxu0 0.0
        %3248 = vmatprep.mubr.f32.mxu0 0.0
        %3249 = vmatmul.mubr.f32.gmra.mrb[0].mxu0 %v3178
        %v3250 = vpop.f32.mrb[0].mxu0
        %v3251 = vadd.f32 0.0, %v3250
        %v3252 = vpop.f32.mrb[0].mxu0
        %3253 = vdwg.mxu0
        %v3255 = vsel %vm3132, %v3174, 0
        %v3258 = vsel %vm3180, %v2814, 0
        %3260 = vmatprep.subr.mxu0 0.0
        %3261 = vmatpush1.msra.mxu0 %v2779
        %3262 = vmatprep.subr.mxu0 0.0
        %3263 = vmatpush1.msra.mxu0 %v3258
        %3264 = vmatprep.subr.mxu0 0.0
        %3265 = vmatpush1.msra.mxu0 0.0
        %3266 = vmatprep.subr.mxu0 0.0
        %3267 = vmatpush1.msra.mxu0 0.0
        %3268 = vmatprep.subr.mxu0 0.0
        %3269 = vmatpush1.msra.mxu0 0.0
        %3270 = vmatprep.subr.mxu0 0.0
        %3271 = vmatpush1.msra.mxu0 0.0
        %3272 = vmatprep.subr.mxu0 0.0
        %3273 = vmatpush1.msra.mxu0 0.0
        %3274 = vmatprep.subr.mxu0 0.0
        %3275 = vmatpush1.msra.mxu0 0.0
        %3276 = vmatprep.subr.mxu0 0.0
        %3277 = vmatpush1.msra.mxu0 0.0
        %3278 = vmatprep.subr.mxu0 0.0
        %3279 = vmatpush1.msra.mxu0 0.0
        %3280 = vmatprep.subr.mxu0 0.0
        %3281 = vmatpush1.msra.mxu0 0.0
        %3282 = vmatprep.subr.mxu0 0.0
        %3283 = vmatpush1.msra.mxu0 0.0
        %3284 = vmatprep.subr.mxu0 0.0
        %3285 = vmatpush1.msra.mxu0 0.0
        %3286 = vmatprep.subr.mxu0 0.0
        %3287 = vmatpush1.msra.mxu0 0.0
        %3288 = vmatprep.subr.mxu0 0.0
        %3289 = vmatpush1.msra.mxu0 0.0
        %3290 = vmatprep.subr.mxu0 0.0
        %3291 = vmatpush1.msra.mxu0 0.0
        %3292 = vmatprep.subr.mxu0 0.0
        %3293 = vmatpush1.msra.mxu0 0.0
        %3294 = vmatprep.subr.mxu0 0.0
        %3295 = vmatpush1.msra.mxu0 0.0
        %3296 = vmatprep.subr.mxu0 0.0
        %3297 = vmatpush1.msra.mxu0 0.0
        %3298 = vmatprep.subr.mxu0 0.0
        %3299 = vmatpush1.msra.mxu0 0.0
        %3300 = vmatprep.subr.mxu0 0.0
        %3301 = vmatpush1.msra.mxu0 0.0
        %3302 = vmatprep.subr.mxu0 0.0
        %3303 = vmatpush1.msra.mxu0 0.0
        %3304 = vmatprep.subr.mxu0 0.0
        %3305 = vmatpush1.msra.mxu0 0.0
        %3306 = vmatprep.subr.mxu0 0.0
        %3307 = vmatpush1.msra.mxu0 0.0
        %3308 = vmatprep.subr.mxu0 0.0
        %3309 = vmatpush1.msra.mxu0 0.0
        %3310 = vmatprep.subr.mxu0 0.0
        %3311 = vmatpush1.msra.mxu0 0.0
        %3312 = vmatprep.subr.mxu0 0.0
        %3313 = vmatpush1.msra.mxu0 0.0
        %3314 = vmatprep.subr.mxu0 0.0
        %3315 = vmatpush1.msra.mxu0 0.0
        %3316 = vmatprep.subr.mxu0 0.0
        %3317 = vmatpush1.msra.mxu0 0.0
        %3318 = vmatprep.subr.mxu0 0.0
        %3319 = vmatpush1.msra.mxu0 0.0
        %3320 = vmatprep.subr.mxu0 0.0
        %3321 = vmatpush1.msra.mxu0 0.0
        %3322 = vmatprep.subr.mxu0 0.0
        %3323 = vmatpush1.msra.mxu0 0.0
        %3324 = vmatprep.mubr.f32.mxu0 0.0
        %3325 = vmatmul.mubr.f32.gmra.mrb[0].mxu0 %v3255
        %v3326 = vpop.f32.mrb[0].mxu0
        %v3327 = vadd.f32 0.0, %v3326
        %v3328 = vpop.f32.mrb[0].mxu0
        %3329 = vdwg.mxu0
        %v3331 = vsel %vm3132, %v3175, 0
        %v3334 = vsel %vm3180, %v2813, 0
        %3336 = vmatprep.subr.mxu0 0.0
        %3337 = vmatpush1.msra.mxu0 %v2780
        %3338 = vmatprep.subr.mxu0 0.0
        %3339 = vmatpush1.msra.mxu0 %v3334
        %3340 = vmatprep.subr.mxu0 0.0
        %3341 = vmatpush1.msra.mxu0 0.0
        %3342 = vmatprep.subr.mxu0 0.0
        %3343 = vmatpush1.msra.mxu0 0.0
        %3344 = vmatprep.subr.mxu0 0.0
        %3345 = vmatpush1.msra.mxu0 0.0
        %3346 = vmatprep.subr.mxu0 0.0
        %3347 = vmatpush1.msra.mxu0 0.0
        %3348 = vmatprep.subr.mxu0 0.0
        %3349 = vmatpush1.msra.mxu0 0.0
        %3350 = vmatprep.subr.mxu0 0.0
        %3351 = vmatpush1.msra.mxu0 0.0
        %3352 = vmatprep.subr.mxu0 0.0
        %3353 = vmatpush1.msra.mxu0 0.0
        %3354 = vmatprep.subr.mxu0 0.0
        %3355 = vmatpush1.msra.mxu0 0.0
        %3356 = vmatprep.subr.mxu0 0.0
        %3357 = vmatpush1.msra.mxu0 0.0
        %3358 = vmatprep.subr.mxu0 0.0
        %3359 = vmatpush1.msra.mxu0 0.0
        %3360 = vmatprep.subr.mxu0 0.0
        %3361 = vmatpush1.msra.mxu0 0.0
        %3362 = vmatprep.subr.mxu0 0.0
        %3363 = vmatpush1.msra.mxu0 0.0
        %3364 = vmatprep.subr.mxu0 0.0
        %3365 = vmatpush1.msra.mxu0 0.0
        %3366 = vmatprep.subr.mxu0 0.0
        %3367 = vmatpush1.msra.mxu0 0.0
        %3368 = vmatprep.subr.mxu0 0.0
        %3369 = vmatpush1.msra.mxu0 0.0
        %3370 = vmatprep.subr.mxu0 0.0
        %3371 = vmatpush1.msra.mxu0 0.0
        %3372 = vmatprep.subr.mxu0 0.0
        %3373 = vmatpush1.msra.mxu0 0.0
        %3374 = vmatprep.subr.mxu0 0.0
        %3375 = vmatpush1.msra.mxu0 0.0
        %3376 = vmatprep.subr.mxu0 0.0
        %3377 = vmatpush1.msra.mxu0 0.0
        %3378 = vmatprep.subr.mxu0 0.0
        %3379 = vmatpush1.msra.mxu0 0.0
        %3380 = vmatprep.subr.mxu0 0.0
        %3381 = vmatpush1.msra.mxu0 0.0
        %3382 = vmatprep.subr.mxu0 0.0
        %3383 = vmatpush1.msra.mxu0 0.0
        %3384 = vmatprep.subr.mxu0 0.0
        %3385 = vmatpush1.msra.mxu0 0.0
        %3386 = vmatprep.subr.mxu0 0.0
        %3387 = vmatpush1.msra.mxu0 0.0
        %3388 = vmatprep.subr.mxu0 0.0
        %3389 = vmatpush1.msra.mxu0 0.0
        %3390 = vmatprep.subr.mxu0 0.0
        %3391 = vmatpush1.msra.mxu0 0.0
        %3392 = vmatprep.subr.mxu0 0.0
        %3393 = vmatpush1.msra.mxu0 0.0
        %3394 = vmatprep.subr.mxu0 0.0
        %3395 = vmatpush1.msra.mxu0 0.0
        %3396 = vmatprep.subr.mxu0 0.0
        %3397 = vmatpush1.msra.mxu0 0.0
        %3398 = vmatprep.subr.mxu0 0.0
        %3399 = vmatpush1.msra.mxu0 0.0
        %3400 = vmatprep.mubr.f32.mxu0 0.0
        %3401 = vmatmul.mubr.f32.gmra.mrb[0].mxu0 %v3331
        %v3402 = vpop.f32.mrb[0].mxu0
        %v3403 = vadd.f32 0.0, %v3402
        %v3404 = vpop.f32.mrb[0].mxu0
        %3405 = vdwg.mxu0
        %v3407 = vsel %vm3132, %v3176, 0
        %v3410 = vsel %vm3180, %v2815, 0
        %3412 = vmatprep.subr.mxu0 0.0
        %3413 = vmatpush1.msra.mxu0 %v2781
        %3414 = vmatprep.subr.mxu0 0.0
        %3415 = vmatpush1.msra.mxu0 %v3410
        %3416 = vmatprep.subr.mxu0 0.0
        %3417 = vmatpush1.msra.mxu0 0.0
        %3418 = vmatprep.subr.mxu0 0.0
        %3419 = vmatpush1.msra.mxu0 0.0
        %3420 = vmatprep.subr.mxu0 0.0
        %3421 = vmatpush1.msra.mxu0 0.0
        %3422 = vmatprep.subr.mxu0 0.0
        %3423 = vmatpush1.msra.mxu0 0.0
        %3424 = vmatprep.subr.mxu0 0.0
        %3425 = vmatpush1.msra.mxu0 0.0
        %3426 = vmatprep.subr.mxu0 0.0
        %3427 = vmatpush1.msra.mxu0 0.0
        %3428 = vmatprep.subr.mxu0 0.0
        %3429 = vmatpush1.msra.mxu0 0.0
        %3430 = vmatprep.subr.mxu0 0.0
        %3431 = vmatpush1.msra.mxu0 0.0
        %3432 = vmatprep.subr.mxu0 0.0
        %3433 = vmatpush1.msra.mxu0 0.0
        %3434 = vmatprep.subr.mxu0 0.0
        %3435 = vmatpush1.msra.mxu0 0.0
        %3436 = vmatprep.subr.mxu0 0.0
        %3437 = vmatpush1.msra.mxu0 0.0
        %3438 = vmatprep.subr.mxu0 0.0
        %3439 = vmatpush1.msra.mxu0 0.0
        %3440 = vmatprep.subr.mxu0 0.0
        %3441 = vmatpush1.msra.mxu0 0.0
        %3442 = vmatprep.subr.mxu0 0.0
        %3443 = vmatpush1.msra.mxu0 0.0
        %3444 = vmatprep.subr.mxu0 0.0
        %3445 = vmatpush1.msra.mxu0 0.0
        %3446 = vmatprep.subr.mxu0 0.0
        %3447 = vmatpush1.msra.mxu0 0.0
        %3448 = vmatprep.subr.mxu0 0.0
        %3449 = vmatpush1.msra.mxu0 0.0
        %3450 = vmatprep.subr.mxu0 0.0
        %3451 = vmatpush1.msra.mxu0 0.0
        %3452 = vmatprep.subr.mxu0 0.0
        %3453 = vmatpush1.msra.mxu0 0.0
        %3454 = vmatprep.subr.mxu0 0.0
        %3455 = vmatpush1.msra.mxu0 0.0
        %3456 = vmatprep.subr.mxu0 0.0
        %3457 = vmatpush1.msra.mxu0 0.0
        %3458 = vmatprep.subr.mxu0 0.0
        %3459 = vmatpush1.msra.mxu0 0.0
        %3460 = vmatprep.subr.mxu0 0.0
        %3461 = vmatpush1.msra.mxu0 0.0
        %3462 = vmatprep.subr.mxu0 0.0
        %3463 = vmatpush1.msra.mxu0 0.0
        %3464 = vmatprep.subr.mxu0 0.0
        %3465 = vmatpush1.msra.mxu0 0.0
        %3466 = vmatprep.subr.mxu0 0.0
        %3467 = vmatpush1.msra.mxu0 0.0
        %3468 = vmatprep.subr.mxu0 0.0
        %3469 = vmatpush1.msra.mxu0 0.0
        %3470 = vmatprep.subr.mxu0 0.0
        %3471 = vmatpush1.msra.mxu0 0.0
        %3472 = vmatprep.subr.mxu0 0.0
        %3473 = vmatpush1.msra.mxu0 0.0
        %3474 = vmatprep.subr.mxu0 0.0
        %3475 = vmatpush1.msra.mxu0 0.0
        %3476 = vmatprep.mubr.f32.mxu0 0.0
        %3477 = vmatmul.mubr.f32.gmra.mrb[0].mxu0 %v3407
        %v3478 = vpop.f32.mrb[0].mxu0
        %v3479 = vadd.f32 0.0, %v3478
        %v3480 = vpop.f32.mrb[0].mxu0
        %3481 = vdwg.mxu0
        %v3482 = vcombine.low %v3251, %v3403
        %v3483 = vcombine.high %v3251, %v3403
        %v3485 = vunpack.c.l.s4 1983009808
        %v3486 = vunpack.c.0.s8 %v3485
        %v3487 = vlaneseq
        %v3488 = vshrl.u32 %v3487, 7
        %v3489 = vsub.s32 %v3486, %v3488
        %v3490 = vrot.slane %v3482, %v3489
        %v3492 = vunpack.c.l.s4 1983009808
        %v3493 = vunpack.c.0.s8 %v3492
        %v3494 = vlaneseq
        %v3495 = vshrl.u32 %v3494, 7
        %v3496 = vsub.s32 %v3493, %v3495
        %v3497 = vrot.slane %v3483, %v3496
        %v3498 = vcombine.low %v3327, %v3479
        %v3499 = vcombine.high %v3327, %v3479
        %v3501 = vunpack.c.l.s4 1983009808
        %v3502 = vunpack.c.0.s8 %v3501
        %v3503 = vlaneseq
        %v3504 = vshrl.u32 %v3503, 7
        %v3505 = vsub.s32 %v3502, %v3504
        %v3506 = vrot.slane %v3498, %v3505
        %v3508 = vunpack.c.l.s4 1983009808
        %v3509 = vunpack.c.0.s8 %v3508
        %v3510 = vlaneseq
        %v3511 = vshrl.u32 %v3510, 7
        %v3512 = vsub.s32 %v3509, %v3511
        %v3513 = vrot.slane %v3499, %v3512
        %v3514 = vcombine.low %v3490, %v3506
        %v3515 = vcombine.high %v3490, %v3506
        %v3517 = vunpack.c.l.s4 1934713408
        %v3518 = vunpack.c.0.s8 %v3517
        %v3519 = vlaneseq
        %v3520 = vshrl.u32 %v3519, 7
        %v3521 = vsub.s32 %v3518, %v3520
        %v3522 = vrot.slane %v3514, %v3521
        %v3524 = vunpack.c.l.s4 1934713408
        %v3525 = vunpack.c.0.s8 %v3524
        %v3526 = vlaneseq
        %v3527 = vshrl.u32 %v3526, 7
        %v3528 = vsub.s32 %v3525, %v3527
        %v3529 = vrot.slane %v3515, %v3528
        %v3530 = vcombine.low %v3497, %v3513
        %v3531 = vcombine.high %v3497, %v3513
        %v3533 = vunpack.c.l.s4 1934713408
        %v3534 = vunpack.c.0.s8 %v3533
        %v3535 = vlaneseq
        %v3536 = vshrl.u32 %v3535, 7
        %v3537 = vsub.s32 %v3534, %v3536
        %v3538 = vrot.slane %v3530, %v3537
        %v3540 = vunpack.c.l.s4 1934713408
        %v3541 = vunpack.c.0.s8 %v3540
        %v3542 = vlaneseq
        %v3543 = vshrl.u32 %v3542, 7
        %v3544 = vsub.s32 %v3541, %v3543
        %v3545 = vrot.slane %v3531, %v3544
        %v3546 = vcombine.high %v3522, 0.0
        %v3547 = vcombine.high %v3529, 0.0
        %v3548 = vcombine.high %v3538, 0.0
        %v3549 = vcombine.high %v3545, 0.0
        %v3550 = vcombine.low %v3522, %v3529
        %v3552 = vunpack.c.l.s4 1983009808
        %v3553 = vunpack.c.0.s8 %v3552
        %v3554 = vlaneseq
        %v3555 = vshrl.u32 %v3554, 7
        %v3556 = vsub.s32 %v3553, %v3555
        %v3557 = vrot.slane %v3550, %v3556
        %v3558 = vcombine.low %v3546, %v3547
        %v3560 = vunpack.c.l.s4 1983009808
        %v3561 = vunpack.c.0.s8 %v3560
        %v3562 = vlaneseq
        %v3563 = vshrl.u32 %v3562, 7
        %v3564 = vsub.s32 %v3561, %v3563
        %v3565 = vrot.slane %v3558, %v3564
        %v3566 = vcombine.low %v3538, %v3545
        %v3568 = vunpack.c.l.s4 1983009808
        %v3569 = vunpack.c.0.s8 %v3568
        %v3570 = vlaneseq
        %v3571 = vshrl.u32 %v3570, 7
        %v3572 = vsub.s32 %v3569, %v3571
        %v3573 = vrot.slane %v3566, %v3572
        %v3574 = vcombine.low %v3548, %v3549
        %v3576 = vunpack.c.l.s4 1983009808
        %v3577 = vunpack.c.0.s8 %v3576
        %v3578 = vlaneseq
        %v3579 = vshrl.u32 %v3578, 7
        %v3580 = vsub.s32 %v3577, %v3579
        %v3581 = vrot.slane %v3574, %v3580
        %v3582 = vcombine.low %v3557, %v3565
        %v3583 = vcombine.high %v3557, %v3565
        %v3585 = vunpack.c.l.s4 1934713408
        %v3586 = vunpack.c.0.s8 %v3585
        %v3587 = vlaneseq
        %v3588 = vshrl.u32 %v3587, 7
        %v3589 = vsub.s32 %v3586, %v3588
        %v3590 = vrot.slane %v3582, %v3589
        %v3592 = vunpack.c.l.s4 1934713408
        %v3593 = vunpack.c.0.s8 %v3592
        %v3594 = vlaneseq
        %v3595 = vshrl.u32 %v3594, 7
        %v3596 = vsub.s32 %v3593, %v3595
        %v3597 = vrot.slane %v3583, %v3596
        %v3598 = vcombine.low %v3573, %v3581
        %v3599 = vcombine.high %v3573, %v3581
        %v3601 = vunpack.c.l.s4 1934713408
        %v3602 = vunpack.c.0.s8 %v3601
        %v3603 = vlaneseq
        %v3604 = vshrl.u32 %v3603, 7
        %v3605 = vsub.s32 %v3602, %v3604
        %v3606 = vrot.slane %v3598, %v3605
        %v3608 = vunpack.c.l.s4 1934713408
        %v3609 = vunpack.c.0.s8 %v3608
        %v3610 = vlaneseq
        %v3611 = vshrl.u32 %v3610, 7
        %v3612 = vsub.s32 %v3609, %v3611
        %v3613 = vrot.slane %v3599, %v3612
        %v3614 = vcombine.low %v3590, %v3606
        %v3615 = vcombine.high %v3590, %v3606
        %v3616 = vcombine.low %v3597, %v3613
        %v3617 = vcombine.high %v3597, %v3613
        %3619 = vrot.lane.b32.xlu0 %v3615, 8
        %v3620 = vpop.permute.xlu0 %3619
        %3623 = vrot.lane.b32.xlu0 %v3616, 16
        %v3624 = vpop.permute.xlu0 %3623
        %3627 = vrot.lane.b32.xlu0 %v3617, 24
        %v3628 = vpop.permute.xlu0 %3627
        %v3630 = vsel %vm1056, %v3614, %v3620
        %v3631 = vsel %vm1846, %v3630, %v3624
        %v3632 = vsel %vm1848, %v3631, %v3628
        %s3633 = scalar_lea.vmem %s5, 160
        %v3634 = vld [vmem:[%s3633] sm:$0xff]
        %v3635 = vld [vmem:[%s3633 + $0x8] sm:$0xff]
        %v3636 = vld [vmem:[%s3633 + $0x10] sm:$0xff]
        %v3637 = vld [vmem:[%s3633 + $0x18] sm:$0xff]
        %v3638 = vlaneseq
        %v3639 = vshrl.u32 %v3638, 7
        %v3640 = vsub.s32 7, %v3639
        %v3641 = vrot.slane %v433, %v3640
        %v3643 = vsel %vm440, %v3632, 0
        %3645 = vmatprep.subr.mxu0 0.0
        %3646 = vmatpush1.msra.mxu0 %v3634
        %3647 = vmatprep.subr.mxu0 0.0
        %3648 = vmatpush1.msra.mxu0 %v3635
        %3649 = vmatprep.subr.mxu0 0.0
        %3650 = vmatpush1.msra.mxu0 %v3636
        %3651 = vmatprep.subr.mxu0 0.0
        %3652 = vmatpush1.msra.mxu0 %v3637
        %3653 = vmatprep.subr.mxu0 0.0
        %3654 = vmatpush1.msra.mxu0 0.0
        %3655 = vmatprep.subr.mxu0 0.0
        %3656 = vmatpush1.msra.mxu0 0.0
        %3657 = vmatprep.subr.mxu0 0.0
        %3658 = vmatpush1.msra.mxu0 0.0
        %3659 = vmatprep.subr.mxu0 0.0
        %3660 = vmatpush1.msra.mxu0 0.0
        %3661 = vmatprep.subr.mxu0 0.0
        %3662 = vmatpush1.msra.mxu0 0.0
        %3663 = vmatprep.subr.mxu0 0.0
        %3664 = vmatpush1.msra.mxu0 0.0
        %3665 = vmatprep.subr.mxu0 0.0
        %3666 = vmatpush1.msra.mxu0 0.0
        %3667 = vmatprep.subr.mxu0 0.0
        %3668 = vmatpush1.msra.mxu0 0.0
        %3669 = vmatprep.subr.mxu0 0.0
        %3670 = vmatpush1.msra.mxu0 0.0
        %3671 = vmatprep.subr.mxu0 0.0
        %3672 = vmatpush1.msra.mxu0 0.0
        %3673 = vmatprep.subr.mxu0 0.0
        %3674 = vmatpush1.msra.mxu0 0.0
        %3675 = vmatprep.subr.mxu0 0.0
        %3676 = vmatpush1.msra.mxu0 0.0
        %3677 = vmatprep.subr.mxu0 0.0
        %3678 = vmatpush1.msra.mxu0 0.0
        %3679 = vmatprep.subr.mxu0 0.0
        %3680 = vmatpush1.msra.mxu0 0.0
        %3681 = vmatprep.subr.mxu0 0.0
        %3682 = vmatpush1.msra.mxu0 0.0
        %3683 = vmatprep.subr.mxu0 0.0
        %3684 = vmatpush1.msra.mxu0 0.0
        %3685 = vmatprep.subr.mxu0 0.0
        %3686 = vmatpush1.msra.mxu0 0.0
        %3687 = vmatprep.subr.mxu0 0.0
        %3688 = vmatpush1.msra.mxu0 0.0
        %3689 = vmatprep.subr.mxu0 0.0
        %3690 = vmatpush1.msra.mxu0 0.0
        %3691 = vmatprep.subr.mxu0 0.0
        %3692 = vmatpush1.msra.mxu0 0.0
        %3693 = vmatprep.subr.mxu0 0.0
        %3694 = vmatpush1.msra.mxu0 0.0
        %3695 = vmatprep.subr.mxu0 0.0
        %3696 = vmatpush1.msra.mxu0 0.0
        %3697 = vmatprep.subr.mxu0 0.0
        %3698 = vmatpush1.msra.mxu0 0.0
        %3699 = vmatprep.subr.mxu0 0.0
        %3700 = vmatpush1.msra.mxu0 0.0
        %3701 = vmatprep.subr.mxu0 0.0
        %3702 = vmatpush1.msra.mxu0 0.0
        %3703 = vmatprep.subr.mxu0 0.0
        %3704 = vmatpush1.msra.mxu0 0.0
        %3705 = vmatprep.subr.mxu0 0.0
        %3706 = vmatpush1.msra.mxu0 0.0
        %3707 = vmatprep.subr.mxu0 0.0
        %3708 = vmatpush1.msra.mxu0 0.0
        %3709 = vmatprep.mubr.f32.mxu0 0.0
        %3710 = vmatmul.mubr.f32.gmra.mrb[0].mxu0 %v3643
        %v3711 = vpop.f32.mrb[0].mxu0
        %v3712 = vadd.f32 %v3641, %v3711
        %v3713 = vpop.f32.mrb[0].mxu0
        %3714 = vdwg.mxu0
        %v3715 = vadd.f32 %v1956, %v3712
        %v3716 = vsel %vm440, %v3715, 0.0
        %3717 = vadd.xlane.f32.xlu0 %v3716
        %v3718 = vpop.xlane.xlu0 %3717
        %v3719 = vmul.f32 %v3718, %v1936
        %v3720 = vsub.f32 %v3715, %v3719
        %v3721 = vmul.f32 %v3720, %v3720
        %v3722 = vsel %vm440, %v3721, 0.0
        %3723 = vadd.xlane.f32.xlu0 %v3722
        %v3724 = vpop.xlane.xlu0 %3723
        %v3725 = vmul.f32 %v3724, %v1936
        %v3726 = vadd.f32 %v3725, 1e-05
        %v3727 = vrsqrt.pop %v3726
        %v3728 = vmul.f32 %v3720, %v3727
        %v3729 = vlaneseq
        %v3730 = vshrl.u32 %v3729, 7
        %v3731 = vsub.s32 2, %v3730
        %v3732 = vrot.slane %v434, %v3731
        %v3733 = vmul.f32 %v3728, %v3732
        %v3734 = vlaneseq
        %v3735 = vshrl.u32 %v3734, 7
        %v3736 = vsub.s32 3, %v3735
        %v3737 = vrot.slane %v434, %v3736
        %v3738 = vadd.f32 %v3733, %v3737
        %v3739 = vld [vmem:[%s6] sm:$0xff]
        %v3740 = vld [vmem:[%s6 + $0x8] sm:$0xff]
        %v3741 = vld [vmem:[%s6 + $0x10] sm:$0xff]
        %v3742 = vld [vmem:[%s6 + $0x18] sm:$0xff]
        %v3743 = vld [vmem:[%s8] sm:$0x1]
        %v3745 = vlaneseq
        %v3746 = vshrl.u32 %v3745, 7
        %v3747 = vsub.s32 0, %v3746
        %v3748 = vrot.slane %v3743, %v3747
        %v3751 = vsel %vm440, %v3738, 0
        %3753 = vmatprep.subr.mxu0 0.0
        %3754 = vmatpush1.msra.mxu0 %v3739
        %3755 = vmatprep.subr.mxu0 0.0
        %3756 = vmatpush1.msra.mxu0 %v3740
        %3757 = vmatprep.subr.mxu0 0.0
        %3758 = vmatpush1.msra.mxu0 %v3741
        %3759 = vmatprep.subr.mxu0 0.0
        %3760 = vmatpush1.msra.mxu0 %v3742
        %3761 = vmatprep.subr.mxu0 0.0
        %3762 = vmatpush1.msra.mxu0 0.0
        %3763 = vmatprep.subr.mxu0 0.0
        %3764 = vmatpush1.msra.mxu0 0.0
        %3765 = vmatprep.subr.mxu0 0.0
        %3766 = vmatpush1.msra.mxu0 0.0
        %3767 = vmatprep.subr.mxu0 0.0
        %3768 = vmatpush1.msra.mxu0 0.0
        %3769 = vmatprep.subr.mxu0 0.0
        %3770 = vmatpush1.msra.mxu0 0.0
        %3771 = vmatprep.subr.mxu0 0.0
        %3772 = vmatpush1.msra.mxu0 0.0
        %3773 = vmatprep.subr.mxu0 0.0
        %3774 = vmatpush1.msra.mxu0 0.0
        %3775 = vmatprep.subr.mxu0 0.0
        %3776 = vmatpush1.msra.mxu0 0.0
        %3777 = vmatprep.subr.mxu0 0.0
        %3778 = vmatpush1.msra.mxu0 0.0
        %3779 = vmatprep.subr.mxu0 0.0
        %3780 = vmatpush1.msra.mxu0 0.0
        %3781 = vmatprep.subr.mxu0 0.0
        %3782 = vmatpush1.msra.mxu0 0.0
        %3783 = vmatprep.subr.mxu0 0.0
        %3784 = vmatpush1.msra.mxu0 0.0
        %3785 = vmatprep.subr.mxu0 0.0
        %3786 = vmatpush1.msra.mxu0 0.0
        %3787 = vmatprep.subr.mxu0 0.0
        %3788 = vmatpush1.msra.mxu0 0.0
        %3789 = vmatprep.subr.mxu0 0.0
        %3790 = vmatpush1.msra.mxu0 0.0
        %3791 = vmatprep.subr.mxu0 0.0
        %3792 = vmatpush1.msra.mxu0 0.0
        %3793 = vmatprep.subr.mxu0 0.0
        %3794 = vmatpush1.msra.mxu0 0.0
        %3795 = vmatprep.subr.mxu0 0.0
        %3796 = vmatpush1.msra.mxu0 0.0
        %3797 = vmatprep.subr.mxu0 0.0
        %3798 = vmatpush1.msra.mxu0 0.0
        %3799 = vmatprep.subr.mxu0 0.0
        %3800 = vmatpush1.msra.mxu0 0.0
        %3801 = vmatprep.subr.mxu0 0.0
        %3802 = vmatpush1.msra.mxu0 0.0
        %3803 = vmatprep.subr.mxu0 0.0
        %3804 = vmatpush1.msra.mxu0 0.0
        %3805 = vmatprep.subr.mxu0 0.0
        %3806 = vmatpush1.msra.mxu0 0.0
        %3807 = vmatprep.subr.mxu0 0.0
        %3808 = vmatpush1.msra.mxu0 0.0
        %3809 = vmatprep.subr.mxu0 0.0
        %3810 = vmatpush1.msra.mxu0 0.0
        %3811 = vmatprep.subr.mxu0 0.0
        %3812 = vmatpush1.msra.mxu0 0.0
        %3813 = vmatprep.subr.mxu0 0.0
        %3814 = vmatpush1.msra.mxu0 0.0
        %3815 = vmatprep.subr.mxu0 0.0
        %3816 = vmatpush1.msra.mxu0 0.0
        %3817 = vmatprep.mubr.f32.mxu0 0.0
        %3818 = vmatmul.mubr.f32.gmra.mrb[0].mxu0 %v3751
        %v3819 = vpop.f32.mrb[0].mxu0
        %v3820 = vadd.f32 %v3748, %v3819
        %v3821 = vpop.f32.mrb[0].mxu0
        %3822 = vdwg.mxu0
        %v3823 = vmax.f32 %v3820, 0.0
        %v3824 = vld [vmem:[%s7] sm:$0xff]
        %v3825 = vld [vmem:[%s7 + $0x8] sm:$0xff]
        %v3826 = vld [vmem:[%s7 + $0x10] sm:$0xff]
        %v3827 = vld [vmem:[%s7 + $0x18] sm:$0xff]
        %v3828 = vld [vmem:[%s7 + $0x20] sm:$0xff]
        %v3829 = vld [vmem:[%s7 + $0x28] sm:$0xff]
        %v3830 = vld [vmem:[%s7 + $0x30] sm:$0xff]
        %v3831 = vld [vmem:[%s7 + $0x38] sm:$0xff]
        %v3832 = vlaneseq
        %v3833 = vshrl.u32 %v3832, 7
        %v3834 = vsub.s32 6, %v3833
        %v3835 = vrot.slane %v434, %v3834
        %vm3836 = vcmask 523264
        %v3838 = vsel %vm3836, %v3823, 0
        %3840 = vmatprep.subr.mxu0 0.0
        %3841 = vmatpush1.msra.mxu0 %v3824
        %3842 = vmatprep.subr.mxu0 0.0
        %3843 = vmatpush1.msra.mxu0 %v3825
        %3844 = vmatprep.subr.mxu0 0.0
        %3845 = vmatpush1.msra.mxu0 %v3826
        %3846 = vmatprep.subr.mxu0 0.0
        %3847 = vmatpush1.msra.mxu0 %v3827
        %3848 = vmatprep.subr.mxu0 0.0
        %3849 = vmatpush1.msra.mxu0 %v3828
        %3850 = vmatprep.subr.mxu0 0.0
        %3851 = vmatpush1.msra.mxu0 %v3829
        %3852 = vmatprep.subr.mxu0 0.0
        %3853 = vmatpush1.msra.mxu0 %v3830
        %3854 = vmatprep.subr.mxu0 0.0
        %3855 = vmatpush1.msra.mxu0 %v3831
        %3856 = vmatprep.subr.mxu0 0.0
        %3857 = vmatpush1.msra.mxu0 0.0
        %3858 = vmatprep.subr.mxu0 0.0
        %3859 = vmatpush1.msra.mxu0 0.0
        %3860 = vmatprep.subr.mxu0 0.0
        %3861 = vmatpush1.msra.mxu0 0.0
        %3862 = vmatprep.subr.mxu0 0.0
        %3863 = vmatpush1.msra.mxu0 0.0
        %3864 = vmatprep.subr.mxu0 0.0
        %3865 = vmatpush1.msra.mxu0 0.0
        %3866 = vmatprep.subr.mxu0 0.0
        %3867 = vmatpush1.msra.mxu0 0.0
        %3868 = vmatprep.subr.mxu0 0.0
        %3869 = vmatpush1.msra.mxu0 0.0
        %3870 = vmatprep.subr.mxu0 0.0
        %3871 = vmatpush1.msra.mxu0 0.0
        %3872 = vmatprep.subr.mxu0 0.0
        %3873 = vmatpush1.msra.mxu0 0.0
        %3874 = vmatprep.subr.mxu0 0.0
        %3875 = vmatpush1.msra.mxu0 0.0
        %3876 = vmatprep.subr.mxu0 0.0
        %3877 = vmatpush1.msra.mxu0 0.0
        %3878 = vmatprep.subr.mxu0 0.0
        %3879 = vmatpush1.msra.mxu0 0.0
        %3880 = vmatprep.subr.mxu0 0.0
        %3881 = vmatpush1.msra.mxu0 0.0
        %3882 = vmatprep.subr.mxu0 0.0
        %3883 = vmatpush1.msra.mxu0 0.0
        %3884 = vmatprep.subr.mxu0 0.0
        %3885 = vmatpush1.msra.mxu0 0.0
        %3886 = vmatprep.subr.mxu0 0.0
        %3887 = vmatpush1.msra.mxu0 0.0
        %3888 = vmatprep.subr.mxu0 0.0
        %3889 = vmatpush1.msra.mxu0 0.0
        %3890 = vmatprep.subr.mxu0 0.0
        %3891 = vmatpush1.msra.mxu0 0.0
        %3892 = vmatprep.subr.mxu0 0.0
        %3893 = vmatpush1.msra.mxu0 0.0
        %3894 = vmatprep.subr.mxu0 0.0
        %3895 = vmatpush1.msra.mxu0 0.0
        %3896 = vmatprep.subr.mxu0 0.0
        %3897 = vmatpush1.msra.mxu0 0.0
        %3898 = vmatprep.subr.mxu0 0.0
        %3899 = vmatpush1.msra.mxu0 0.0
        %3900 = vmatprep.subr.mxu0 0.0
        %3901 = vmatpush1.msra.mxu0 0.0
        %3902 = vmatprep.subr.mxu0 0.0
        %3903 = vmatpush1.msra.mxu0 0.0
        %3904 = vmatprep.mubr.f32.mxu0 0.0
        %3905 = vmatmul.mubr.f32.gmra.mrb[0].mxu0 %v3838
        %v3906 = vpop.f32.mrb[0].mxu0
        %v3907 = vadd.f32 %v3835, %v3906
        %v3908 = vpop.f32.mrb[0].mxu0
        %3909 = vdwg.mxu0
        %v3910 = vadd.f32 %v3738, %v3907
        %v3911 = vsel %vm440, %v3910, 0.0
        %3912 = vadd.xlane.f32.xlu0 %v3911
        %v3913 = vpop.xlane.xlu0 %3912
        %v3914 = vmul.f32 %v3913, %v1936
        %v3915 = vsub.f32 %v3910, %v3914
        %v3916 = vmul.f32 %v3915, %v3915
        %v3917 = vsel %vm440, %v3916, 0.0
        %3918 = vadd.xlane.f32.xlu0 %v3917
        %v3919 = vpop.xlane.xlu0 %3918
        %v3920 = vmul.f32 %v3919, %v1936
        %v3921 = vadd.f32 %v3920, 1e-05
        %v3922 = vrsqrt.pop %v3921
        %v3923 = vmul.f32 %v3915, %v3922
        %v3924 = vlaneseq
        %v3925 = vshrl.u32 %v3924, 7
        %v3926 = vsub.s32 4, %v3925
        %v3927 = vrot.slane %v434, %v3926
        %v3928 = vmul.f32 %v3923, %v3927
        %v3929 = vlaneseq
        %v3930 = vshrl.u32 %v3929, 7
        %v3931 = vsub.s32 5, %v3930
        %v3932 = vrot.slane %v434, %v3931
        %v3933 = vadd.f32 %v3928, %v3932
        %3934 = vst.msk [vmem:[%s426] sm:$0xff] %vm440, %v3933
        %p3935 = scmp.lt.s32.totalorder %s22, 1
        %s3936 = scalar_select %p3935, %s22, 1
        %s3937 = smul.addr %s3936, 8
        %s3938 = scalar_lea.vmem %s10, %s3937
        // Predicated region
        $region65: #{transformer_decoder_layer.1} parent=59 // pred_check
          %p3939 = pneg %p270
        $region66: #{transformer_decoder_layer.1} parent=59 // pred_check_branch
          %3941 = sbr.rel (%p3939) target = $region68
        $region67: #{transformer_decoder_layer.1} parent=59 // pred_region
          _
        $region68: #{transformer_decoder_layer.1} parent=59 // pred_fallthru
          _
      $region60: #{transformer_decoder_layer.1} parent=5 // pred_fallthru
        _
      %p3942 = scmp.le.s32.totalorder 2, %s17
      // Predicated region
      $region69: #{transformer_decoder_layer.1} parent=5 // pred_check
        %p3943 = pneg %p3942
      $region70: #{transformer_decoder_layer.1} parent=5 // pred_check_branch
        %3945 = sbr.rel (%p3943) target = $region72
      $region71: #{transformer_decoder_layer.1} parent=5 // pred_region
        %s3946 = ssub.s32 %s17, 2
        // Predicated region
        $region73: #{transformer_decoder_layer.1} parent=71 // pred_check
          %p3947 = pneg %p276
        $region74: #{transformer_decoder_layer.1} parent=71 // pred_check_branch
          %3949 = sbr.rel (%p3947) target = $region76
        $region75: #{transformer_decoder_layer.1} parent=71 // pred_region
          %p3950 = scmp.lt.s32.totalorder %s23, 1
          %s3951 = scalar_select %p3950, %s23, 1
          %s3952 = smul.addr %s3951, 8
          %s3953 = scalar_lea.vmem %s10, %s3952
        $region76: #{transformer_decoder_layer.1} parent=71 // pred_fallthru
          _
      $region72: #{transformer_decoder_layer.1} parent=5 // pred_fallthru
        _
    $region6: #{transformer_decoder_layer.1} parent=1 // loop_footer
      %s21 = sadd.s32 1, %s17
    $region7: #{transformer_decoder_layer.1} parent=1 // loop_footer_branch
      %16 = sbr.rel target = $region3
    $region8: #{transformer_decoder_layer.1} parent=1 // loop_exit
      _
    %3954 = vsyncpa [#allocation3], 1
    %s3955 = scalar_lea.sflag [#allocation3], 1
    %3956 = vsyncpa %s3955, 1

</llo_original>
